<compile_context>
chip_gen: v7x
topology: tpu7x:2x2x1
jax: 0.10.0
libtpu: 0.0.40
codegen_flags: <defaults>
</compile_context>

<pallas_src>
import math

import jax
import jax.numpy as jnp
from jax.experimental import pallas as pl
from jax.experimental.pallas import tpu as pltpu

D_IN = 32 * 128   # 4096
D_HID = 256
D_OUT = 128


def mlp_head_kernel(x_ref, w1_ref, b1_ref, w2_ref, b2_ref, o_ref):
    # First linear: (TILE_B, 4096)bf16 @ (4096, 256)bf16 -> f32 acc, + bias (f32).
    h = jnp.dot(x_ref[...], w1_ref[...], preferred_element_type=jnp.float32)
    h = h + b1_ref[...]
    # LeakyReLU(0.1) in f32 (pure VPU; MXU stays the bottleneck).
    h = jnp.where(h > 0, h, 0.1 * h)
    # Second linear: (TILE_B, 256)bf16 @ (256, 128)bf16 -> f32 acc, + bias (f32).
    out = jnp.dot(h.astype(jnp.bfloat16), w2_ref[...],
                  preferred_element_type=jnp.float32)
    o_ref[...] = out + b2_ref[...]


def _default_tile_b():
    # v7x: 64 MiB VMEM/TC -> 512-row tiles; v5e/v6e: 128 MiB -> 1024-row tiles.
    try:
        vmem = pltpu.get_tpu_info().vmem_capacity_bytes
    except Exception:
        vmem = 64 << 20
    return 512 if vmem <= (64 << 20) else 1024


def mlp_head(x, w1_t, b1, w2_t, b2, *, tile_b=None):
    """x: (B, 32, 128). Returns (B, 128) float32."""
    B = x.shape[0]
    x2d = x.reshape(B, D_IN).astype(jnp.bfloat16)     # flatten(start_dim=1) + bf16
    w1_bf = w1_t.astype(jnp.bfloat16)
    w2_bf = w2_t.astype(jnp.bfloat16)
    b1_2d = b1.reshape(1, D_HID).astype(jnp.float32)
    b2_2d = b2.reshape(1, D_OUT).astype(jnp.float32)

    if tile_b is None:
        tile_b = _default_tile_b()

    if B <= tile_b:
        tile_b = B                     # single full-extent block (no (8,128) issue)
        b_pad = B
    else:
        b_pad = pl.cdiv(B, tile_b) * tile_b
        if b_pad != B:
            x2d = jnp.pad(x2d, ((0, b_pad - B), (0, 0)))
    n_tiles = b_pad // tile_b

    cost = pl.CostEstimate(
        flops=2 * b_pad * D_IN * D_HID + 2 * b_pad * D_HID * D_OUT,
        transcendentals=0,
        bytes_accessed=(2 * b_pad * D_IN            # x (bf16)
                        + 2 * D_IN * D_HID          # w1 (bf16)
                        + 2 * D_HID * D_OUT         # w2 (bf16)
                        + 4 * (D_HID + D_OUT)       # biases (f32)
                        + 4 * b_pad * D_OUT),       # out (f32)
    )

    out = pl.pallas_call(
        mlp_head_kernel,
        out_shape=jax.ShapeDtypeStruct((b_pad, D_OUT), jnp.float32),
        grid=(n_tiles,),
        in_specs=[
            pl.BlockSpec((tile_b, D_IN), lambda i: (i, 0)),    # x: streamed per tile
            pl.BlockSpec((D_IN, D_HID), lambda i: (0, 0)),     # w1: resident in VMEM
            pl.BlockSpec((1, D_HID), lambda i: (0, 0)),        # b1: resident
            pl.BlockSpec((D_HID, D_OUT), lambda i: (0, 0)),    # w2: resident
            pl.BlockSpec((1, D_OUT), lambda i: (0, 0)),        # b2: resident
        ],
        out_specs=pl.BlockSpec((tile_b, D_OUT), lambda i: (i, 0)),
        compiler_params=pltpu.CompilerParams(
            dimension_semantics=("parallel",),
            vmem_limit_bytes=32 << 20,
        ),
        cost_estimate=cost,
    )(x2d, w1_bf, b1_2d, w2_bf, b2_2d)

    return out[:B] if b_pad != B else out


def init_params(key):
    """Deterministic init matching kaiming_normal_(mode='fan_out', a=0.1), bias=0.

    PyTorch weight shape is (out, in); fan_out = out_features.
    gain = sqrt(2 / (1 + a^2)), std = gain / sqrt(fan_out).
    Weights returned transposed (in, out) for the kernel's row-major matmul layout.
    """
    k1, k2 = jax.random.split(key)
    gain = math.sqrt(2.0 / (1.0 + 0.1 ** 2))

    std1 = gain / math.sqrt(D_HID)            # fan_out of first linear = 256
    w1 = jax.random.normal(k1, (D_HID, D_IN), dtype=jnp.float32) * std1
    b1 = jnp.zeros((D_HID,), dtype=jnp.float32)

    std2 = gain / math.sqrt(D_OUT)            # fan_out of second linear = 128
    w2 = jax.random.normal(k2, (D_OUT, D_HID), dtype=jnp.float32) * std2
    b2 = jnp.zeros((D_OUT,), dtype=jnp.float32)

    return w1.T, b1, w2.T, b2                 # (in, out) layout


def mlp_head_ref_f32(x, w1_t, b1, w2_t, b2):
    """Pure-f32 JAX reference (matches the PyTorch module numerics)."""
    x2d = x.reshape(x.shape[0], D_IN)
    h = x2d @ w1_t + b1
    h = jnp.where(h > 0, h, 0.1 * h)
    return h @ w2_t + b2


def mlp_head_ref_bf16(x, w1_t, b1, w2_t, b2):
    """Reference with the same bf16-input / f32-accumulate numerics as the kernel."""
    x2d = x.reshape(x.shape[0], D_IN).astype(jnp.bfloat16)
    h = jnp.dot(x2d, w1_t.astype(jnp.bfloat16),
                preferred_element_type=jnp.float32) + b1
    h = jnp.where(h > 0, h, 0.1 * h)
    out = jnp.dot(h.astype(jnp.bfloat16), w2_t.astype(jnp.bfloat16),
                  preferred_element_type=jnp.float32) + b2
    return out


if __name__ == "__main__":
    key = jax.random.PRNGKey(0)
    k_x, k_p, k_x2, k_x3 = jax.random.split(key, 4)
    w1_t, b1, w2_t, b2 = init_params(k_p)

    # --- Small default run (B=2, single full-extent block). ---
    B = 2
    x = jax.random.normal(k_x, (B, 32, 128), dtype=jnp.float32)
    out = jax.block_until_ready(mlp_head(x, w1_t, b1, w2_t, b2))
    assert out.shape == (B, D_OUT), out.shape
    # Tight check vs bf16-consistent reference.
    ref16 = mlp_head_ref_bf16(x, w1_t, b1, w2_t, b2)
    assert jnp.allclose(out, ref16, atol=1e-2, rtol=1e-2), "mismatch vs bf16 reference"
    # Loosened check vs full-f32 PyTorch-equivalent reference (bf16 MXU inputs).
    ref32 = mlp_head_ref_f32(x, w1_t, b1, w2_t, b2)
    assert jnp.allclose(out, ref32, atol=2e-1, rtol=5e-2), "mismatch vs f32 reference"

    # --- Exercise the multi-tile batch grid (2 tiles of 8 rows). ---
    x_mt = jax.random.normal(k_x2, (16, 32, 128), dtype=jnp.float32)
    out_mt = jax.block_until_ready(mlp_head(x_mt, w1_t, b1, w2_t, b2, tile_b=8))
    assert jnp.allclose(out_mt, mlp_head_ref_bf16(x_mt, w1_t, b1, w2_t, b2),
                        atol=1e-2, rtol=1e-2), "mismatch (multi-tile)"

    # --- Exercise the batch-padding path (B=12 padded to 16 with tile_b=8). ---
    x_pad = jax.random.normal(k_x3, (12, 32, 128), dtype=jnp.float32)
    out_pad = jax.block_until_ready(mlp_head(x_pad, w1_t, b1, w2_t, b2, tile_b=8))
    assert out_pad.shape == (12, D_OUT)
    assert jnp.allclose(out_pad, mlp_head_ref_bf16(x_pad, w1_t, b1, w2_t, b2),
                        atol=1e-2, rtol=1e-2), "mismatch (padded batch)"

    print("KERNEL_OK")
</pallas_src>

<mosaic_0001>
module attributes {stable_mosaic.version = 11 : i64} {
  func.func @mlp_head_kernel(%arg0: i32, %arg1: memref<2x4096xbf16, #tpu.memory_space<vmem>>, %arg2: memref<4096x256xbf16, #tpu.memory_space<vmem>>, %arg3: memref<1x256xf32, #tpu.memory_space<vmem>>, %arg4: memref<256x128xbf16, #tpu.memory_space<vmem>>, %arg5: memref<1x128xf32, #tpu.memory_space<vmem>>, %arg6: memref<2x128xf32, #tpu.memory_space<vmem>>) attributes {dimension_semantics = [#tpu.dimension_semantics<parallel>], iteration_bounds = array<i64: 1>, scalar_prefetch = 0 : i64, scratch_operands = 0 : i64, tpu.core_type = #tpu.core_type<tc>, window_params = [{transform_indices = @transform_0, window_bounds = array<i64: 2, 4096>}, {pipeline_mode = #tpu.pipeline_mode<synchronous>, transform_indices = @transform_1, window_bounds = array<i64: 4096, 256>}, {pipeline_mode = #tpu.pipeline_mode<synchronous>, transform_indices = @transform_2, window_bounds = array<i64: 1, 256>}, {pipeline_mode = #tpu.pipeline_mode<synchronous>, transform_indices = @transform_3, window_bounds = array<i64: 256, 128>}, {pipeline_mode = #tpu.pipeline_mode<synchronous>, transform_indices = @transform_4, window_bounds = array<i64: 1, 128>}, {transform_indices = @transform_5, window_bounds = array<i64: 2, 128>}]} {
    %c0 = arith.constant 0 : index
    %c0_0 = arith.constant 0 : index
    %0 = vector.load %arg1[%c0, %c0_0] : memref<2x4096xbf16, #tpu.memory_space<vmem>>, vector<2x4096xbf16>
    %c0_1 = arith.constant 0 : index
    %c0_2 = arith.constant 0 : index
    %1 = vector.load %arg2[%c0_1, %c0_2] : memref<4096x256xbf16, #tpu.memory_space<vmem>>, vector<4096x256xbf16>
    %cst = arith.constant dense<0.000000e+00> : vector<2x256xf32>
    %2 = tpu.matmul %0, %1, %cst {dimension_numbers = #tpu.dot_dimension_numbers<[1], [0], [0], [1], [0, 0, 1, 1], [], []>} : vector<2x4096xbf16>, vector<4096x256xbf16>, vector<2x256xf32> -> vector<2x256xf32>
    %c0_3 = arith.constant 0 : index
    %c0_4 = arith.constant 0 : index
    %3 = vector.load %arg3[%c0_3, %c0_4] : memref<1x256xf32, #tpu.memory_space<vmem>>, vector<1x256xf32>
    %4 = vector.broadcast %3 : vector<1x256xf32> to vector<2x256xf32>
    %5 = arith.addf %2, %4 : vector<2x256xf32>
    %cst_5 = arith.constant 0.000000e+00 : f32
    %6 = vector.broadcast %cst_5 : f32 to vector<2x256xf32>
    %7 = arith.cmpf ogt, %5, %6 : vector<2x256xf32>
    %cst_6 = arith.constant 1.000000e-01 : f32
    %8 = vector.broadcast %cst_6 : f32 to vector<2x256xf32>
    %9 = arith.mulf %8, %5 : vector<2x256xf32>
    %10 = arith.select %7, %5, %9 : vector<2x256xi1>, vector<2x256xf32>
    %11 = arith.truncf %10 : vector<2x256xf32> to vector<2x256xbf16>
    %c0_7 = arith.constant 0 : index
    %c0_8 = arith.constant 0 : index
    %12 = vector.load %arg4[%c0_7, %c0_8] : memref<256x128xbf16, #tpu.memory_space<vmem>>, vector<256x128xbf16>
    %cst_9 = arith.constant dense<0.000000e+00> : vector<2x128xf32>
    %13 = tpu.matmul %11, %12, %cst_9 {dimension_numbers = #tpu.dot_dimension_numbers<[1], [0], [0], [1], [0, 0, 1, 1], [], []>} : vector<2x256xbf16>, vector<256x128xbf16>, vector<2x128xf32> -> vector<2x128xf32>
    %c0_10 = arith.constant 0 : index
    %c0_11 = arith.constant 0 : index
    %14 = vector.load %arg5[%c0_10, %c0_11] : memref<1x128xf32, #tpu.memory_space<vmem>>, vector<1x128xf32>
    %15 = vector.broadcast %14 : vector<1x128xf32> to vector<2x128xf32>
    %16 = arith.addf %13, %15 : vector<2x128xf32>
    %c0_12 = arith.constant 0 : index
    %c0_13 = arith.constant 0 : index
    %17 = vector.load %arg6[%c0_12, %c0_13] : memref<2x128xf32, #tpu.memory_space<vmem>>, vector<2x128xf32>
    tpu.vector_store %arg6[%c0_12, %c0_13], %16 {strides = array<i32>} : memref<2x128xf32, #tpu.memory_space<vmem>>, vector<2x128xf32>,
    return
  }
  func.func @transform_0(%arg0: i32) -> (i32, i32) {
    %c0_i32 = arith.constant 0 : i32
    %c0_i32_0 = arith.constant 0 : i32
    return %arg0, %c0_i32 : i32, i32
  }
  func.func @transform_1(%arg0: i32) -> (i32, i32) {
    %c0_i32 = arith.constant 0 : i32
    %c0_i32_0 = arith.constant 0 : i32
    %c0_i32_1 = arith.constant 0 : i32
    return %c0_i32, %c0_i32_0 : i32, i32
  }
  func.func @transform_2(%arg0: i32) -> (i32, i32) {
    %c0_i32 = arith.constant 0 : i32
    %c0_i32_0 = arith.constant 0 : i32
    %c0_i32_1 = arith.constant 0 : i32
    return %c0_i32, %c0_i32_0 : i32, i32
  }
  func.func @transform_3(%arg0: i32) -> (i32, i32) {
    %c0_i32 = arith.constant 0 : i32
    %c0_i32_0 = arith.constant 0 : i32
    %c0_i32_1 = arith.constant 0 : i32
    return %c0_i32, %c0_i32_0 : i32, i32
  }
  func.func @transform_4(%arg0: i32) -> (i32, i32) {
    %c0_i32 = arith.constant 0 : i32
    %c0_i32_0 = arith.constant 0 : i32
    %c0_i32_1 = arith.constant 0 : i32
    return %c0_i32, %c0_i32_0 : i32, i32
  }
  func.func @transform_5(%arg0: i32) -> (i32, i32) {
    %c0_i32 = arith.constant 0 : i32
    %c0_i32_0 = arith.constant 0 : i32
    return %arg0, %c0_i32 : i32, i32
  }
}

</mosaic_0001>

<llo_original>
// kernel: tpu_custom_call.1
$region0: #{tpu_custom_call.1}
  #allocation0 [shape = 'u32[]', space=smem, size = 0x4, offset = 0x4, fixed_abs, tag = 'smem constant byte address 0x4 - core index']
  #allocation1 [shape = 'u32[144,128]{1,0:T(1,128)}', space=vmem, size = 0x12000, scoped, tag = 'internal scratch']
  %s0 = inlined_call_operand.hbm [shape: bf16[2,4096], index: 0, kind: input, shape index: {}]
  %s1 = inlined_call_operand.hbm [shape: bf16[4096,256], index: 1, kind: input, shape index: {}]
  %s2 = inlined_call_operand.hbm [shape: f32[1,256], index: 2, kind: input, shape index: {}]
  %s3 = inlined_call_operand.hbm [shape: bf16[256,128], index: 3, kind: input, shape index: {}]
  %s4 = inlined_call_operand.hbm [shape: f32[1,128], index: 4, kind: input, shape index: {}]
  %s5 = inlined_call_operand.hbm [shape: f32[2,128], index: 5, kind: output, shape index: {}]
  %s6 = sld [smem:[#allocation0]]
  $region50: #{tpu_custom_call.1} parent=0
    _
  %s8 = ssub.s32 1, %s6
  %s9 = scalar_select 0, %s8, %s6
  $region1: #{tpu_custom_call.1} parent=0
    #allocation2 [shape = 'u8[16384]{0}', space=vmem, size = 0x4000, scoped, tag = 'input window, operand 0, single buffered']
    #allocation3 [shape = 's32[1]{0}', space=sflag, size = 0x4, scoped, tag = 'scoped memory for tpu_custom_call.1']
    #allocation4 [shape = 's32[1]{0}', space=sflag, size = 0x4, scoped, tag = 'scoped memory for tpu_custom_call.1']
    #allocation5 [shape = 'u8[2097152]{0}', space=vmem, size = 0x200000, scoped, tag = 'input window, operand 1, single buffered']
    #allocation6 [shape = 's32[1]{0}', space=sflag, size = 0x4, scoped, tag = 'scoped memory for tpu_custom_call.1']
    #allocation7 [shape = 'u8[1024]{0}', space=vmem, size = 0x400, scoped, tag = 'input window, operand 2, single buffered']
    #allocation8 [shape = 'u8[65536]{0}', space=vmem, size = 0x10000, scoped, tag = 'input window, operand 3, single buffered']
    #allocation9 [shape = 's32[1]{0}', space=sflag, size = 0x4, scoped, tag = 'scoped memory for tpu_custom_call.1']
    #allocation10 [shape = 'u8[512]{0}', space=vmem, size = 0x400, scoped, tag = 'input window, operand 4, single buffered']
    #allocation11 [shape = 'u8[1024]{0}', space=vmem, size = 0x400, scoped, tag = 'output window, operand 0, single buffered']
    %10 = vsyncpa [#allocation3], 0
    %11 = vsyncpa [#allocation6], 0
    %12 = vsyncpa [#allocation9], 0
    %13 = vsyncpa [#allocation4], 0
    // Predicated region
    $region2: #{tpu_custom_call.1} parent=1 // pred_check
      _
    $region3: #{tpu_custom_call.1} parent=1 // pred_check_branch
      %15 = sbr.rel (0) target = $region5
    $region4: #{tpu_custom_call.1} parent=1 // pred_region
      %s17 = ssub.s32 512, 512
      %18 = vsyncadd [#allocation3], %s17
      %s20 = sshll.u32 [#allocation2], 4
      %s21 = int_to_ptr.vmem [resolvable:$true] %s20
      %23 = dma.hbm_to_vmem [thread:$0]  %s0, 512, %s21, [#allocation3]
    $region5: #{tpu_custom_call.1} parent=1 // pred_fallthru
      _
    // Predicated region
    $region6: #{tpu_custom_call.1} parent=1 // pred_check
      _
    $region7: #{tpu_custom_call.1} parent=1 // pred_check_branch
      %25 = sbr.rel (0) target = $region9
    $region8: #{tpu_custom_call.1} parent=1 // pred_region
      %s27 = ssub.s32 65536, 65536
      %28 = vsyncadd [#allocation6], %s27
      %s29 = sshll.u32 [#allocation5], 4
      %s30 = int_to_ptr.vmem [resolvable:$true] %s29
      %35 = dma.hbm_to_vmem [thread:$0]  %s1, 65536, %s30, [#allocation6], 128, 128, 8
    $region9: #{tpu_custom_call.1} parent=1 // pred_fallthru
      _
    // Predicated region
    $region10: #{tpu_custom_call.1} parent=1 // pred_check
      _
    $region11: #{tpu_custom_call.1} parent=1 // pred_check_branch
      %37 = sbr.rel (0) target = $region13
    $region12: #{tpu_custom_call.1} parent=1 // pred_region
      %s39 = ssub.s32 32, 32
      %40 = vsyncadd [#allocation6], %s39
      %s42 = sshll.u32 [#allocation7], 4
      %s43 = int_to_ptr.vmem [resolvable:$true] %s42
      %45 = dma.hbm_to_vmem [thread:$0]  %s2, 32, %s43, [#allocation6]
    $region13: #{tpu_custom_call.1} parent=1 // pred_fallthru
      _
    // Predicated region
    $region14: #{tpu_custom_call.1} parent=1 // pred_check
      _
    $region15: #{tpu_custom_call.1} parent=1 // pred_check_branch
      %47 = sbr.rel (0) target = $region17
    $region16: #{tpu_custom_call.1} parent=1 // pred_region
      %s49 = ssub.s32 2048, 2048
      %50 = vsyncadd [#allocation9], %s49
      %s51 = sshll.u32 [#allocation8], 4
      %s52 = int_to_ptr.vmem [resolvable:$true] %s51
      %57 = dma.hbm_to_vmem [thread:$0]  %s3, 2048, %s52, [#allocation9], 64, 64, 4
    $region17: #{tpu_custom_call.1} parent=1 // pred_fallthru
      _
    // Predicated region
    $region18: #{tpu_custom_call.1} parent=1 // pred_check
      _
    $region19: #{tpu_custom_call.1} parent=1 // pred_check_branch
      %59 = sbr.rel (0) target = $region21
    $region20: #{tpu_custom_call.1} parent=1 // pred_region
      %s61 = ssub.s32 16, 16
      %62 = vsyncadd [#allocation9], %s61
      %s64 = sshll.u32 [#allocation10], 4
      %s65 = int_to_ptr.vmem [resolvable:$true] %s64
      %67 = dma.hbm_to_vmem [thread:$0]  %s4, 16, %s65, [#allocation9]
    $region21: #{tpu_custom_call.1} parent=1 // pred_fallthru
      _
    // Predicated region
    $region22: #{tpu_custom_call.1} parent=1 // pred_check
      _
    $region23: #{tpu_custom_call.1} parent=1 // pred_check_branch
      %69 = sbr.rel (0) target = $region25
    $region24: #{tpu_custom_call.1} parent=1 // pred_region
      %70 = dma.done [#allocation3], 512
    $region25: #{tpu_custom_call.1} parent=1 // pred_fallthru
      _
    // Predicated region
    $region26: #{tpu_custom_call.1} parent=1 // pred_check
      _
    $region27: #{tpu_custom_call.1} parent=1 // pred_check_branch
      %72 = sbr.rel (0) target = $region29
    $region28: #{tpu_custom_call.1} parent=1 // pred_region
      %73 = dma.done [#allocation6], 65536
    $region29: #{tpu_custom_call.1} parent=1 // pred_fallthru
      _
    // Predicated region
    $region30: #{tpu_custom_call.1} parent=1 // pred_check
      _
    $region31: #{tpu_custom_call.1} parent=1 // pred_check_branch
      %75 = sbr.rel (0) target = $region33
    $region32: #{tpu_custom_call.1} parent=1 // pred_region
      %76 = dma.done [#allocation6], 32
    $region33: #{tpu_custom_call.1} parent=1 // pred_fallthru
      _
    // Predicated region
    $region34: #{tpu_custom_call.1} parent=1 // pred_check
      _
    $region35: #{tpu_custom_call.1} parent=1 // pred_check_branch
      %78 = sbr.rel (0) target = $region37
    $region36: #{tpu_custom_call.1} parent=1 // pred_region
      %79 = dma.done [#allocation9], 2048
    $region37: #{tpu_custom_call.1} parent=1 // pred_fallthru
      _
    // Predicated region
    $region38: #{tpu_custom_call.1} parent=1 // pred_check
      _
    $region39: #{tpu_custom_call.1} parent=1 // pred_check_branch
      %81 = sbr.rel (0) target = $region41
    $region40: #{tpu_custom_call.1} parent=1 // pred_region
      %82 = dma.done [#allocation9], 16
    $region41: #{tpu_custom_call.1} parent=1 // pred_fallthru
      _
    %v84 = vld [vmem:[#allocation2] sm:$0xff]
    %v85 = vld [vmem:[#allocation2 + $0x8] sm:$0xff]
    %v86 = vld [vmem:[#allocation2 + $0x10] sm:$0xff]
    %v87 = vld [vmem:[#allocation2 + $0x18] sm:$0xff]
    %v88 = vld [vmem:[#allocation5] sm:$0xff]
    %v89 = vld [vmem:[#allocation5 + $0x8] sm:$0xff]
    %v90 = vld [vmem:[#allocation5 + $0x10] sm:$0xff]
    %v91 = vld [vmem:[#allocation5 + $0x18] sm:$0xff]
    %v92 = vld [vmem:[#allocation5 + $0x20] sm:$0xff]
    %v93 = vld [vmem:[#allocation5 + $0x28] sm:$0xff]
    %v94 = vld [vmem:[#allocation5 + $0x30] sm:$0xff]
    %v95 = vld [vmem:[#allocation5 + $0x38] sm:$0xff]
    %v96 = vld [vmem:[#allocation5 + $0x40] sm:$0xff]
    %v97 = vld [vmem:[#allocation5 + $0x48] sm:$0xff]
    %v98 = vld [vmem:[#allocation5 + $0x50] sm:$0xff]
    %v99 = vld [vmem:[#allocation5 + $0x58] sm:$0xff]
    %v100 = vld [vmem:[#allocation5 + $0x60] sm:$0xff]
    %v101 = vld [vmem:[#allocation5 + $0x68] sm:$0xff]
    %v102 = vld [vmem:[#allocation5 + $0x70] sm:$0xff]
    %v103 = vld [vmem:[#allocation5 + $0x78] sm:$0xff]
    %v104 = vld [vmem:[#allocation5 + $0x80] sm:$0xff]
    %v105 = vld [vmem:[#allocation5 + $0x88] sm:$0xff]
    %v106 = vld [vmem:[#allocation5 + $0x90] sm:$0xff]
    %v107 = vld [vmem:[#allocation5 + $0x98] sm:$0xff]
    %v108 = vld [vmem:[#allocation5 + $0xa0] sm:$0xff]
    %v109 = vld [vmem:[#allocation5 + $0xa8] sm:$0xff]
    %v110 = vld [vmem:[#allocation5 + $0xb0] sm:$0xff]
    %v111 = vld [vmem:[#allocation5 + $0xb8] sm:$0xff]
    %v112 = vld [vmem:[#allocation5 + $0xc0] sm:$0xff]
    %v113 = vld [vmem:[#allocation5 + $0xc8] sm:$0xff]
    %v114 = vld [vmem:[#allocation5 + $0xd0] sm:$0xff]
    %v115 = vld [vmem:[#allocation5 + $0xd8] sm:$0xff]
    %v116 = vld [vmem:[#allocation5 + $0xe0] sm:$0xff]
    %v117 = vld [vmem:[#allocation5 + $0xe8] sm:$0xff]
    %v118 = vld [vmem:[#allocation5 + $0xf0] sm:$0xff]
    %v119 = vld [vmem:[#allocation5 + $0xf8] sm:$0xff]
    %v120 = vld [vmem:[#allocation5 + $0x100] sm:$0xff]
    %v121 = vld [vmem:[#allocation5 + $0x108] sm:$0xff]
    %v122 = vld [vmem:[#allocation5 + $0x110] sm:$0xff]
    %v123 = vld [vmem:[#allocation5 + $0x118] sm:$0xff]
    %v124 = vld [vmem:[#allocation5 + $0x120] sm:$0xff]
    %v125 = vld [vmem:[#allocation5 + $0x128] sm:$0xff]
    %v126 = vld [vmem:[#allocation5 + $0x130] sm:$0xff]
    %v127 = vld [vmem:[#allocation5 + $0x138] sm:$0xff]
    %v128 = vld [vmem:[#allocation5 + $0x140] sm:$0xff]
    %v129 = vld [vmem:[#allocation5 + $0x148] sm:$0xff]
    %v130 = vld [vmem:[#allocation5 + $0x150] sm:$0xff]
    %v131 = vld [vmem:[#allocation5 + $0x158] sm:$0xff]
    %v132 = vld [vmem:[#allocation5 + $0x160] sm:$0xff]
    %v133 = vld [vmem:[#allocation5 + $0x168] sm:$0xff]
    %v134 = vld [vmem:[#allocation5 + $0x170] sm:$0xff]
    %v135 = vld [vmem:[#allocation5 + $0x178] sm:$0xff]
    %v136 = vld [vmem:[#allocation5 + $0x180] sm:$0xff]
    %v137 = vld [vmem:[#allocation5 + $0x188] sm:$0xff]
    %v138 = vld [vmem:[#allocation5 + $0x190] sm:$0xff]
    %v139 = vld [vmem:[#allocation5 + $0x198] sm:$0xff]
    %v140 = vld [vmem:[#allocation5 + $0x1a0] sm:$0xff]
    %v141 = vld [vmem:[#allocation5 + $0x1a8] sm:$0xff]
    %v142 = vld [vmem:[#allocation5 + $0x1b0] sm:$0xff]
    %v143 = vld [vmem:[#allocation5 + $0x1b8] sm:$0xff]
    %v144 = vld [vmem:[#allocation5 + $0x1c0] sm:$0xff]
    %v145 = vld [vmem:[#allocation5 + $0x1c8] sm:$0xff]
    %v146 = vld [vmem:[#allocation5 + $0x1d0] sm:$0xff]
    %v147 = vld [vmem:[#allocation5 + $0x1d8] sm:$0xff]
    %v148 = vld [vmem:[#allocation5 + $0x1e0] sm:$0xff]
    %v149 = vld [vmem:[#allocation5 + $0x1e8] sm:$0xff]
    %v150 = vld [vmem:[#allocation5 + $0x1f0] sm:$0xff]
    %v151 = vld [vmem:[#allocation5 + $0x1f8] sm:$0xff]
    %v152 = vld [vmem:[#allocation5 + $0x200] sm:$0xff]
    %v153 = vld [vmem:[#allocation5 + $0x208] sm:$0xff]
    %v154 = vld [vmem:[#allocation5 + $0x210] sm:$0xff]
    %v155 = vld [vmem:[#allocation5 + $0x218] sm:$0xff]
    %v156 = vld [vmem:[#allocation5 + $0x220] sm:$0xff]
    %v157 = vld [vmem:[#allocation5 + $0x228] sm:$0xff]
    %v158 = vld [vmem:[#allocation5 + $0x230] sm:$0xff]
    %v159 = vld [vmem:[#allocation5 + $0x238] sm:$0xff]
    %v160 = vld [vmem:[#allocation5 + $0x240] sm:$0xff]
    %v161 = vld [vmem:[#allocation5 + $0x248] sm:$0xff]
    %v162 = vld [vmem:[#allocation5 + $0x250] sm:$0xff]
    %v163 = vld [vmem:[#allocation5 + $0x258] sm:$0xff]
    %v164 = vld [vmem:[#allocation5 + $0x260] sm:$0xff]
    %v165 = vld [vmem:[#allocation5 + $0x268] sm:$0xff]
    %v166 = vld [vmem:[#allocation5 + $0x270] sm:$0xff]
    %v167 = vld [vmem:[#allocation5 + $0x278] sm:$0xff]
    %v168 = vld [vmem:[#allocation5 + $0x280] sm:$0xff]
    %v169 = vld [vmem:[#allocation5 + $0x288] sm:$0xff]
    %v170 = vld [vmem:[#allocation5 + $0x290] sm:$0xff]
    %v171 = vld [vmem:[#allocation5 + $0x298] sm:$0xff]
    %v172 = vld [vmem:[#allocation5 + $0x2a0] sm:$0xff]
    %v173 = vld [vmem:[#allocation5 + $0x2a8] sm:$0xff]
    %v174 = vld [vmem:[#allocation5 + $0x2b0] sm:$0xff]
    %v175 = vld [vmem:[#allocation5 + $0x2b8] sm:$0xff]
    %v176 = vld [vmem:[#allocation5 + $0x2c0] sm:$0xff]
    %v177 = vld [vmem:[#allocation5 + $0x2c8] sm:$0xff]
    %v178 = vld [vmem:[#allocation5 + $0x2d0] sm:$0xff]
    %v179 = vld [vmem:[#allocation5 + $0x2d8] sm:$0xff]
    %v180 = vld [vmem:[#allocation5 + $0x2e0] sm:$0xff]
    %v181 = vld [vmem:[#allocation5 + $0x2e8] sm:$0xff]
    %v182 = vld [vmem:[#allocation5 + $0x2f0] sm:$0xff]
    %v183 = vld [vmem:[#allocation5 + $0x2f8] sm:$0xff]
    %v184 = vld [vmem:[#allocation5 + $0x300] sm:$0xff]
    %v185 = vld [vmem:[#allocation5 + $0x308] sm:$0xff]
    %v186 = vld [vmem:[#allocation5 + $0x310] sm:$0xff]
    %v187 = vld [vmem:[#allocation5 + $0x318] sm:$0xff]
    %v188 = vld [vmem:[#allocation5 + $0x320] sm:$0xff]
    %v189 = vld [vmem:[#allocation5 + $0x328] sm:$0xff]
    %v190 = vld [vmem:[#allocation5 + $0x330] sm:$0xff]
    %v191 = vld [vmem:[#allocation5 + $0x338] sm:$0xff]
    %v192 = vld [vmem:[#allocation5 + $0x340] sm:$0xff]
    %v193 = vld [vmem:[#allocation5 + $0x348] sm:$0xff]
    %v194 = vld [vmem:[#allocation5 + $0x350] sm:$0xff]
    %v195 = vld [vmem:[#allocation5 + $0x358] sm:$0xff]
    %v196 = vld [vmem:[#allocation5 + $0x360] sm:$0xff]
    %v197 = vld [vmem:[#allocation5 + $0x368] sm:$0xff]
    %v198 = vld [vmem:[#allocation5 + $0x370] sm:$0xff]
    %v199 = vld [vmem:[#allocation5 + $0x378] sm:$0xff]
    %v200 = vld [vmem:[#allocation5 + $0x380] sm:$0xff]
    %v201 = vld [vmem:[#allocation5 + $0x388] sm:$0xff]
    %v202 = vld [vmem:[#allocation5 + $0x390] sm:$0xff]
    %v203 = vld [vmem:[#allocation5 + $0x398] sm:$0xff]
    %v204 = vld [vmem:[#allocation5 + $0x3a0] sm:$0xff]
    %v205 = vld [vmem:[#allocation5 + $0x3a8] sm:$0xff]
    %v206 = vld [vmem:[#allocation5 + $0x3b0] sm:$0xff]
    %v207 = vld [vmem:[#allocation5 + $0x3b8] sm:$0xff]
    %v208 = vld [vmem:[#allocation5 + $0x3c0] sm:$0xff]
    %v209 = vld [vmem:[#allocation5 + $0x3c8] sm:$0xff]
    %v210 = vld [vmem:[#allocation5 + $0x3d0] sm:$0xff]
    %v211 = vld [vmem:[#allocation5 + $0x3d8] sm:$0xff]
    %v212 = vld [vmem:[#allocation5 + $0x3e0] sm:$0xff]
    %v213 = vld [vmem:[#allocation5 + $0x3e8] sm:$0xff]
    %v214 = vld [vmem:[#allocation5 + $0x3f0] sm:$0xff]
    %v215 = vld [vmem:[#allocation5 + $0x3f8] sm:$0xff]
    %v216 = vld [vmem:[#allocation5 + $0x400] sm:$0xff]
    %v217 = vld [vmem:[#allocation5 + $0x408] sm:$0xff]
    %v218 = vld [vmem:[#allocation5 + $0x410] sm:$0xff]
    %v219 = vld [vmem:[#allocation5 + $0x418] sm:$0xff]
    %v220 = vld [vmem:[#allocation5 + $0x420] sm:$0xff]
    %v221 = vld [vmem:[#allocation5 + $0x428] sm:$0xff]
    %v222 = vld [vmem:[#allocation5 + $0x430] sm:$0xff]
    %v223 = vld [vmem:[#allocation5 + $0x438] sm:$0xff]
    %v224 = vld [vmem:[#allocation5 + $0x440] sm:$0xff]
    %v225 = vld [vmem:[#allocation5 + $0x448] sm:$0xff]
    %v226 = vld [vmem:[#allocation5 + $0x450] sm:$0xff]
    %v227 = vld [vmem:[#allocation5 + $0x458] sm:$0xff]
    %v228 = vld [vmem:[#allocation5 + $0x460] sm:$0xff]
    %v229 = vld [vmem:[#allocation5 + $0x468] sm:$0xff]
    %v230 = vld [vmem:[#allocation5 + $0x470] sm:$0xff]
    %v231 = vld [vmem:[#allocation5 + $0x478] sm:$0xff]
    %v232 = vld [vmem:[#allocation5 + $0x480] sm:$0xff]
    %v233 = vld [vmem:[#allocation5 + $0x488] sm:$0xff]
    %v234 = vld [vmem:[#allocation5 + $0x490] sm:$0xff]
    %v235 = vld [vmem:[#allocation5 + $0x498] sm:$0xff]
    %v236 = vld [vmem:[#allocation5 + $0x4a0] sm:$0xff]
    %v237 = vld [vmem:[#allocation5 + $0x4a8] sm:$0xff]
    %v238 = vld [vmem:[#allocation5 + $0x4b0] sm:$0xff]
    %v239 = vld [vmem:[#allocation5 + $0x4b8] sm:$0xff]
    %v240 = vld [vmem:[#allocation5 + $0x4c0] sm:$0xff]
    %v241 = vld [vmem:[#allocation5 + $0x4c8] sm:$0xff]
    %v242 = vld [vmem:[#allocation5 + $0x4d0] sm:$0xff]
    %v243 = vld [vmem:[#allocation5 + $0x4d8] sm:$0xff]
    %v244 = vld [vmem:[#allocation5 + $0x4e0] sm:$0xff]
    %v245 = vld [vmem:[#allocation5 + $0x4e8] sm:$0xff]
    %v246 = vld [vmem:[#allocation5 + $0x4f0] sm:$0xff]
    %v247 = vld [vmem:[#allocation5 + $0x4f8] sm:$0xff]
    %v248 = vld [vmem:[#allocation5 + $0x500] sm:$0xff]
    %v249 = vld [vmem:[#allocation5 + $0x508] sm:$0xff]
    %v250 = vld [vmem:[#allocation5 + $0x510] sm:$0xff]
    %v251 = vld [vmem:[#allocation5 + $0x518] sm:$0xff]
    %v252 = vld [vmem:[#allocation5 + $0x520] sm:$0xff]
    %v253 = vld [vmem:[#allocation5 + $0x528] sm:$0xff]
    %v254 = vld [vmem:[#allocation5 + $0x530] sm:$0xff]
    %v255 = vld [vmem:[#allocation5 + $0x538] sm:$0xff]
    %v256 = vld [vmem:[#allocation5 + $0x540] sm:$0xff]
    %v257 = vld [vmem:[#allocation5 + $0x548] sm:$0xff]
    %v258 = vld [vmem:[#allocation5 + $0x550] sm:$0xff]
    %v259 = vld [vmem:[#allocation5 + $0x558] sm:$0xff]
    %v260 = vld [vmem:[#allocation5 + $0x560] sm:$0xff]
    %v261 = vld [vmem:[#allocation5 + $0x568] sm:$0xff]
    %v262 = vld [vmem:[#allocation5 + $0x570] sm:$0xff]
    %v263 = vld [vmem:[#allocation5 + $0x578] sm:$0xff]
    %v264 = vld [vmem:[#allocation5 + $0x580] sm:$0xff]
    %v265 = vld [vmem:[#allocation5 + $0x588] sm:$0xff]
    %v266 = vld [vmem:[#allocation5 + $0x590] sm:$0xff]
    %v267 = vld [vmem:[#allocation5 + $0x598] sm:$0xff]
    %v268 = vld [vmem:[#allocation5 + $0x5a0] sm:$0xff]
    %v269 = vld [vmem:[#allocation5 + $0x5a8] sm:$0xff]
    %v270 = vld [vmem:[#allocation5 + $0x5b0] sm:$0xff]
    %v271 = vld [vmem:[#allocation5 + $0x5b8] sm:$0xff]
    %v272 = vld [vmem:[#allocation5 + $0x5c0] sm:$0xff]
    %v273 = vld [vmem:[#allocation5 + $0x5c8] sm:$0xff]
    %v274 = vld [vmem:[#allocation5 + $0x5d0] sm:$0xff]
    %v275 = vld [vmem:[#allocation5 + $0x5d8] sm:$0xff]
    %v276 = vld [vmem:[#allocation5 + $0x5e0] sm:$0xff]
    %v277 = vld [vmem:[#allocation5 + $0x5e8] sm:$0xff]
    %v278 = vld [vmem:[#allocation5 + $0x5f0] sm:$0xff]
    %v279 = vld [vmem:[#allocation5 + $0x5f8] sm:$0xff]
    %v280 = vld [vmem:[#allocation5 + $0x600] sm:$0xff]
    %v281 = vld [vmem:[#allocation5 + $0x608] sm:$0xff]
    %v282 = vld [vmem:[#allocation5 + $0x610] sm:$0xff]
    %v283 = vld [vmem:[#allocation5 + $0x618] sm:$0xff]
    %v284 = vld [vmem:[#allocation5 + $0x620] sm:$0xff]
    %v285 = vld [vmem:[#allocation5 + $0x628] sm:$0xff]
    %v286 = vld [vmem:[#allocation5 + $0x630] sm:$0xff]
    %v287 = vld [vmem:[#allocation5 + $0x638] sm:$0xff]
    %v288 = vld [vmem:[#allocation5 + $0x640] sm:$0xff]
    %v289 = vld [vmem:[#allocation5 + $0x648] sm:$0xff]
    %v290 = vld [vmem:[#allocation5 + $0x650] sm:$0xff]
    %v291 = vld [vmem:[#allocation5 + $0x658] sm:$0xff]
    %v292 = vld [vmem:[#allocation5 + $0x660] sm:$0xff]
    %v293 = vld [vmem:[#allocation5 + $0x668] sm:$0xff]
    %v294 = vld [vmem:[#allocation5 + $0x670] sm:$0xff]
    %v295 = vld [vmem:[#allocation5 + $0x678] sm:$0xff]
    %v296 = vld [vmem:[#allocation5 + $0x680] sm:$0xff]
    %v297 = vld [vmem:[#allocation5 + $0x688] sm:$0xff]
    %v298 = vld [vmem:[#allocation5 + $0x690] sm:$0xff]
    %v299 = vld [vmem:[#allocation5 + $0x698] sm:$0xff]
    %v300 = vld [vmem:[#allocation5 + $0x6a0] sm:$0xff]
    %v301 = vld [vmem:[#allocation5 + $0x6a8] sm:$0xff]
    %v302 = vld [vmem:[#allocation5 + $0x6b0] sm:$0xff]
    %v303 = vld [vmem:[#allocation5 + $0x6b8] sm:$0xff]
    %v304 = vld [vmem:[#allocation5 + $0x6c0] sm:$0xff]
    %v305 = vld [vmem:[#allocation5 + $0x6c8] sm:$0xff]
    %v306 = vld [vmem:[#allocation5 + $0x6d0] sm:$0xff]
    %v307 = vld [vmem:[#allocation5 + $0x6d8] sm:$0xff]
    %v308 = vld [vmem:[#allocation5 + $0x6e0] sm:$0xff]
    %v309 = vld [vmem:[#allocation5 + $0x6e8] sm:$0xff]
    %v310 = vld [vmem:[#allocation5 + $0x6f0] sm:$0xff]
    %v311 = vld [vmem:[#allocation5 + $0x6f8] sm:$0xff]
    %v312 = vld [vmem:[#allocation5 + $0x700] sm:$0xff]
    %v313 = vld [vmem:[#allocation5 + $0x708] sm:$0xff]
    %v314 = vld [vmem:[#allocation5 + $0x710] sm:$0xff]
    %v315 = vld [vmem:[#allocation5 + $0x718] sm:$0xff]
    %v316 = vld [vmem:[#allocation5 + $0x720] sm:$0xff]
    %v317 = vld [vmem:[#allocation5 + $0x728] sm:$0xff]
    %v318 = vld [vmem:[#allocation5 + $0x730] sm:$0xff]
    %v319 = vld [vmem:[#allocation5 + $0x738] sm:$0xff]
    %v320 = vld [vmem:[#allocation5 + $0x740] sm:$0xff]
    %v321 = vld [vmem:[#allocation5 + $0x748] sm:$0xff]
    %v322 = vld [vmem:[#allocation5 + $0x750] sm:$0xff]
    %v323 = vld [vmem:[#allocation5 + $0x758] sm:$0xff]
    %v324 = vld [vmem:[#allocation5 + $0x760] sm:$0xff]
    %v325 = vld [vmem:[#allocation5 + $0x768] sm:$0xff]
    %v326 = vld [vmem:[#allocation5 + $0x770] sm:$0xff]
    %v327 = vld [vmem:[#allocation5 + $0x778] sm:$0xff]
    %v328 = vld [vmem:[#allocation5 + $0x780] sm:$0xff]
    %v329 = vld [vmem:[#allocation5 + $0x788] sm:$0xff]
    %v330 = vld [vmem:[#allocation5 + $0x790] sm:$0xff]
    %v331 = vld [vmem:[#allocation5 + $0x798] sm:$0xff]
    %v332 = vld [vmem:[#allocation5 + $0x7a0] sm:$0xff]
    %v333 = vld [vmem:[#allocation5 + $0x7a8] sm:$0xff]
    %v334 = vld [vmem:[#allocation5 + $0x7b0] sm:$0xff]
    %v335 = vld [vmem:[#allocation5 + $0x7b8] sm:$0xff]
    %v336 = vld [vmem:[#allocation5 + $0x7c0] sm:$0xff]
    %v337 = vld [vmem:[#allocation5 + $0x7c8] sm:$0xff]
    %v338 = vld [vmem:[#allocation5 + $0x7d0] sm:$0xff]
    %v339 = vld [vmem:[#allocation5 + $0x7d8] sm:$0xff]
    %v340 = vld [vmem:[#allocation5 + $0x7e0] sm:$0xff]
    %v341 = vld [vmem:[#allocation5 + $0x7e8] sm:$0xff]
    %v342 = vld [vmem:[#allocation5 + $0x7f0] sm:$0xff]
    %v343 = vld [vmem:[#allocation5 + $0x7f8] sm:$0xff]
    %v344 = vld [vmem:[#allocation5 + $0x800] sm:$0xff]
    %v345 = vld [vmem:[#allocation5 + $0x808] sm:$0xff]
    %v346 = vld [vmem:[#allocation5 + $0x810] sm:$0xff]
    %v347 = vld [vmem:[#allocation5 + $0x818] sm:$0xff]
    %v348 = vld [vmem:[#allocation5 + $0x820] sm:$0xff]
    %v349 = vld [vmem:[#allocation5 + $0x828] sm:$0xff]
    %v350 = vld [vmem:[#allocation5 + $0x830] sm:$0xff]
    %v351 = vld [vmem:[#allocation5 + $0x838] sm:$0xff]
    %v352 = vld [vmem:[#allocation5 + $0x840] sm:$0xff]
    %v353 = vld [vmem:[#allocation5 + $0x848] sm:$0xff]
    %v354 = vld [vmem:[#allocation5 + $0x850] sm:$0xff]
    %v355 = vld [vmem:[#allocation5 + $0x858] sm:$0xff]
    %v356 = vld [vmem:[#allocation5 + $0x860] sm:$0xff]
    %v357 = vld [vmem:[#allocation5 + $0x868] sm:$0xff]
    %v358 = vld [vmem:[#allocation5 + $0x870] sm:$0xff]
    %v359 = vld [vmem:[#allocation5 + $0x878] sm:$0xff]
    %v360 = vld [vmem:[#allocation5 + $0x880] sm:$0xff]
    %v361 = vld [vmem:[#allocation5 + $0x888] sm:$0xff]
    %v362 = vld [vmem:[#allocation5 + $0x890] sm:$0xff]
    %v363 = vld [vmem:[#allocation5 + $0x898] sm:$0xff]
    %v364 = vld [vmem:[#allocation5 + $0x8a0] sm:$0xff]
    %v365 = vld [vmem:[#allocation5 + $0x8a8] sm:$0xff]
    %v366 = vld [vmem:[#allocation5 + $0x8b0] sm:$0xff]
    %v367 = vld [vmem:[#allocation5 + $0x8b8] sm:$0xff]
    %v368 = vld [vmem:[#allocation5 + $0x8c0] sm:$0xff]
    %v369 = vld [vmem:[#allocation5 + $0x8c8] sm:$0xff]
    %v370 = vld [vmem:[#allocation5 + $0x8d0] sm:$0xff]
    %v371 = vld [vmem:[#allocation5 + $0x8d8] sm:$0xff]
    %v372 = vld [vmem:[#allocation5 + $0x8e0] sm:$0xff]
    %v373 = vld [vmem:[#allocation5 + $0x8e8] sm:$0xff]
    %v374 = vld [vmem:[#allocation5 + $0x8f0] sm:$0xff]
    %v375 = vld [vmem:[#allocation5 + $0x8f8] sm:$0xff]
    %v376 = vld [vmem:[#allocation5 + $0x900] sm:$0xff]
    %v377 = vld [vmem:[#allocation5 + $0x908] sm:$0xff]
    %v378 = vld [vmem:[#allocation5 + $0x910] sm:$0xff]
    %v379 = vld [vmem:[#allocation5 + $0x918] sm:$0xff]
    %v380 = vld [vmem:[#allocation5 + $0x920] sm:$0xff]
    %v381 = vld [vmem:[#allocation5 + $0x928] sm:$0xff]
    %v382 = vld [vmem:[#allocation5 + $0x930] sm:$0xff]
    %v383 = vld [vmem:[#allocation5 + $0x938] sm:$0xff]
    %v384 = vld [vmem:[#allocation5 + $0x940] sm:$0xff]
    %v385 = vld [vmem:[#allocation5 + $0x948] sm:$0xff]
    %v386 = vld [vmem:[#allocation5 + $0x950] sm:$0xff]
    %v387 = vld [vmem:[#allocation5 + $0x958] sm:$0xff]
    %v388 = vld [vmem:[#allocation5 + $0x960] sm:$0xff]
    %v389 = vld [vmem:[#allocation5 + $0x968] sm:$0xff]
    %v390 = vld [vmem:[#allocation5 + $0x970] sm:$0xff]
    %v391 = vld [vmem:[#allocation5 + $0x978] sm:$0xff]
    %v392 = vld [vmem:[#allocation5 + $0x980] sm:$0xff]
    %v393 = vld [vmem:[#allocation5 + $0x988] sm:$0xff]
    %v394 = vld [vmem:[#allocation5 + $0x990] sm:$0xff]
    %v395 = vld [vmem:[#allocation5 + $0x998] sm:$0xff]
    %v396 = vld [vmem:[#allocation5 + $0x9a0] sm:$0xff]
    %v397 = vld [vmem:[#allocation5 + $0x9a8] sm:$0xff]
    %v398 = vld [vmem:[#allocation5 + $0x9b0] sm:$0xff]
    %v399 = vld [vmem:[#allocation5 + $0x9b8] sm:$0xff]
    %v400 = vld [vmem:[#allocation5 + $0x9c0] sm:$0xff]
    %v401 = vld [vmem:[#allocation5 + $0x9c8] sm:$0xff]
    %v402 = vld [vmem:[#allocation5 + $0x9d0] sm:$0xff]
    %v403 = vld [vmem:[#allocation5 + $0x9d8] sm:$0xff]
    %v404 = vld [vmem:[#allocation5 + $0x9e0] sm:$0xff]
    %v405 = vld [vmem:[#allocation5 + $0x9e8] sm:$0xff]
    %v406 = vld [vmem:[#allocation5 + $0x9f0] sm:$0xff]
    %v407 = vld [vmem:[#allocation5 + $0x9f8] sm:$0xff]
    %v408 = vld [vmem:[#allocation5 + $0xa00] sm:$0xff]
    %v409 = vld [vmem:[#allocation5 + $0xa08] sm:$0xff]
    %v410 = vld [vmem:[#allocation5 + $0xa10] sm:$0xff]
    %v411 = vld [vmem:[#allocation5 + $0xa18] sm:$0xff]
    %v412 = vld [vmem:[#allocation5 + $0xa20] sm:$0xff]
    %v413 = vld [vmem:[#allocation5 + $0xa28] sm:$0xff]
    %v414 = vld [vmem:[#allocation5 + $0xa30] sm:$0xff]
    %v415 = vld [vmem:[#allocation5 + $0xa38] sm:$0xff]
    %v416 = vld [vmem:[#allocation5 + $0xa40] sm:$0xff]
    %v417 = vld [vmem:[#allocation5 + $0xa48] sm:$0xff]
    %v418 = vld [vmem:[#allocation5 + $0xa50] sm:$0xff]
    %v419 = vld [vmem:[#allocation5 + $0xa58] sm:$0xff]
    %v420 = vld [vmem:[#allocation5 + $0xa60] sm:$0xff]
    %v421 = vld [vmem:[#allocation5 + $0xa68] sm:$0xff]
    %v422 = vld [vmem:[#allocation5 + $0xa70] sm:$0xff]
    %v423 = vld [vmem:[#allocation5 + $0xa78] sm:$0xff]
    %v424 = vld [vmem:[#allocation5 + $0xa80] sm:$0xff]
    %v425 = vld [vmem:[#allocation5 + $0xa88] sm:$0xff]
    %v426 = vld [vmem:[#allocation5 + $0xa90] sm:$0xff]
    %v427 = vld [vmem:[#allocation5 + $0xa98] sm:$0xff]
    %v428 = vld [vmem:[#allocation5 + $0xaa0] sm:$0xff]
    %v429 = vld [vmem:[#allocation5 + $0xaa8] sm:$0xff]
    %v430 = vld [vmem:[#allocation5 + $0xab0] sm:$0xff]
    %v431 = vld [vmem:[#allocation5 + $0xab8] sm:$0xff]
    %v432 = vld [vmem:[#allocation5 + $0xac0] sm:$0xff]
    %v433 = vld [vmem:[#allocation5 + $0xac8] sm:$0xff]
    %v434 = vld [vmem:[#allocation5 + $0xad0] sm:$0xff]
    %v435 = vld [vmem:[#allocation5 + $0xad8] sm:$0xff]
    %v436 = vld [vmem:[#allocation5 + $0xae0] sm:$0xff]
    %v437 = vld [vmem:[#allocation5 + $0xae8] sm:$0xff]
    %v438 = vld [vmem:[#allocation5 + $0xaf0] sm:$0xff]
    %v439 = vld [vmem:[#allocation5 + $0xaf8] sm:$0xff]
    %v440 = vld [vmem:[#allocation5 + $0xb00] sm:$0xff]
    %v441 = vld [vmem:[#allocation5 + $0xb08] sm:$0xff]
    %v442 = vld [vmem:[#allocation5 + $0xb10] sm:$0xff]
    %v443 = vld [vmem:[#allocation5 + $0xb18] sm:$0xff]
    %v444 = vld [vmem:[#allocation5 + $0xb20] sm:$0xff]
    %v445 = vld [vmem:[#allocation5 + $0xb28] sm:$0xff]
    %v446 = vld [vmem:[#allocation5 + $0xb30] sm:$0xff]
    %v447 = vld [vmem:[#allocation5 + $0xb38] sm:$0xff]
    %v448 = vld [vmem:[#allocation5 + $0xb40] sm:$0xff]
    %v449 = vld [vmem:[#allocation5 + $0xb48] sm:$0xff]
    %v450 = vld [vmem:[#allocation5 + $0xb50] sm:$0xff]
    %v451 = vld [vmem:[#allocation5 + $0xb58] sm:$0xff]
    %v452 = vld [vmem:[#allocation5 + $0xb60] sm:$0xff]
    %v453 = vld [vmem:[#allocation5 + $0xb68] sm:$0xff]
    %v454 = vld [vmem:[#allocation5 + $0xb70] sm:$0xff]
    %v455 = vld [vmem:[#allocation5 + $0xb78] sm:$0xff]
    %v456 = vld [vmem:[#allocation5 + $0xb80] sm:$0xff]
    %v457 = vld [vmem:[#allocation5 + $0xb88] sm:$0xff]
    %v458 = vld [vmem:[#allocation5 + $0xb90] sm:$0xff]
    %v459 = vld [vmem:[#allocation5 + $0xb98] sm:$0xff]
    %v460 = vld [vmem:[#allocation5 + $0xba0] sm:$0xff]
    %v461 = vld [vmem:[#allocation5 + $0xba8] sm:$0xff]
    %v462 = vld [vmem:[#allocation5 + $0xbb0] sm:$0xff]
    %v463 = vld [vmem:[#allocation5 + $0xbb8] sm:$0xff]
    %v464 = vld [vmem:[#allocation5 + $0xbc0] sm:$0xff]
    %v465 = vld [vmem:[#allocation5 + $0xbc8] sm:$0xff]
    %v466 = vld [vmem:[#allocation5 + $0xbd0] sm:$0xff]
    %v467 = vld [vmem:[#allocation5 + $0xbd8] sm:$0xff]
    %v468 = vld [vmem:[#allocation5 + $0xbe0] sm:$0xff]
    %v469 = vld [vmem:[#allocation5 + $0xbe8] sm:$0xff]
    %v470 = vld [vmem:[#allocation5 + $0xbf0] sm:$0xff]
    %v471 = vld [vmem:[#allocation5 + $0xbf8] sm:$0xff]
    %v472 = vld [vmem:[#allocation5 + $0xc00] sm:$0xff]
    %v473 = vld [vmem:[#allocation5 + $0xc08] sm:$0xff]
    %v474 = vld [vmem:[#allocation5 + $0xc10] sm:$0xff]
    %v475 = vld [vmem:[#allocation5 + $0xc18] sm:$0xff]
    %v476 = vld [vmem:[#allocation5 + $0xc20] sm:$0xff]
    %v477 = vld [vmem:[#allocation5 + $0xc28] sm:$0xff]
    %v478 = vld [vmem:[#allocation5 + $0xc30] sm:$0xff]
    %v479 = vld [vmem:[#allocation5 + $0xc38] sm:$0xff]
    %v480 = vld [vmem:[#allocation5 + $0xc40] sm:$0xff]
    %v481 = vld [vmem:[#allocation5 + $0xc48] sm:$0xff]
    %v482 = vld [vmem:[#allocation5 + $0xc50] sm:$0xff]
    %v483 = vld [vmem:[#allocation5 + $0xc58] sm:$0xff]
    %v484 = vld [vmem:[#allocation5 + $0xc60] sm:$0xff]
    %v485 = vld [vmem:[#allocation5 + $0xc68] sm:$0xff]
    %v486 = vld [vmem:[#allocation5 + $0xc70] sm:$0xff]
    %v487 = vld [vmem:[#allocation5 + $0xc78] sm:$0xff]
    %v488 = vld [vmem:[#allocation5 + $0xc80] sm:$0xff]
    %v489 = vld [vmem:[#allocation5 + $0xc88] sm:$0xff]
    %v490 = vld [vmem:[#allocation5 + $0xc90] sm:$0xff]
    %v491 = vld [vmem:[#allocation5 + $0xc98] sm:$0xff]
    %v492 = vld [vmem:[#allocation5 + $0xca0] sm:$0xff]
    %v493 = vld [vmem:[#allocation5 + $0xca8] sm:$0xff]
    %v494 = vld [vmem:[#allocation5 + $0xcb0] sm:$0xff]
    %v495 = vld [vmem:[#allocation5 + $0xcb8] sm:$0xff]
    %v496 = vld [vmem:[#allocation5 + $0xcc0] sm:$0xff]
    %v497 = vld [vmem:[#allocation5 + $0xcc8] sm:$0xff]
    %v498 = vld [vmem:[#allocation5 + $0xcd0] sm:$0xff]
    %v499 = vld [vmem:[#allocation5 + $0xcd8] sm:$0xff]
    %v500 = vld [vmem:[#allocation5 + $0xce0] sm:$0xff]
    %v501 = vld [vmem:[#allocation5 + $0xce8] sm:$0xff]
    %v502 = vld [vmem:[#allocation5 + $0xcf0] sm:$0xff]
    %v503 = vld [vmem:[#allocation5 + $0xcf8] sm:$0xff]
    %v504 = vld [vmem:[#allocation5 + $0xd00] sm:$0xff]
    %v505 = vld [vmem:[#allocation5 + $0xd08] sm:$0xff]
    %v506 = vld [vmem:[#allocation5 + $0xd10] sm:$0xff]
    %v507 = vld [vmem:[#allocation5 + $0xd18] sm:$0xff]
    %v508 = vld [vmem:[#allocation5 + $0xd20] sm:$0xff]
    %v509 = vld [vmem:[#allocation5 + $0xd28] sm:$0xff]
    %v510 = vld [vmem:[#allocation5 + $0xd30] sm:$0xff]
    %v511 = vld [vmem:[#allocation5 + $0xd38] sm:$0xff]
    %v512 = vld [vmem:[#allocation5 + $0xd40] sm:$0xff]
    %v513 = vld [vmem:[#allocation5 + $0xd48] sm:$0xff]
    %v514 = vld [vmem:[#allocation5 + $0xd50] sm:$0xff]
    %v515 = vld [vmem:[#allocation5 + $0xd58] sm:$0xff]
    %v516 = vld [vmem:[#allocation5 + $0xd60] sm:$0xff]
    %v517 = vld [vmem:[#allocation5 + $0xd68] sm:$0xff]
    %v518 = vld [vmem:[#allocation5 + $0xd70] sm:$0xff]
    %v519 = vld [vmem:[#allocation5 + $0xd78] sm:$0xff]
    %v520 = vld [vmem:[#allocation5 + $0xd80] sm:$0xff]
    %v521 = vld [vmem:[#allocation5 + $0xd88] sm:$0xff]
    %v522 = vld [vmem:[#allocation5 + $0xd90] sm:$0xff]
    %v523 = vld [vmem:[#allocation5 + $0xd98] sm:$0xff]
    %v524 = vld [vmem:[#allocation5 + $0xda0] sm:$0xff]
    %v525 = vld [vmem:[#allocation5 + $0xda8] sm:$0xff]
    %v526 = vld [vmem:[#allocation5 + $0xdb0] sm:$0xff]
    %v527 = vld [vmem:[#allocation5 + $0xdb8] sm:$0xff]
    %v528 = vld [vmem:[#allocation5 + $0xdc0] sm:$0xff]
    %v529 = vld [vmem:[#allocation5 + $0xdc8] sm:$0xff]
    %v530 = vld [vmem:[#allocation5 + $0xdd0] sm:$0xff]
    %v531 = vld [vmem:[#allocation5 + $0xdd8] sm:$0xff]
    %v532 = vld [vmem:[#allocation5 + $0xde0] sm:$0xff]
    %v533 = vld [vmem:[#allocation5 + $0xde8] sm:$0xff]
    %v534 = vld [vmem:[#allocation5 + $0xdf0] sm:$0xff]
    %v535 = vld [vmem:[#allocation5 + $0xdf8] sm:$0xff]
    %v536 = vld [vmem:[#allocation5 + $0xe00] sm:$0xff]
    %v537 = vld [vmem:[#allocation5 + $0xe08] sm:$0xff]
    %v538 = vld [vmem:[#allocation5 + $0xe10] sm:$0xff]
    %v539 = vld [vmem:[#allocation5 + $0xe18] sm:$0xff]
    %v540 = vld [vmem:[#allocation5 + $0xe20] sm:$0xff]
    %v541 = vld [vmem:[#allocation5 + $0xe28] sm:$0xff]
    %v542 = vld [vmem:[#allocation5 + $0xe30] sm:$0xff]
    %v543 = vld [vmem:[#allocation5 + $0xe38] sm:$0xff]
    %v544 = vld [vmem:[#allocation5 + $0xe40] sm:$0xff]
    %v545 = vld [vmem:[#allocation5 + $0xe48] sm:$0xff]
    %v546 = vld [vmem:[#allocation5 + $0xe50] sm:$0xff]
    %v547 = vld [vmem:[#allocation5 + $0xe58] sm:$0xff]
    %v548 = vld [vmem:[#allocation5 + $0xe60] sm:$0xff]
    %v549 = vld [vmem:[#allocation5 + $0xe68] sm:$0xff]
    %v550 = vld [vmem:[#allocation5 + $0xe70] sm:$0xff]
    %v551 = vld [vmem:[#allocation5 + $0xe78] sm:$0xff]
    %v552 = vld [vmem:[#allocation5 + $0xe80] sm:$0xff]
    %v553 = vld [vmem:[#allocation5 + $0xe88] sm:$0xff]
    %v554 = vld [vmem:[#allocation5 + $0xe90] sm:$0xff]
    %v555 = vld [vmem:[#allocation5 + $0xe98] sm:$0xff]
    %v556 = vld [vmem:[#allocation5 + $0xea0] sm:$0xff]
    %v557 = vld [vmem:[#allocation5 + $0xea8] sm:$0xff]
    %v558 = vld [vmem:[#allocation5 + $0xeb0] sm:$0xff]
    %v559 = vld [vmem:[#allocation5 + $0xeb8] sm:$0xff]
    %v560 = vld [vmem:[#allocation5 + $0xec0] sm:$0xff]
    %v561 = vld [vmem:[#allocation5 + $0xec8] sm:$0xff]
    %v562 = vld [vmem:[#allocation5 + $0xed0] sm:$0xff]
    %v563 = vld [vmem:[#allocation5 + $0xed8] sm:$0xff]
    %v564 = vld [vmem:[#allocation5 + $0xee0] sm:$0xff]
    %v565 = vld [vmem:[#allocation5 + $0xee8] sm:$0xff]
    %v566 = vld [vmem:[#allocation5 + $0xef0] sm:$0xff]
    %v567 = vld [vmem:[#allocation5 + $0xef8] sm:$0xff]
    %v568 = vld [vmem:[#allocation5 + $0xf00] sm:$0xff]
    %v569 = vld [vmem:[#allocation5 + $0xf08] sm:$0xff]
    %v570 = vld [vmem:[#allocation5 + $0xf10] sm:$0xff]
    %v571 = vld [vmem:[#allocation5 + $0xf18] sm:$0xff]
    %v572 = vld [vmem:[#allocation5 + $0xf20] sm:$0xff]
    %v573 = vld [vmem:[#allocation5 + $0xf28] sm:$0xff]
    %v574 = vld [vmem:[#allocation5 + $0xf30] sm:$0xff]
    %v575 = vld [vmem:[#allocation5 + $0xf38] sm:$0xff]
    %v576 = vld [vmem:[#allocation5 + $0xf40] sm:$0xff]
    %v577 = vld [vmem:[#allocation5 + $0xf48] sm:$0xff]
    %v578 = vld [vmem:[#allocation5 + $0xf50] sm:$0xff]
    %v579 = vld [vmem:[#allocation5 + $0xf58] sm:$0xff]
    %v580 = vld [vmem:[#allocation5 + $0xf60] sm:$0xff]
    %v581 = vld [vmem:[#allocation5 + $0xf68] sm:$0xff]
    %v582 = vld [vmem:[#allocation5 + $0xf70] sm:$0xff]
    %v583 = vld [vmem:[#allocation5 + $0xf78] sm:$0xff]
    %v584 = vld [vmem:[#allocation5 + $0xf80] sm:$0xff]
    %v585 = vld [vmem:[#allocation5 + $0xf88] sm:$0xff]
    %v586 = vld [vmem:[#allocation5 + $0xf90] sm:$0xff]
    %v587 = vld [vmem:[#allocation5 + $0xf98] sm:$0xff]
    %v588 = vld [vmem:[#allocation5 + $0xfa0] sm:$0xff]
    %v589 = vld [vmem:[#allocation5 + $0xfa8] sm:$0xff]
    %v590 = vld [vmem:[#allocation5 + $0xfb0] sm:$0xff]
    %v591 = vld [vmem:[#allocation5 + $0xfb8] sm:$0xff]
    %v592 = vld [vmem:[#allocation5 + $0xfc0] sm:$0xff]
    %v593 = vld [vmem:[#allocation5 + $0xfc8] sm:$0xff]
    %v594 = vld [vmem:[#allocation5 + $0xfd0] sm:$0xff]
    %v595 = vld [vmem:[#allocation5 + $0xfd8] sm:$0xff]
    %v596 = vld [vmem:[#allocation5 + $0xfe0] sm:$0xff]
    %v597 = vld [vmem:[#allocation5 + $0xfe8] sm:$0xff]
    %v598 = vld [vmem:[#allocation5 + $0xff0] sm:$0xff]
    %v599 = vld [vmem:[#allocation5 + $0xff8] sm:$0xff]
    %v600 = vld [vmem:[#allocation7] sm:$0x3]
    %v602 = vlaneseq
    %v603 = vshrl.u32 %v602, 7
    %v604 = vsub.s32 0, %v603
    %v605 = vrot.slane %v600, %v604
    %v606 = vlaneseq
    %v607 = vshrl.u32 %v606, 7
    %v608 = vsub.s32 1, %v607
    %v609 = vrot.slane %v600, %v608
    %v616 = vcombine.high %v84, %v84
    %v618 = vunpack.c.l.s4 1966171168
    %v619 = vunpack.c.0.s8 %v618
    %v620 = vlaneseq
    %v621 = vshrl.u32 %v620, 7
    %v622 = vsub.s32 %v619, %v621
    %v623 = vrot.slane %v84, %v622
    %v625 = vunpack.c.l.s4 1966171168
    %v626 = vunpack.c.0.s8 %v625
    %v627 = vlaneseq
    %v628 = vshrl.u32 %v627, 7
    %v629 = vsub.s32 %v626, %v628
    %v630 = vrot.slane %v616, %v629
    %v631 = vcombine.high %v623, %v623
    %v632 = vcombine.high %v630, %v630
    %v634 = vunpack.c.l.s4 1966171168
    %v635 = vunpack.c.0.s8 %v634
    %v636 = vlaneseq
    %v637 = vshrl.u32 %v636, 7
    %v638 = vsub.s32 %v635, %v637
    %v639 = vrot.slane %v623, %v638
    %v641 = vunpack.c.l.s4 1966171168
    %v642 = vunpack.c.0.s8 %v641
    %v643 = vlaneseq
    %v644 = vshrl.u32 %v643, 7
    %v645 = vsub.s32 %v642, %v644
    %v646 = vrot.slane %v630, %v645
    %v648 = vunpack.c.l.s4 1966171168
    %v649 = vunpack.c.0.s8 %v648
    %v650 = vlaneseq
    %v651 = vshrl.u32 %v650, 7
    %v652 = vsub.s32 %v649, %v651
    %v653 = vrot.slane %v631, %v652
    %v655 = vunpack.c.l.s4 1966171168
    %v656 = vunpack.c.0.s8 %v655
    %v657 = vlaneseq
    %v658 = vshrl.u32 %v657, 7
    %v659 = vsub.s32 %v656, %v658
    %v660 = vrot.slane %v632, %v659
    %v661 = vcombine.high %v639, %v639
    %v662 = vcombine.high %v646, %v646
    %v663 = vcombine.high %v653, %v653
    %v664 = vcombine.high %v660, %v660
    %v665 = vcombine.high %v85, %v85
    %v667 = vunpack.c.l.s4 1966171168
    %v668 = vunpack.c.0.s8 %v667
    %v669 = vlaneseq
    %v670 = vshrl.u32 %v669, 7
    %v671 = vsub.s32 %v668, %v670
    %v672 = vrot.slane %v85, %v671
    %v674 = vunpack.c.l.s4 1966171168
    %v675 = vunpack.c.0.s8 %v674
    %v676 = vlaneseq
    %v677 = vshrl.u32 %v676, 7
    %v678 = vsub.s32 %v675, %v677
    %v679 = vrot.slane %v665, %v678
    %v680 = vcombine.high %v672, %v672
    %v681 = vcombine.high %v679, %v679
    %v683 = vunpack.c.l.s4 1966171168
    %v684 = vunpack.c.0.s8 %v683
    %v685 = vlaneseq
    %v686 = vshrl.u32 %v685, 7
    %v687 = vsub.s32 %v684, %v686
    %v688 = vrot.slane %v672, %v687
    %v690 = vunpack.c.l.s4 1966171168
    %v691 = vunpack.c.0.s8 %v690
    %v692 = vlaneseq
    %v693 = vshrl.u32 %v692, 7
    %v694 = vsub.s32 %v691, %v693
    %v695 = vrot.slane %v679, %v694
    %v697 = vunpack.c.l.s4 1966171168
    %v698 = vunpack.c.0.s8 %v697
    %v699 = vlaneseq
    %v700 = vshrl.u32 %v699, 7
    %v701 = vsub.s32 %v698, %v700
    %v702 = vrot.slane %v680, %v701
    %v704 = vunpack.c.l.s4 1966171168
    %v705 = vunpack.c.0.s8 %v704
    %v706 = vlaneseq
    %v707 = vshrl.u32 %v706, 7
    %v708 = vsub.s32 %v705, %v707
    %v709 = vrot.slane %v681, %v708
    %v710 = vcombine.high %v688, %v688
    %v711 = vcombine.high %v695, %v695
    %v712 = vcombine.high %v702, %v702
    %v713 = vcombine.high %v709, %v709
    %v714 = vcombine.high %v86, %v86
    %v716 = vunpack.c.l.s4 1966171168
    %v717 = vunpack.c.0.s8 %v716
    %v718 = vlaneseq
    %v719 = vshrl.u32 %v718, 7
    %v720 = vsub.s32 %v717, %v719
    %v721 = vrot.slane %v86, %v720
    %v723 = vunpack.c.l.s4 1966171168
    %v724 = vunpack.c.0.s8 %v723
    %v725 = vlaneseq
    %v726 = vshrl.u32 %v725, 7
    %v727 = vsub.s32 %v724, %v726
    %v728 = vrot.slane %v714, %v727
    %v729 = vcombine.high %v721, %v721
    %v730 = vcombine.high %v728, %v728
    %v732 = vunpack.c.l.s4 1966171168
    %v733 = vunpack.c.0.s8 %v732
    %v734 = vlaneseq
    %v735 = vshrl.u32 %v734, 7
    %v736 = vsub.s32 %v733, %v735
    %v737 = vrot.slane %v721, %v736
    %v739 = vunpack.c.l.s4 1966171168
    %v740 = vunpack.c.0.s8 %v739
    %v741 = vlaneseq
    %v742 = vshrl.u32 %v741, 7
    %v743 = vsub.s32 %v740, %v742
    %v744 = vrot.slane %v728, %v743
    %v746 = vunpack.c.l.s4 1966171168
    %v747 = vunpack.c.0.s8 %v746
    %v748 = vlaneseq
    %v749 = vshrl.u32 %v748, 7
    %v750 = vsub.s32 %v747, %v749
    %v751 = vrot.slane %v729, %v750
    %v753 = vunpack.c.l.s4 1966171168
    %v754 = vunpack.c.0.s8 %v753
    %v755 = vlaneseq
    %v756 = vshrl.u32 %v755, 7
    %v757 = vsub.s32 %v754, %v756
    %v758 = vrot.slane %v730, %v757
    %v759 = vcombine.high %v737, %v737
    %v760 = vcombine.high %v744, %v744
    %v761 = vcombine.high %v751, %v751
    %v762 = vcombine.high %v758, %v758
    %v763 = vcombine.high %v87, %v87
    %v765 = vunpack.c.l.s4 1966171168
    %v766 = vunpack.c.0.s8 %v765
    %v767 = vlaneseq
    %v768 = vshrl.u32 %v767, 7
    %v769 = vsub.s32 %v766, %v768
    %v770 = vrot.slane %v87, %v769
    %v772 = vunpack.c.l.s4 1966171168
    %v773 = vunpack.c.0.s8 %v772
    %v774 = vlaneseq
    %v775 = vshrl.u32 %v774, 7
    %v776 = vsub.s32 %v773, %v775
    %v777 = vrot.slane %v763, %v776
    %v778 = vcombine.high %v770, %v770
    %v779 = vcombine.high %v777, %v777
    %v781 = vunpack.c.l.s4 1966171168
    %v782 = vunpack.c.0.s8 %v781
    %v783 = vlaneseq
    %v784 = vshrl.u32 %v783, 7
    %v785 = vsub.s32 %v782, %v784
    %v786 = vrot.slane %v770, %v785
    %v788 = vunpack.c.l.s4 1966171168
    %v789 = vunpack.c.0.s8 %v788
    %v790 = vlaneseq
    %v791 = vshrl.u32 %v790, 7
    %v792 = vsub.s32 %v789, %v791
    %v793 = vrot.slane %v777, %v792
    %v795 = vunpack.c.l.s4 1966171168
    %v796 = vunpack.c.0.s8 %v795
    %v797 = vlaneseq
    %v798 = vshrl.u32 %v797, 7
    %v799 = vsub.s32 %v796, %v798
    %v800 = vrot.slane %v778, %v799
    %v802 = vunpack.c.l.s4 1966171168
    %v803 = vunpack.c.0.s8 %v802
    %v804 = vlaneseq
    %v805 = vshrl.u32 %v804, 7
    %v806 = vsub.s32 %v803, %v805
    %v807 = vrot.slane %v779, %v806
    %v808 = vcombine.high %v786, %v786
    %v809 = vcombine.high %v793, %v793
    %v810 = vcombine.high %v800, %v800
    %v811 = vcombine.high %v807, %v807
    %v1356 = vunpack.c.l.b16 %v88
    %v1357 = vunpack.c.h.b16 %v88
    %v1358 = vunpack.c.l.b16 %v89
    %v1359 = vunpack.c.h.b16 %v89
    %v1360 = vunpack.c.l.b16 %v90
    %v1361 = vunpack.c.h.b16 %v90
    %v1362 = vunpack.c.l.b16 %v91
    %v1363 = vunpack.c.h.b16 %v91
    %v1364 = vunpack.c.l.b16 %v92
    %v1365 = vunpack.c.h.b16 %v92
    %v1366 = vunpack.c.l.b16 %v93
    %v1367 = vunpack.c.h.b16 %v93
    %v1368 = vunpack.c.l.b16 %v94
    %v1369 = vunpack.c.h.b16 %v94
    %v1370 = vunpack.c.l.b16 %v95
    %v1371 = vunpack.c.h.b16 %v95
    %v1372 = vunpack.c.l.b16 %v96
    %v1373 = vunpack.c.h.b16 %v96
    %v1374 = vunpack.c.l.b16 %v97
    %v1375 = vunpack.c.h.b16 %v97
    %v1376 = vunpack.c.l.b16 %v98
    %v1377 = vunpack.c.h.b16 %v98
    %v1378 = vunpack.c.l.b16 %v99
    %v1379 = vunpack.c.h.b16 %v99
    %v1380 = vunpack.c.l.b16 %v100
    %v1381 = vunpack.c.h.b16 %v100
    %v1382 = vunpack.c.l.b16 %v101
    %v1383 = vunpack.c.h.b16 %v101
    %v1384 = vunpack.c.l.b16 %v102
    %v1385 = vunpack.c.h.b16 %v102
    %v1386 = vunpack.c.l.b16 %v103
    %v1387 = vunpack.c.h.b16 %v103
    %v1388 = vunpack.c.l.b16 %v104
    %v1389 = vunpack.c.h.b16 %v104
    %v1390 = vunpack.c.l.b16 %v105
    %v1391 = vunpack.c.h.b16 %v105
    %v1392 = vunpack.c.l.b16 %v106
    %v1393 = vunpack.c.h.b16 %v106
    %v1394 = vunpack.c.l.b16 %v107
    %v1395 = vunpack.c.h.b16 %v107
    %v1396 = vunpack.c.l.b16 %v108
    %v1397 = vunpack.c.h.b16 %v108
    %v1398 = vunpack.c.l.b16 %v109
    %v1399 = vunpack.c.h.b16 %v109
    %v1400 = vunpack.c.l.b16 %v110
    %v1401 = vunpack.c.h.b16 %v110
    %v1402 = vunpack.c.l.b16 %v111
    %v1403 = vunpack.c.h.b16 %v111
    %v1404 = vunpack.c.l.b16 %v112
    %v1405 = vunpack.c.h.b16 %v112
    %v1406 = vunpack.c.l.b16 %v113
    %v1407 = vunpack.c.h.b16 %v113
    %v1408 = vunpack.c.l.b16 %v114
    %v1409 = vunpack.c.h.b16 %v114
    %v1410 = vunpack.c.l.b16 %v115
    %v1411 = vunpack.c.h.b16 %v115
    %v1412 = vunpack.c.l.b16 %v116
    %v1413 = vunpack.c.h.b16 %v116
    %v1414 = vunpack.c.l.b16 %v117
    %v1415 = vunpack.c.h.b16 %v117
    %v1416 = vunpack.c.l.b16 %v118
    %v1417 = vunpack.c.h.b16 %v118
    %v1418 = vunpack.c.l.b16 %v119
    %v1419 = vunpack.c.h.b16 %v119
    %v1420 = vunpack.c.l.b16 %v120
    %v1421 = vunpack.c.h.b16 %v120
    %v1422 = vunpack.c.l.b16 %v121
    %v1423 = vunpack.c.h.b16 %v121
    %v1424 = vunpack.c.l.b16 %v122
    %v1425 = vunpack.c.h.b16 %v122
    %v1426 = vunpack.c.l.b16 %v123
    %v1427 = vunpack.c.h.b16 %v123
    %v1428 = vunpack.c.l.b16 %v124
    %v1429 = vunpack.c.h.b16 %v124
    %v1430 = vunpack.c.l.b16 %v125
    %v1431 = vunpack.c.h.b16 %v125
    %v1432 = vunpack.c.l.b16 %v126
    %v1433 = vunpack.c.h.b16 %v126
    %v1434 = vunpack.c.l.b16 %v127
    %v1435 = vunpack.c.h.b16 %v127
    %v1436 = vunpack.c.l.b16 %v128
    %v1437 = vunpack.c.h.b16 %v128
    %v1438 = vunpack.c.l.b16 %v129
    %v1439 = vunpack.c.h.b16 %v129
    %v1440 = vunpack.c.l.b16 %v130
    %v1441 = vunpack.c.h.b16 %v130
    %v1442 = vunpack.c.l.b16 %v131
    %v1443 = vunpack.c.h.b16 %v131
    %v1444 = vunpack.c.l.b16 %v132
    %v1445 = vunpack.c.h.b16 %v132
    %v1446 = vunpack.c.l.b16 %v133
    %v1447 = vunpack.c.h.b16 %v133
    %v1448 = vunpack.c.l.b16 %v134
    %v1449 = vunpack.c.h.b16 %v134
    %v1450 = vunpack.c.l.b16 %v135
    %v1451 = vunpack.c.h.b16 %v135
    %v1452 = vunpack.c.l.b16 %v136
    %v1453 = vunpack.c.h.b16 %v136
    %v1454 = vunpack.c.l.b16 %v137
    %v1455 = vunpack.c.h.b16 %v137
    %v1456 = vunpack.c.l.b16 %v138
    %v1457 = vunpack.c.h.b16 %v138
    %v1458 = vunpack.c.l.b16 %v139
    %v1459 = vunpack.c.h.b16 %v139
    %v1460 = vunpack.c.l.b16 %v140
    %v1461 = vunpack.c.h.b16 %v140
    %v1462 = vunpack.c.l.b16 %v141
    %v1463 = vunpack.c.h.b16 %v141
    %v1464 = vunpack.c.l.b16 %v142
    %v1465 = vunpack.c.h.b16 %v142
    %v1466 = vunpack.c.l.b16 %v143
    %v1467 = vunpack.c.h.b16 %v143
    %v1468 = vunpack.c.l.b16 %v144
    %v1469 = vunpack.c.h.b16 %v144
    %v1470 = vunpack.c.l.b16 %v145
    %v1471 = vunpack.c.h.b16 %v145
    %v1472 = vunpack.c.l.b16 %v146
    %v1473 = vunpack.c.h.b16 %v146
    %v1474 = vunpack.c.l.b16 %v147
    %v1475 = vunpack.c.h.b16 %v147
    %v1476 = vunpack.c.l.b16 %v148
    %v1477 = vunpack.c.h.b16 %v148
    %v1478 = vunpack.c.l.b16 %v149
    %v1479 = vunpack.c.h.b16 %v149
    %v1480 = vunpack.c.l.b16 %v150
    %v1481 = vunpack.c.h.b16 %v150
    %v1482 = vunpack.c.l.b16 %v151
    %v1483 = vunpack.c.h.b16 %v151
    %v1484 = vunpack.c.l.b16 %v152
    %v1485 = vunpack.c.h.b16 %v152
    %v1486 = vunpack.c.l.b16 %v153
    %v1487 = vunpack.c.h.b16 %v153
    %v1488 = vunpack.c.l.b16 %v154
    %v1489 = vunpack.c.h.b16 %v154
    %v1490 = vunpack.c.l.b16 %v155
    %v1491 = vunpack.c.h.b16 %v155
    %v1492 = vunpack.c.l.b16 %v156
    %v1493 = vunpack.c.h.b16 %v156
    %v1494 = vunpack.c.l.b16 %v157
    %v1495 = vunpack.c.h.b16 %v157
    %v1496 = vunpack.c.l.b16 %v158
    %v1497 = vunpack.c.h.b16 %v158
    %v1498 = vunpack.c.l.b16 %v159
    %v1499 = vunpack.c.h.b16 %v159
    %v1500 = vunpack.c.l.b16 %v160
    %v1501 = vunpack.c.h.b16 %v160
    %v1502 = vunpack.c.l.b16 %v161
    %v1503 = vunpack.c.h.b16 %v161
    %v1504 = vunpack.c.l.b16 %v162
    %v1505 = vunpack.c.h.b16 %v162
    %v1506 = vunpack.c.l.b16 %v163
    %v1507 = vunpack.c.h.b16 %v163
    %v1508 = vunpack.c.l.b16 %v164
    %v1509 = vunpack.c.h.b16 %v164
    %v1510 = vunpack.c.l.b16 %v165
    %v1511 = vunpack.c.h.b16 %v165
    %v1512 = vunpack.c.l.b16 %v166
    %v1513 = vunpack.c.h.b16 %v166
    %v1514 = vunpack.c.l.b16 %v167
    %v1515 = vunpack.c.h.b16 %v167
    %v1516 = vunpack.c.l.b16 %v168
    %v1517 = vunpack.c.h.b16 %v168
    %v1518 = vunpack.c.l.b16 %v169
    %v1519 = vunpack.c.h.b16 %v169
    %v1520 = vunpack.c.l.b16 %v170
    %v1521 = vunpack.c.h.b16 %v170
    %v1522 = vunpack.c.l.b16 %v171
    %v1523 = vunpack.c.h.b16 %v171
    %v1524 = vunpack.c.l.b16 %v172
    %v1525 = vunpack.c.h.b16 %v172
    %v1526 = vunpack.c.l.b16 %v173
    %v1527 = vunpack.c.h.b16 %v173
    %v1528 = vunpack.c.l.b16 %v174
    %v1529 = vunpack.c.h.b16 %v174
    %v1530 = vunpack.c.l.b16 %v175
    %v1531 = vunpack.c.h.b16 %v175
    %v1532 = vunpack.c.l.b16 %v176
    %v1533 = vunpack.c.h.b16 %v176
    %v1534 = vunpack.c.l.b16 %v177
    %v1535 = vunpack.c.h.b16 %v177
    %v1536 = vunpack.c.l.b16 %v178
    %v1537 = vunpack.c.h.b16 %v178
    %v1538 = vunpack.c.l.b16 %v179
    %v1539 = vunpack.c.h.b16 %v179
    %v1540 = vunpack.c.l.b16 %v180
    %v1541 = vunpack.c.h.b16 %v180
    %v1542 = vunpack.c.l.b16 %v181
    %v1543 = vunpack.c.h.b16 %v181
    %v1544 = vunpack.c.l.b16 %v182
    %v1545 = vunpack.c.h.b16 %v182
    %v1546 = vunpack.c.l.b16 %v183
    %v1547 = vunpack.c.h.b16 %v183
    %v1548 = vunpack.c.l.b16 %v184
    %v1549 = vunpack.c.h.b16 %v184
    %v1550 = vunpack.c.l.b16 %v185
    %v1551 = vunpack.c.h.b16 %v185
    %v1552 = vunpack.c.l.b16 %v186
    %v1553 = vunpack.c.h.b16 %v186
    %v1554 = vunpack.c.l.b16 %v187
    %v1555 = vunpack.c.h.b16 %v187
    %v1556 = vunpack.c.l.b16 %v188
    %v1557 = vunpack.c.h.b16 %v188
    %v1558 = vunpack.c.l.b16 %v189
    %v1559 = vunpack.c.h.b16 %v189
    %v1560 = vunpack.c.l.b16 %v190
    %v1561 = vunpack.c.h.b16 %v190
    %v1562 = vunpack.c.l.b16 %v191
    %v1563 = vunpack.c.h.b16 %v191
    %v1564 = vunpack.c.l.b16 %v192
    %v1565 = vunpack.c.h.b16 %v192
    %v1566 = vunpack.c.l.b16 %v193
    %v1567 = vunpack.c.h.b16 %v193
    %v1568 = vunpack.c.l.b16 %v194
    %v1569 = vunpack.c.h.b16 %v194
    %v1570 = vunpack.c.l.b16 %v195
    %v1571 = vunpack.c.h.b16 %v195
    %v1572 = vunpack.c.l.b16 %v196
    %v1573 = vunpack.c.h.b16 %v196
    %v1574 = vunpack.c.l.b16 %v197
    %v1575 = vunpack.c.h.b16 %v197
    %v1576 = vunpack.c.l.b16 %v198
    %v1577 = vunpack.c.h.b16 %v198
    %v1578 = vunpack.c.l.b16 %v199
    %v1579 = vunpack.c.h.b16 %v199
    %v1580 = vunpack.c.l.b16 %v200
    %v1581 = vunpack.c.h.b16 %v200
    %v1582 = vunpack.c.l.b16 %v201
    %v1583 = vunpack.c.h.b16 %v201
    %v1584 = vunpack.c.l.b16 %v202
    %v1585 = vunpack.c.h.b16 %v202
    %v1586 = vunpack.c.l.b16 %v203
    %v1587 = vunpack.c.h.b16 %v203
    %v1588 = vunpack.c.l.b16 %v204
    %v1589 = vunpack.c.h.b16 %v204
    %v1590 = vunpack.c.l.b16 %v205
    %v1591 = vunpack.c.h.b16 %v205
    %v1592 = vunpack.c.l.b16 %v206
    %v1593 = vunpack.c.h.b16 %v206
    %v1594 = vunpack.c.l.b16 %v207
    %v1595 = vunpack.c.h.b16 %v207
    %v1596 = vunpack.c.l.b16 %v208
    %v1597 = vunpack.c.h.b16 %v208
    %v1598 = vunpack.c.l.b16 %v209
    %v1599 = vunpack.c.h.b16 %v209
    %v1600 = vunpack.c.l.b16 %v210
    %v1601 = vunpack.c.h.b16 %v210
    %v1602 = vunpack.c.l.b16 %v211
    %v1603 = vunpack.c.h.b16 %v211
    %v1604 = vunpack.c.l.b16 %v212
    %v1605 = vunpack.c.h.b16 %v212
    %v1606 = vunpack.c.l.b16 %v213
    %v1607 = vunpack.c.h.b16 %v213
    %v1608 = vunpack.c.l.b16 %v214
    %v1609 = vunpack.c.h.b16 %v214
    %v1610 = vunpack.c.l.b16 %v215
    %v1611 = vunpack.c.h.b16 %v215
    %v1612 = vunpack.c.l.b16 %v216
    %v1613 = vunpack.c.h.b16 %v216
    %v1614 = vunpack.c.l.b16 %v217
    %v1615 = vunpack.c.h.b16 %v217
    %v1616 = vunpack.c.l.b16 %v218
    %v1617 = vunpack.c.h.b16 %v218
    %v1618 = vunpack.c.l.b16 %v219
    %v1619 = vunpack.c.h.b16 %v219
    %v1620 = vunpack.c.l.b16 %v220
    %v1621 = vunpack.c.h.b16 %v220
    %v1622 = vunpack.c.l.b16 %v221
    %v1623 = vunpack.c.h.b16 %v221
    %v1624 = vunpack.c.l.b16 %v222
    %v1625 = vunpack.c.h.b16 %v222
    %v1626 = vunpack.c.l.b16 %v223
    %v1627 = vunpack.c.h.b16 %v223
    %v1628 = vunpack.c.l.b16 %v224
    %v1629 = vunpack.c.h.b16 %v224
    %v1630 = vunpack.c.l.b16 %v225
    %v1631 = vunpack.c.h.b16 %v225
    %v1632 = vunpack.c.l.b16 %v226
    %v1633 = vunpack.c.h.b16 %v226
    %v1634 = vunpack.c.l.b16 %v227
    %v1635 = vunpack.c.h.b16 %v227
    %v1636 = vunpack.c.l.b16 %v228
    %v1637 = vunpack.c.h.b16 %v228
    %v1638 = vunpack.c.l.b16 %v229
    %v1639 = vunpack.c.h.b16 %v229
    %v1640 = vunpack.c.l.b16 %v230
    %v1641 = vunpack.c.h.b16 %v230
    %v1642 = vunpack.c.l.b16 %v231
    %v1643 = vunpack.c.h.b16 %v231
    %v1644 = vunpack.c.l.b16 %v232
    %v1645 = vunpack.c.h.b16 %v232
    %v1646 = vunpack.c.l.b16 %v233
    %v1647 = vunpack.c.h.b16 %v233
    %v1648 = vunpack.c.l.b16 %v234
    %v1649 = vunpack.c.h.b16 %v234
    %v1650 = vunpack.c.l.b16 %v235
    %v1651 = vunpack.c.h.b16 %v235
    %v1652 = vunpack.c.l.b16 %v236
    %v1653 = vunpack.c.h.b16 %v236
    %v1654 = vunpack.c.l.b16 %v237
    %v1655 = vunpack.c.h.b16 %v237
    %v1656 = vunpack.c.l.b16 %v238
    %v1657 = vunpack.c.h.b16 %v238
    %v1658 = vunpack.c.l.b16 %v239
    %v1659 = vunpack.c.h.b16 %v239
    %v1660 = vunpack.c.l.b16 %v240
    %v1661 = vunpack.c.h.b16 %v240
    %v1662 = vunpack.c.l.b16 %v241
    %v1663 = vunpack.c.h.b16 %v241
    %v1664 = vunpack.c.l.b16 %v242
    %v1665 = vunpack.c.h.b16 %v242
    %v1666 = vunpack.c.l.b16 %v243
    %v1667 = vunpack.c.h.b16 %v243
    %v1668 = vunpack.c.l.b16 %v244
    %v1669 = vunpack.c.h.b16 %v244
    %v1670 = vunpack.c.l.b16 %v245
    %v1671 = vunpack.c.h.b16 %v245
    %v1672 = vunpack.c.l.b16 %v246
    %v1673 = vunpack.c.h.b16 %v246
    %v1674 = vunpack.c.l.b16 %v247
    %v1675 = vunpack.c.h.b16 %v247
    %v1676 = vunpack.c.l.b16 %v248
    %v1677 = vunpack.c.h.b16 %v248
    %v1678 = vunpack.c.l.b16 %v249
    %v1679 = vunpack.c.h.b16 %v249
    %v1680 = vunpack.c.l.b16 %v250
    %v1681 = vunpack.c.h.b16 %v250
    %v1682 = vunpack.c.l.b16 %v251
    %v1683 = vunpack.c.h.b16 %v251
    %v1684 = vunpack.c.l.b16 %v252
    %v1685 = vunpack.c.h.b16 %v252
    %v1686 = vunpack.c.l.b16 %v253
    %v1687 = vunpack.c.h.b16 %v253
    %v1688 = vunpack.c.l.b16 %v254
    %v1689 = vunpack.c.h.b16 %v254
    %v1690 = vunpack.c.l.b16 %v255
    %v1691 = vunpack.c.h.b16 %v255
    %v1692 = vunpack.c.l.b16 %v256
    %v1693 = vunpack.c.h.b16 %v256
    %v1694 = vunpack.c.l.b16 %v257
    %v1695 = vunpack.c.h.b16 %v257
    %v1696 = vunpack.c.l.b16 %v258
    %v1697 = vunpack.c.h.b16 %v258
    %v1698 = vunpack.c.l.b16 %v259
    %v1699 = vunpack.c.h.b16 %v259
    %v1700 = vunpack.c.l.b16 %v260
    %v1701 = vunpack.c.h.b16 %v260
    %v1702 = vunpack.c.l.b16 %v261
    %v1703 = vunpack.c.h.b16 %v261
    %v1704 = vunpack.c.l.b16 %v262
    %v1705 = vunpack.c.h.b16 %v262
    %v1706 = vunpack.c.l.b16 %v263
    %v1707 = vunpack.c.h.b16 %v263
    %v1708 = vunpack.c.l.b16 %v264
    %v1709 = vunpack.c.h.b16 %v264
    %v1710 = vunpack.c.l.b16 %v265
    %v1711 = vunpack.c.h.b16 %v265
    %v1712 = vunpack.c.l.b16 %v266
    %v1713 = vunpack.c.h.b16 %v266
    %v1714 = vunpack.c.l.b16 %v267
    %v1715 = vunpack.c.h.b16 %v267
    %v1716 = vunpack.c.l.b16 %v268
    %v1717 = vunpack.c.h.b16 %v268
    %v1718 = vunpack.c.l.b16 %v269
    %v1719 = vunpack.c.h.b16 %v269
    %v1720 = vunpack.c.l.b16 %v270
    %v1721 = vunpack.c.h.b16 %v270
    %v1722 = vunpack.c.l.b16 %v271
    %v1723 = vunpack.c.h.b16 %v271
    %v1724 = vunpack.c.l.b16 %v272
    %v1725 = vunpack.c.h.b16 %v272
    %v1726 = vunpack.c.l.b16 %v273
    %v1727 = vunpack.c.h.b16 %v273
    %v1728 = vunpack.c.l.b16 %v274
    %v1729 = vunpack.c.h.b16 %v274
    %v1730 = vunpack.c.l.b16 %v275
    %v1731 = vunpack.c.h.b16 %v275
    %v1732 = vunpack.c.l.b16 %v276
    %v1733 = vunpack.c.h.b16 %v276
    %v1734 = vunpack.c.l.b16 %v277
    %v1735 = vunpack.c.h.b16 %v277
    %v1736 = vunpack.c.l.b16 %v278
    %v1737 = vunpack.c.h.b16 %v278
    %v1738 = vunpack.c.l.b16 %v279
    %v1739 = vunpack.c.h.b16 %v279
    %v1740 = vunpack.c.l.b16 %v280
    %v1741 = vunpack.c.h.b16 %v280
    %v1742 = vunpack.c.l.b16 %v281
    %v1743 = vunpack.c.h.b16 %v281
    %v1744 = vunpack.c.l.b16 %v282
    %v1745 = vunpack.c.h.b16 %v282
    %v1746 = vunpack.c.l.b16 %v283
    %v1747 = vunpack.c.h.b16 %v283
    %v1748 = vunpack.c.l.b16 %v284
    %v1749 = vunpack.c.h.b16 %v284
    %v1750 = vunpack.c.l.b16 %v285
    %v1751 = vunpack.c.h.b16 %v285
    %v1752 = vunpack.c.l.b16 %v286
    %v1753 = vunpack.c.h.b16 %v286
    %v1754 = vunpack.c.l.b16 %v287
    %v1755 = vunpack.c.h.b16 %v287
    %v1756 = vunpack.c.l.b16 %v288
    %v1757 = vunpack.c.h.b16 %v288
    %v1758 = vunpack.c.l.b16 %v289
    %v1759 = vunpack.c.h.b16 %v289
    %v1760 = vunpack.c.l.b16 %v290
    %v1761 = vunpack.c.h.b16 %v290
    %v1762 = vunpack.c.l.b16 %v291
    %v1763 = vunpack.c.h.b16 %v291
    %v1764 = vunpack.c.l.b16 %v292
    %v1765 = vunpack.c.h.b16 %v292
    %v1766 = vunpack.c.l.b16 %v293
    %v1767 = vunpack.c.h.b16 %v293
    %v1768 = vunpack.c.l.b16 %v294
    %v1769 = vunpack.c.h.b16 %v294
    %v1770 = vunpack.c.l.b16 %v295
    %v1771 = vunpack.c.h.b16 %v295
    %v1772 = vunpack.c.l.b16 %v296
    %v1773 = vunpack.c.h.b16 %v296
    %v1774 = vunpack.c.l.b16 %v297
    %v1775 = vunpack.c.h.b16 %v297
    %v1776 = vunpack.c.l.b16 %v298
    %v1777 = vunpack.c.h.b16 %v298
    %v1778 = vunpack.c.l.b16 %v299
    %v1779 = vunpack.c.h.b16 %v299
    %v1780 = vunpack.c.l.b16 %v300
    %v1781 = vunpack.c.h.b16 %v300
    %v1782 = vunpack.c.l.b16 %v301
    %v1783 = vunpack.c.h.b16 %v301
    %v1784 = vunpack.c.l.b16 %v302
    %v1785 = vunpack.c.h.b16 %v302
    %v1786 = vunpack.c.l.b16 %v303
    %v1787 = vunpack.c.h.b16 %v303
    %v1788 = vunpack.c.l.b16 %v304
    %v1789 = vunpack.c.h.b16 %v304
    %v1790 = vunpack.c.l.b16 %v305
    %v1791 = vunpack.c.h.b16 %v305
    %v1792 = vunpack.c.l.b16 %v306
    %v1793 = vunpack.c.h.b16 %v306
    %v1794 = vunpack.c.l.b16 %v307
    %v1795 = vunpack.c.h.b16 %v307
    %v1796 = vunpack.c.l.b16 %v308
    %v1797 = vunpack.c.h.b16 %v308
    %v1798 = vunpack.c.l.b16 %v309
    %v1799 = vunpack.c.h.b16 %v309
    %v1800 = vunpack.c.l.b16 %v310
    %v1801 = vunpack.c.h.b16 %v310
    %v1802 = vunpack.c.l.b16 %v311
    %v1803 = vunpack.c.h.b16 %v311
    %v1804 = vunpack.c.l.b16 %v312
    %v1805 = vunpack.c.h.b16 %v312
    %v1806 = vunpack.c.l.b16 %v313
    %v1807 = vunpack.c.h.b16 %v313
    %v1808 = vunpack.c.l.b16 %v314
    %v1809 = vunpack.c.h.b16 %v314
    %v1810 = vunpack.c.l.b16 %v315
    %v1811 = vunpack.c.h.b16 %v315
    %v1812 = vunpack.c.l.b16 %v316
    %v1813 = vunpack.c.h.b16 %v316
    %v1814 = vunpack.c.l.b16 %v317
    %v1815 = vunpack.c.h.b16 %v317
    %v1816 = vunpack.c.l.b16 %v318
    %v1817 = vunpack.c.h.b16 %v318
    %v1818 = vunpack.c.l.b16 %v319
    %v1819 = vunpack.c.h.b16 %v319
    %v1820 = vunpack.c.l.b16 %v320
    %v1821 = vunpack.c.h.b16 %v320
    %v1822 = vunpack.c.l.b16 %v321
    %v1823 = vunpack.c.h.b16 %v321
    %v1824 = vunpack.c.l.b16 %v322
    %v1825 = vunpack.c.h.b16 %v322
    %v1826 = vunpack.c.l.b16 %v323
    %v1827 = vunpack.c.h.b16 %v323
    %v1828 = vunpack.c.l.b16 %v324
    %v1829 = vunpack.c.h.b16 %v324
    %v1830 = vunpack.c.l.b16 %v325
    %v1831 = vunpack.c.h.b16 %v325
    %v1832 = vunpack.c.l.b16 %v326
    %v1833 = vunpack.c.h.b16 %v326
    %v1834 = vunpack.c.l.b16 %v327
    %v1835 = vunpack.c.h.b16 %v327
    %v1836 = vunpack.c.l.b16 %v328
    %v1837 = vunpack.c.h.b16 %v328
    %v1838 = vunpack.c.l.b16 %v329
    %v1839 = vunpack.c.h.b16 %v329
    %v1840 = vunpack.c.l.b16 %v330
    %v1841 = vunpack.c.h.b16 %v330
    %v1842 = vunpack.c.l.b16 %v331
    %v1843 = vunpack.c.h.b16 %v331
    %v1844 = vunpack.c.l.b16 %v332
    %v1845 = vunpack.c.h.b16 %v332
    %v1846 = vunpack.c.l.b16 %v333
    %v1847 = vunpack.c.h.b16 %v333
    %v1848 = vunpack.c.l.b16 %v334
    %v1849 = vunpack.c.h.b16 %v334
    %v1850 = vunpack.c.l.b16 %v335
    %v1851 = vunpack.c.h.b16 %v335
    %v1852 = vunpack.c.l.b16 %v336
    %v1853 = vunpack.c.h.b16 %v336
    %v1854 = vunpack.c.l.b16 %v337
    %v1855 = vunpack.c.h.b16 %v337
    %v1856 = vunpack.c.l.b16 %v338
    %v1857 = vunpack.c.h.b16 %v338
    %v1858 = vunpack.c.l.b16 %v339
    %v1859 = vunpack.c.h.b16 %v339
    %v1860 = vunpack.c.l.b16 %v340
    %v1861 = vunpack.c.h.b16 %v340
    %v1862 = vunpack.c.l.b16 %v341
    %v1863 = vunpack.c.h.b16 %v341
    %v1864 = vunpack.c.l.b16 %v342
    %v1865 = vunpack.c.h.b16 %v342
    %v1866 = vunpack.c.l.b16 %v343
    %v1867 = vunpack.c.h.b16 %v343
    %v1868 = vunpack.c.l.b16 %v344
    %v1869 = vunpack.c.h.b16 %v344
    %v1870 = vunpack.c.l.b16 %v345
    %v1871 = vunpack.c.h.b16 %v345
    %v1872 = vunpack.c.l.b16 %v346
    %v1873 = vunpack.c.h.b16 %v346
    %v1874 = vunpack.c.l.b16 %v347
    %v1875 = vunpack.c.h.b16 %v347
    %v1876 = vunpack.c.l.b16 %v348
    %v1877 = vunpack.c.h.b16 %v348
    %v1878 = vunpack.c.l.b16 %v349
    %v1879 = vunpack.c.h.b16 %v349
    %v1880 = vunpack.c.l.b16 %v350
    %v1881 = vunpack.c.h.b16 %v350
    %v1882 = vunpack.c.l.b16 %v351
    %v1883 = vunpack.c.h.b16 %v351
    %v1884 = vunpack.c.l.b16 %v352
    %v1885 = vunpack.c.h.b16 %v352
    %v1886 = vunpack.c.l.b16 %v353
    %v1887 = vunpack.c.h.b16 %v353
    %v1888 = vunpack.c.l.b16 %v354
    %v1889 = vunpack.c.h.b16 %v354
    %v1890 = vunpack.c.l.b16 %v355
    %v1891 = vunpack.c.h.b16 %v355
    %v1892 = vunpack.c.l.b16 %v356
    %v1893 = vunpack.c.h.b16 %v356
    %v1894 = vunpack.c.l.b16 %v357
    %v1895 = vunpack.c.h.b16 %v357
    %v1896 = vunpack.c.l.b16 %v358
    %v1897 = vunpack.c.h.b16 %v358
    %v1898 = vunpack.c.l.b16 %v359
    %v1899 = vunpack.c.h.b16 %v359
    %v1900 = vunpack.c.l.b16 %v360
    %v1901 = vunpack.c.h.b16 %v360
    %v1902 = vunpack.c.l.b16 %v361
    %v1903 = vunpack.c.h.b16 %v361
    %v1904 = vunpack.c.l.b16 %v362
    %v1905 = vunpack.c.h.b16 %v362
    %v1906 = vunpack.c.l.b16 %v363
    %v1907 = vunpack.c.h.b16 %v363
    %v1908 = vunpack.c.l.b16 %v364
    %v1909 = vunpack.c.h.b16 %v364
    %v1910 = vunpack.c.l.b16 %v365
    %v1911 = vunpack.c.h.b16 %v365
    %v1912 = vunpack.c.l.b16 %v366
    %v1913 = vunpack.c.h.b16 %v366
    %v1914 = vunpack.c.l.b16 %v367
    %v1915 = vunpack.c.h.b16 %v367
    %v1916 = vunpack.c.l.b16 %v368
    %v1917 = vunpack.c.h.b16 %v368
    %v1918 = vunpack.c.l.b16 %v369
    %v1919 = vunpack.c.h.b16 %v369
    %v1920 = vunpack.c.l.b16 %v370
    %v1921 = vunpack.c.h.b16 %v370
    %v1922 = vunpack.c.l.b16 %v371
    %v1923 = vunpack.c.h.b16 %v371
    %v1924 = vunpack.c.l.b16 %v372
    %v1925 = vunpack.c.h.b16 %v372
    %v1926 = vunpack.c.l.b16 %v373
    %v1927 = vunpack.c.h.b16 %v373
    %v1928 = vunpack.c.l.b16 %v374
    %v1929 = vunpack.c.h.b16 %v374
    %v1930 = vunpack.c.l.b16 %v375
    %v1931 = vunpack.c.h.b16 %v375
    %v1932 = vunpack.c.l.b16 %v376
    %v1933 = vunpack.c.h.b16 %v376
    %v1934 = vunpack.c.l.b16 %v377
    %v1935 = vunpack.c.h.b16 %v377
    %v1936 = vunpack.c.l.b16 %v378
    %v1937 = vunpack.c.h.b16 %v378
    %v1938 = vunpack.c.l.b16 %v379
    %v1939 = vunpack.c.h.b16 %v379
    %v1940 = vunpack.c.l.b16 %v380
    %v1941 = vunpack.c.h.b16 %v380
    %v1942 = vunpack.c.l.b16 %v381
    %v1943 = vunpack.c.h.b16 %v381
    %v1944 = vunpack.c.l.b16 %v382
    %v1945 = vunpack.c.h.b16 %v382
    %v1946 = vunpack.c.l.b16 %v383
    %v1947 = vunpack.c.h.b16 %v383
    %v1948 = vunpack.c.l.b16 %v384
    %v1949 = vunpack.c.h.b16 %v384
    %v1950 = vunpack.c.l.b16 %v385
    %v1951 = vunpack.c.h.b16 %v385
    %v1952 = vunpack.c.l.b16 %v386
    %v1953 = vunpack.c.h.b16 %v386
    %v1954 = vunpack.c.l.b16 %v387
    %v1955 = vunpack.c.h.b16 %v387
    %v1956 = vunpack.c.l.b16 %v388
    %v1957 = vunpack.c.h.b16 %v388
    %v1958 = vunpack.c.l.b16 %v389
    %v1959 = vunpack.c.h.b16 %v389
    %v1960 = vunpack.c.l.b16 %v390
    %v1961 = vunpack.c.h.b16 %v390
    %v1962 = vunpack.c.l.b16 %v391
    %v1963 = vunpack.c.h.b16 %v391
    %v1964 = vunpack.c.l.b16 %v392
    %v1965 = vunpack.c.h.b16 %v392
    %v1966 = vunpack.c.l.b16 %v393
    %v1967 = vunpack.c.h.b16 %v393
    %v1968 = vunpack.c.l.b16 %v394
    %v1969 = vunpack.c.h.b16 %v394
    %v1970 = vunpack.c.l.b16 %v395
    %v1971 = vunpack.c.h.b16 %v395
    %v1972 = vunpack.c.l.b16 %v396
    %v1973 = vunpack.c.h.b16 %v396
    %v1974 = vunpack.c.l.b16 %v397
    %v1975 = vunpack.c.h.b16 %v397
    %v1976 = vunpack.c.l.b16 %v398
    %v1977 = vunpack.c.h.b16 %v398
    %v1978 = vunpack.c.l.b16 %v399
    %v1979 = vunpack.c.h.b16 %v399
    %v1980 = vunpack.c.l.b16 %v400
    %v1981 = vunpack.c.h.b16 %v400
    %v1982 = vunpack.c.l.b16 %v401
    %v1983 = vunpack.c.h.b16 %v401
    %v1984 = vunpack.c.l.b16 %v402
    %v1985 = vunpack.c.h.b16 %v402
    %v1986 = vunpack.c.l.b16 %v403
    %v1987 = vunpack.c.h.b16 %v403
    %v1988 = vunpack.c.l.b16 %v404
    %v1989 = vunpack.c.h.b16 %v404
    %v1990 = vunpack.c.l.b16 %v405
    %v1991 = vunpack.c.h.b16 %v405
    %v1992 = vunpack.c.l.b16 %v406
    %v1993 = vunpack.c.h.b16 %v406
    %v1994 = vunpack.c.l.b16 %v407
    %v1995 = vunpack.c.h.b16 %v407
    %v1996 = vunpack.c.l.b16 %v408
    %v1997 = vunpack.c.h.b16 %v408
    %v1998 = vunpack.c.l.b16 %v409
    %v1999 = vunpack.c.h.b16 %v409
    %v2000 = vunpack.c.l.b16 %v410
    %v2001 = vunpack.c.h.b16 %v410
    %v2002 = vunpack.c.l.b16 %v411
    %v2003 = vunpack.c.h.b16 %v411
    %v2004 = vunpack.c.l.b16 %v412
    %v2005 = vunpack.c.h.b16 %v412
    %v2006 = vunpack.c.l.b16 %v413
    %v2007 = vunpack.c.h.b16 %v413
    %v2008 = vunpack.c.l.b16 %v414
    %v2009 = vunpack.c.h.b16 %v414
    %v2010 = vunpack.c.l.b16 %v415
    %v2011 = vunpack.c.h.b16 %v415
    %v2012 = vunpack.c.l.b16 %v416
    %v2013 = vunpack.c.h.b16 %v416
    %v2014 = vunpack.c.l.b16 %v417
    %v2015 = vunpack.c.h.b16 %v417
    %v2016 = vunpack.c.l.b16 %v418
    %v2017 = vunpack.c.h.b16 %v418
    %v2018 = vunpack.c.l.b16 %v419
    %v2019 = vunpack.c.h.b16 %v419
    %v2020 = vunpack.c.l.b16 %v420
    %v2021 = vunpack.c.h.b16 %v420
    %v2022 = vunpack.c.l.b16 %v421
    %v2023 = vunpack.c.h.b16 %v421
    %v2024 = vunpack.c.l.b16 %v422
    %v2025 = vunpack.c.h.b16 %v422
    %v2026 = vunpack.c.l.b16 %v423
    %v2027 = vunpack.c.h.b16 %v423
    %v2028 = vunpack.c.l.b16 %v424
    %v2029 = vunpack.c.h.b16 %v424
    %v2030 = vunpack.c.l.b16 %v425
    %v2031 = vunpack.c.h.b16 %v425
    %v2032 = vunpack.c.l.b16 %v426
    %v2033 = vunpack.c.h.b16 %v426
    %v2034 = vunpack.c.l.b16 %v427
    %v2035 = vunpack.c.h.b16 %v427
    %v2036 = vunpack.c.l.b16 %v428
    %v2037 = vunpack.c.h.b16 %v428
    %v2038 = vunpack.c.l.b16 %v429
    %v2039 = vunpack.c.h.b16 %v429
    %v2040 = vunpack.c.l.b16 %v430
    %v2041 = vunpack.c.h.b16 %v430
    %v2042 = vunpack.c.l.b16 %v431
    %v2043 = vunpack.c.h.b16 %v431
    %v2044 = vunpack.c.l.b16 %v432
    %v2045 = vunpack.c.h.b16 %v432
    %v2046 = vunpack.c.l.b16 %v433
    %v2047 = vunpack.c.h.b16 %v433
    %v2048 = vunpack.c.l.b16 %v434
    %v2049 = vunpack.c.h.b16 %v434
    %v2050 = vunpack.c.l.b16 %v435
    %v2051 = vunpack.c.h.b16 %v435
    %v2052 = vunpack.c.l.b16 %v436
    %v2053 = vunpack.c.h.b16 %v436
    %v2054 = vunpack.c.l.b16 %v437
    %v2055 = vunpack.c.h.b16 %v437
    %v2056 = vunpack.c.l.b16 %v438
    %v2057 = vunpack.c.h.b16 %v438
    %v2058 = vunpack.c.l.b16 %v439
    %v2059 = vunpack.c.h.b16 %v439
    %v2060 = vunpack.c.l.b16 %v440
    %v2061 = vunpack.c.h.b16 %v440
    %v2062 = vunpack.c.l.b16 %v441
    %v2063 = vunpack.c.h.b16 %v441
    %v2064 = vunpack.c.l.b16 %v442
    %v2065 = vunpack.c.h.b16 %v442
    %v2066 = vunpack.c.l.b16 %v443
    %v2067 = vunpack.c.h.b16 %v443
    %v2068 = vunpack.c.l.b16 %v444
    %v2069 = vunpack.c.h.b16 %v444
    %v2070 = vunpack.c.l.b16 %v445
    %v2071 = vunpack.c.h.b16 %v445
    %v2072 = vunpack.c.l.b16 %v446
    %v2073 = vunpack.c.h.b16 %v446
    %v2074 = vunpack.c.l.b16 %v447
    %v2075 = vunpack.c.h.b16 %v447
    %v2076 = vunpack.c.l.b16 %v448
    %v2077 = vunpack.c.h.b16 %v448
    %v2078 = vunpack.c.l.b16 %v449
    %v2079 = vunpack.c.h.b16 %v449
    %v2080 = vunpack.c.l.b16 %v450
    %v2081 = vunpack.c.h.b16 %v450
    %v2082 = vunpack.c.l.b16 %v451
    %v2083 = vunpack.c.h.b16 %v451
    %v2084 = vunpack.c.l.b16 %v452
    %v2085 = vunpack.c.h.b16 %v452
    %v2086 = vunpack.c.l.b16 %v453
    %v2087 = vunpack.c.h.b16 %v453
    %v2088 = vunpack.c.l.b16 %v454
    %v2089 = vunpack.c.h.b16 %v454
    %v2090 = vunpack.c.l.b16 %v455
    %v2091 = vunpack.c.h.b16 %v455
    %v2092 = vunpack.c.l.b16 %v456
    %v2093 = vunpack.c.h.b16 %v456
    %v2094 = vunpack.c.l.b16 %v457
    %v2095 = vunpack.c.h.b16 %v457
    %v2096 = vunpack.c.l.b16 %v458
    %v2097 = vunpack.c.h.b16 %v458
    %v2098 = vunpack.c.l.b16 %v459
    %v2099 = vunpack.c.h.b16 %v459
    %v2100 = vunpack.c.l.b16 %v460
    %v2101 = vunpack.c.h.b16 %v460
    %v2102 = vunpack.c.l.b16 %v461
    %v2103 = vunpack.c.h.b16 %v461
    %v2104 = vunpack.c.l.b16 %v462
    %v2105 = vunpack.c.h.b16 %v462
    %v2106 = vunpack.c.l.b16 %v463
    %v2107 = vunpack.c.h.b16 %v463
    %v2108 = vunpack.c.l.b16 %v464
    %v2109 = vunpack.c.h.b16 %v464
    %v2110 = vunpack.c.l.b16 %v465
    %v2111 = vunpack.c.h.b16 %v465
    %v2112 = vunpack.c.l.b16 %v466
    %v2113 = vunpack.c.h.b16 %v466
    %v2114 = vunpack.c.l.b16 %v467
    %v2115 = vunpack.c.h.b16 %v467
    %v2116 = vunpack.c.l.b16 %v468
    %v2117 = vunpack.c.h.b16 %v468
    %v2118 = vunpack.c.l.b16 %v469
    %v2119 = vunpack.c.h.b16 %v469
    %v2120 = vunpack.c.l.b16 %v470
    %v2121 = vunpack.c.h.b16 %v470
    %v2122 = vunpack.c.l.b16 %v471
    %v2123 = vunpack.c.h.b16 %v471
    %v2124 = vunpack.c.l.b16 %v472
    %v2125 = vunpack.c.h.b16 %v472
    %v2126 = vunpack.c.l.b16 %v473
    %v2127 = vunpack.c.h.b16 %v473
    %v2128 = vunpack.c.l.b16 %v474
    %v2129 = vunpack.c.h.b16 %v474
    %v2130 = vunpack.c.l.b16 %v475
    %v2131 = vunpack.c.h.b16 %v475
    %v2132 = vunpack.c.l.b16 %v476
    %v2133 = vunpack.c.h.b16 %v476
    %v2134 = vunpack.c.l.b16 %v477
    %v2135 = vunpack.c.h.b16 %v477
    %v2136 = vunpack.c.l.b16 %v478
    %v2137 = vunpack.c.h.b16 %v478
    %v2138 = vunpack.c.l.b16 %v479
    %v2139 = vunpack.c.h.b16 %v479
    %v2140 = vunpack.c.l.b16 %v480
    %v2141 = vunpack.c.h.b16 %v480
    %v2142 = vunpack.c.l.b16 %v481
    %v2143 = vunpack.c.h.b16 %v481
    %v2144 = vunpack.c.l.b16 %v482
    %v2145 = vunpack.c.h.b16 %v482
    %v2146 = vunpack.c.l.b16 %v483
    %v2147 = vunpack.c.h.b16 %v483
    %v2148 = vunpack.c.l.b16 %v484
    %v2149 = vunpack.c.h.b16 %v484
    %v2150 = vunpack.c.l.b16 %v485
    %v2151 = vunpack.c.h.b16 %v485
    %v2152 = vunpack.c.l.b16 %v486
    %v2153 = vunpack.c.h.b16 %v486
    %v2154 = vunpack.c.l.b16 %v487
    %v2155 = vunpack.c.h.b16 %v487
    %v2156 = vunpack.c.l.b16 %v488
    %v2157 = vunpack.c.h.b16 %v488
    %v2158 = vunpack.c.l.b16 %v489
    %v2159 = vunpack.c.h.b16 %v489
    %v2160 = vunpack.c.l.b16 %v490
    %v2161 = vunpack.c.h.b16 %v490
    %v2162 = vunpack.c.l.b16 %v491
    %v2163 = vunpack.c.h.b16 %v491
    %v2164 = vunpack.c.l.b16 %v492
    %v2165 = vunpack.c.h.b16 %v492
    %v2166 = vunpack.c.l.b16 %v493
    %v2167 = vunpack.c.h.b16 %v493
    %v2168 = vunpack.c.l.b16 %v494
    %v2169 = vunpack.c.h.b16 %v494
    %v2170 = vunpack.c.l.b16 %v495
    %v2171 = vunpack.c.h.b16 %v495
    %v2172 = vunpack.c.l.b16 %v496
    %v2173 = vunpack.c.h.b16 %v496
    %v2174 = vunpack.c.l.b16 %v497
    %v2175 = vunpack.c.h.b16 %v497
    %v2176 = vunpack.c.l.b16 %v498
    %v2177 = vunpack.c.h.b16 %v498
    %v2178 = vunpack.c.l.b16 %v499
    %v2179 = vunpack.c.h.b16 %v499
    %v2180 = vunpack.c.l.b16 %v500
    %v2181 = vunpack.c.h.b16 %v500
    %v2182 = vunpack.c.l.b16 %v501
    %v2183 = vunpack.c.h.b16 %v501
    %v2184 = vunpack.c.l.b16 %v502
    %v2185 = vunpack.c.h.b16 %v502
    %v2186 = vunpack.c.l.b16 %v503
    %v2187 = vunpack.c.h.b16 %v503
    %v2188 = vunpack.c.l.b16 %v504
    %v2189 = vunpack.c.h.b16 %v504
    %v2190 = vunpack.c.l.b16 %v505
    %v2191 = vunpack.c.h.b16 %v505
    %v2192 = vunpack.c.l.b16 %v506
    %v2193 = vunpack.c.h.b16 %v506
    %v2194 = vunpack.c.l.b16 %v507
    %v2195 = vunpack.c.h.b16 %v507
    %v2196 = vunpack.c.l.b16 %v508
    %v2197 = vunpack.c.h.b16 %v508
    %v2198 = vunpack.c.l.b16 %v509
    %v2199 = vunpack.c.h.b16 %v509
    %v2200 = vunpack.c.l.b16 %v510
    %v2201 = vunpack.c.h.b16 %v510
    %v2202 = vunpack.c.l.b16 %v511
    %v2203 = vunpack.c.h.b16 %v511
    %v2204 = vunpack.c.l.b16 %v512
    %v2205 = vunpack.c.h.b16 %v512
    %v2206 = vunpack.c.l.b16 %v513
    %v2207 = vunpack.c.h.b16 %v513
    %v2208 = vunpack.c.l.b16 %v514
    %v2209 = vunpack.c.h.b16 %v514
    %v2210 = vunpack.c.l.b16 %v515
    %v2211 = vunpack.c.h.b16 %v515
    %v2212 = vunpack.c.l.b16 %v516
    %v2213 = vunpack.c.h.b16 %v516
    %v2214 = vunpack.c.l.b16 %v517
    %v2215 = vunpack.c.h.b16 %v517
    %v2216 = vunpack.c.l.b16 %v518
    %v2217 = vunpack.c.h.b16 %v518
    %v2218 = vunpack.c.l.b16 %v519
    %v2219 = vunpack.c.h.b16 %v519
    %v2220 = vunpack.c.l.b16 %v520
    %v2221 = vunpack.c.h.b16 %v520
    %v2222 = vunpack.c.l.b16 %v521
    %v2223 = vunpack.c.h.b16 %v521
    %v2224 = vunpack.c.l.b16 %v522
    %v2225 = vunpack.c.h.b16 %v522
    %v2226 = vunpack.c.l.b16 %v523
    %v2227 = vunpack.c.h.b16 %v523
    %v2228 = vunpack.c.l.b16 %v524
    %v2229 = vunpack.c.h.b16 %v524
    %v2230 = vunpack.c.l.b16 %v525
    %v2231 = vunpack.c.h.b16 %v525
    %v2232 = vunpack.c.l.b16 %v526
    %v2233 = vunpack.c.h.b16 %v526
    %v2234 = vunpack.c.l.b16 %v527
    %v2235 = vunpack.c.h.b16 %v527
    %v2236 = vunpack.c.l.b16 %v528
    %v2237 = vunpack.c.h.b16 %v528
    %v2238 = vunpack.c.l.b16 %v529
    %v2239 = vunpack.c.h.b16 %v529
    %v2240 = vunpack.c.l.b16 %v530
    %v2241 = vunpack.c.h.b16 %v530
    %v2242 = vunpack.c.l.b16 %v531
    %v2243 = vunpack.c.h.b16 %v531
    %v2244 = vunpack.c.l.b16 %v532
    %v2245 = vunpack.c.h.b16 %v532
    %v2246 = vunpack.c.l.b16 %v533
    %v2247 = vunpack.c.h.b16 %v533
    %v2248 = vunpack.c.l.b16 %v534
    %v2249 = vunpack.c.h.b16 %v534
    %v2250 = vunpack.c.l.b16 %v535
    %v2251 = vunpack.c.h.b16 %v535
    %v2252 = vunpack.c.l.b16 %v536
    %v2253 = vunpack.c.h.b16 %v536
    %v2254 = vunpack.c.l.b16 %v537
    %v2255 = vunpack.c.h.b16 %v537
    %v2256 = vunpack.c.l.b16 %v538
    %v2257 = vunpack.c.h.b16 %v538
    %v2258 = vunpack.c.l.b16 %v539
    %v2259 = vunpack.c.h.b16 %v539
    %v2260 = vunpack.c.l.b16 %v540
    %v2261 = vunpack.c.h.b16 %v540
    %v2262 = vunpack.c.l.b16 %v541
    %v2263 = vunpack.c.h.b16 %v541
    %v2264 = vunpack.c.l.b16 %v542
    %v2265 = vunpack.c.h.b16 %v542
    %v2266 = vunpack.c.l.b16 %v543
    %v2267 = vunpack.c.h.b16 %v543
    %v2268 = vunpack.c.l.b16 %v544
    %v2269 = vunpack.c.h.b16 %v544
    %v2270 = vunpack.c.l.b16 %v545
    %v2271 = vunpack.c.h.b16 %v545
    %v2272 = vunpack.c.l.b16 %v546
    %v2273 = vunpack.c.h.b16 %v546
    %v2274 = vunpack.c.l.b16 %v547
    %v2275 = vunpack.c.h.b16 %v547
    %v2276 = vunpack.c.l.b16 %v548
    %v2277 = vunpack.c.h.b16 %v548
    %v2278 = vunpack.c.l.b16 %v549
    %v2279 = vunpack.c.h.b16 %v549
    %v2280 = vunpack.c.l.b16 %v550
    %v2281 = vunpack.c.h.b16 %v550
    %v2282 = vunpack.c.l.b16 %v551
    %v2283 = vunpack.c.h.b16 %v551
    %v2284 = vunpack.c.l.b16 %v552
    %v2285 = vunpack.c.h.b16 %v552
    %v2286 = vunpack.c.l.b16 %v553
    %v2287 = vunpack.c.h.b16 %v553
    %v2288 = vunpack.c.l.b16 %v554
    %v2289 = vunpack.c.h.b16 %v554
    %v2290 = vunpack.c.l.b16 %v555
    %v2291 = vunpack.c.h.b16 %v555
    %v2292 = vunpack.c.l.b16 %v556
    %v2293 = vunpack.c.h.b16 %v556
    %v2294 = vunpack.c.l.b16 %v557
    %v2295 = vunpack.c.h.b16 %v557
    %v2296 = vunpack.c.l.b16 %v558
    %v2297 = vunpack.c.h.b16 %v558
    %v2298 = vunpack.c.l.b16 %v559
    %v2299 = vunpack.c.h.b16 %v559
    %v2300 = vunpack.c.l.b16 %v560
    %v2301 = vunpack.c.h.b16 %v560
    %v2302 = vunpack.c.l.b16 %v561
    %v2303 = vunpack.c.h.b16 %v561
    %v2304 = vunpack.c.l.b16 %v562
    %v2305 = vunpack.c.h.b16 %v562
    %v2306 = vunpack.c.l.b16 %v563
    %v2307 = vunpack.c.h.b16 %v563
    %v2308 = vunpack.c.l.b16 %v564
    %v2309 = vunpack.c.h.b16 %v564
    %v2310 = vunpack.c.l.b16 %v565
    %v2311 = vunpack.c.h.b16 %v565
    %v2312 = vunpack.c.l.b16 %v566
    %v2313 = vunpack.c.h.b16 %v566
    %v2314 = vunpack.c.l.b16 %v567
    %v2315 = vunpack.c.h.b16 %v567
    %v2316 = vunpack.c.l.b16 %v568
    %v2317 = vunpack.c.h.b16 %v568
    %v2318 = vunpack.c.l.b16 %v569
    %v2319 = vunpack.c.h.b16 %v569
    %v2320 = vunpack.c.l.b16 %v570
    %v2321 = vunpack.c.h.b16 %v570
    %v2322 = vunpack.c.l.b16 %v571
    %v2323 = vunpack.c.h.b16 %v571
    %v2324 = vunpack.c.l.b16 %v572
    %v2325 = vunpack.c.h.b16 %v572
    %v2326 = vunpack.c.l.b16 %v573
    %v2327 = vunpack.c.h.b16 %v573
    %v2328 = vunpack.c.l.b16 %v574
    %v2329 = vunpack.c.h.b16 %v574
    %v2330 = vunpack.c.l.b16 %v575
    %v2331 = vunpack.c.h.b16 %v575
    %v2332 = vunpack.c.l.b16 %v576
    %v2333 = vunpack.c.h.b16 %v576
    %v2334 = vunpack.c.l.b16 %v577
    %v2335 = vunpack.c.h.b16 %v577
    %v2336 = vunpack.c.l.b16 %v578
    %v2337 = vunpack.c.h.b16 %v578
    %v2338 = vunpack.c.l.b16 %v579
    %v2339 = vunpack.c.h.b16 %v579
    %v2340 = vunpack.c.l.b16 %v580
    %v2341 = vunpack.c.h.b16 %v580
    %v2342 = vunpack.c.l.b16 %v581
    %v2343 = vunpack.c.h.b16 %v581
    %v2344 = vunpack.c.l.b16 %v582
    %v2345 = vunpack.c.h.b16 %v582
    %v2346 = vunpack.c.l.b16 %v583
    %v2347 = vunpack.c.h.b16 %v583
    %v2348 = vunpack.c.l.b16 %v584
    %v2349 = vunpack.c.h.b16 %v584
    %v2350 = vunpack.c.l.b16 %v585
    %v2351 = vunpack.c.h.b16 %v585
    %v2352 = vunpack.c.l.b16 %v586
    %v2353 = vunpack.c.h.b16 %v586
    %v2354 = vunpack.c.l.b16 %v587
    %v2355 = vunpack.c.h.b16 %v587
    %v2356 = vunpack.c.l.b16 %v588
    %v2357 = vunpack.c.h.b16 %v588
    %v2358 = vunpack.c.l.b16 %v589
    %v2359 = vunpack.c.h.b16 %v589
    %v2360 = vunpack.c.l.b16 %v590
    %v2361 = vunpack.c.h.b16 %v590
    %v2362 = vunpack.c.l.b16 %v591
    %v2363 = vunpack.c.h.b16 %v591
    %v2364 = vunpack.c.l.b16 %v592
    %v2365 = vunpack.c.h.b16 %v592
    %v2366 = vunpack.c.l.b16 %v593
    %v2367 = vunpack.c.h.b16 %v593
    %v2368 = vunpack.c.l.b16 %v594
    %v2369 = vunpack.c.h.b16 %v594
    %v2370 = vunpack.c.l.b16 %v595
    %v2371 = vunpack.c.h.b16 %v595
    %v2372 = vunpack.c.l.b16 %v596
    %v2373 = vunpack.c.h.b16 %v596
    %v2374 = vunpack.c.l.b16 %v597
    %v2375 = vunpack.c.h.b16 %v597
    %v2376 = vunpack.c.l.b16 %v598
    %v2377 = vunpack.c.h.b16 %v598
    %v2378 = vunpack.c.l.b16 %v599
    %v2379 = vunpack.c.h.b16 %v599
    %v2380 = vpack.c.b16 %v1358, %v1356
    %v2381 = vpack.c.b16 %v1359, %v1357
    %v2382 = vpack.c.b16 %v1362, %v1360
    %v2383 = vpack.c.b16 %v1363, %v1361
    %v2384 = vpack.c.b16 %v1366, %v1364
    %v2385 = vpack.c.b16 %v1367, %v1365
    %v2386 = vpack.c.b16 %v1370, %v1368
    %v2387 = vpack.c.b16 %v1371, %v1369
    %v2388 = vpack.c.b16 %v1374, %v1372
    %v2389 = vpack.c.b16 %v1375, %v1373
    %v2390 = vpack.c.b16 %v1378, %v1376
    %v2391 = vpack.c.b16 %v1379, %v1377
    %v2392 = vpack.c.b16 %v1382, %v1380
    %v2393 = vpack.c.b16 %v1383, %v1381
    %v2394 = vpack.c.b16 %v1386, %v1384
    %v2395 = vpack.c.b16 %v1387, %v1385
    %v2396 = vpack.c.b16 %v1390, %v1388
    %v2397 = vpack.c.b16 %v1391, %v1389
    %v2398 = vpack.c.b16 %v1394, %v1392
    %v2399 = vpack.c.b16 %v1395, %v1393
    %v2400 = vpack.c.b16 %v1398, %v1396
    %v2401 = vpack.c.b16 %v1399, %v1397
    %v2402 = vpack.c.b16 %v1402, %v1400
    %v2403 = vpack.c.b16 %v1403, %v1401
    %v2404 = vpack.c.b16 %v1406, %v1404
    %v2405 = vpack.c.b16 %v1407, %v1405
    %v2406 = vpack.c.b16 %v1410, %v1408
    %v2407 = vpack.c.b16 %v1411, %v1409
    %v2408 = vpack.c.b16 %v1414, %v1412
    %v2409 = vpack.c.b16 %v1415, %v1413
    %v2410 = vpack.c.b16 %v1418, %v1416
    %v2411 = vpack.c.b16 %v1419, %v1417
    %v2412 = vpack.c.b16 %v1422, %v1420
    %v2413 = vpack.c.b16 %v1423, %v1421
    %v2414 = vpack.c.b16 %v1426, %v1424
    %v2415 = vpack.c.b16 %v1427, %v1425
    %v2416 = vpack.c.b16 %v1430, %v1428
    %v2417 = vpack.c.b16 %v1431, %v1429
    %v2418 = vpack.c.b16 %v1434, %v1432
    %v2419 = vpack.c.b16 %v1435, %v1433
    %v2420 = vpack.c.b16 %v1438, %v1436
    %v2421 = vpack.c.b16 %v1439, %v1437
    %v2422 = vpack.c.b16 %v1442, %v1440
    %v2423 = vpack.c.b16 %v1443, %v1441
    %v2424 = vpack.c.b16 %v1446, %v1444
    %v2425 = vpack.c.b16 %v1447, %v1445
    %v2426 = vpack.c.b16 %v1450, %v1448
    %v2427 = vpack.c.b16 %v1451, %v1449
    %v2428 = vpack.c.b16 %v1454, %v1452
    %v2429 = vpack.c.b16 %v1455, %v1453
    %v2430 = vpack.c.b16 %v1458, %v1456
    %v2431 = vpack.c.b16 %v1459, %v1457
    %v2432 = vpack.c.b16 %v1462, %v1460
    %v2433 = vpack.c.b16 %v1463, %v1461
    %v2434 = vpack.c.b16 %v1466, %v1464
    %v2435 = vpack.c.b16 %v1467, %v1465
    %v2436 = vpack.c.b16 %v1470, %v1468
    %v2437 = vpack.c.b16 %v1471, %v1469
    %v2438 = vpack.c.b16 %v1474, %v1472
    %v2439 = vpack.c.b16 %v1475, %v1473
    %v2440 = vpack.c.b16 %v1478, %v1476
    %v2441 = vpack.c.b16 %v1479, %v1477
    %v2442 = vpack.c.b16 %v1482, %v1480
    %v2443 = vpack.c.b16 %v1483, %v1481
    %v2444 = vpack.c.b16 %v1486, %v1484
    %v2445 = vpack.c.b16 %v1487, %v1485
    %v2446 = vpack.c.b16 %v1490, %v1488
    %v2447 = vpack.c.b16 %v1491, %v1489
    %v2448 = vpack.c.b16 %v1494, %v1492
    %v2449 = vpack.c.b16 %v1495, %v1493
    %v2450 = vpack.c.b16 %v1498, %v1496
    %v2451 = vpack.c.b16 %v1499, %v1497
    %v2452 = vpack.c.b16 %v1502, %v1500
    %v2453 = vpack.c.b16 %v1503, %v1501
    %v2454 = vpack.c.b16 %v1506, %v1504
    %v2455 = vpack.c.b16 %v1507, %v1505
    %v2456 = vpack.c.b16 %v1510, %v1508
    %v2457 = vpack.c.b16 %v1511, %v1509
    %v2458 = vpack.c.b16 %v1514, %v1512
    %v2459 = vpack.c.b16 %v1515, %v1513
    %v2460 = vpack.c.b16 %v1518, %v1516
    %v2461 = vpack.c.b16 %v1519, %v1517
    %v2462 = vpack.c.b16 %v1522, %v1520
    %v2463 = vpack.c.b16 %v1523, %v1521
    %v2464 = vpack.c.b16 %v1526, %v1524
    %v2465 = vpack.c.b16 %v1527, %v1525
    %v2466 = vpack.c.b16 %v1530, %v1528
    %v2467 = vpack.c.b16 %v1531, %v1529
    %v2468 = vpack.c.b16 %v1534, %v1532
    %v2469 = vpack.c.b16 %v1535, %v1533
    %v2470 = vpack.c.b16 %v1538, %v1536
    %v2471 = vpack.c.b16 %v1539, %v1537
    %v2472 = vpack.c.b16 %v1542, %v1540
    %v2473 = vpack.c.b16 %v1543, %v1541
    %v2474 = vpack.c.b16 %v1546, %v1544
    %v2475 = vpack.c.b16 %v1547, %v1545
    %v2476 = vpack.c.b16 %v1550, %v1548
    %v2477 = vpack.c.b16 %v1551, %v1549
    %v2478 = vpack.c.b16 %v1554, %v1552
    %v2479 = vpack.c.b16 %v1555, %v1553
    %v2480 = vpack.c.b16 %v1558, %v1556
    %v2481 = vpack.c.b16 %v1559, %v1557
    %v2482 = vpack.c.b16 %v1562, %v1560
    %v2483 = vpack.c.b16 %v1563, %v1561
    %v2484 = vpack.c.b16 %v1566, %v1564
    %v2485 = vpack.c.b16 %v1567, %v1565
    %v2486 = vpack.c.b16 %v1570, %v1568
    %v2487 = vpack.c.b16 %v1571, %v1569
    %v2488 = vpack.c.b16 %v1574, %v1572
    %v2489 = vpack.c.b16 %v1575, %v1573
    %v2490 = vpack.c.b16 %v1578, %v1576
    %v2491 = vpack.c.b16 %v1579, %v1577
    %v2492 = vpack.c.b16 %v1582, %v1580
    %v2493 = vpack.c.b16 %v1583, %v1581
    %v2494 = vpack.c.b16 %v1586, %v1584
    %v2495 = vpack.c.b16 %v1587, %v1585
    %v2496 = vpack.c.b16 %v1590, %v1588
    %v2497 = vpack.c.b16 %v1591, %v1589
    %v2498 = vpack.c.b16 %v1594, %v1592
    %v2499 = vpack.c.b16 %v1595, %v1593
    %v2500 = vpack.c.b16 %v1598, %v1596
    %v2501 = vpack.c.b16 %v1599, %v1597
    %v2502 = vpack.c.b16 %v1602, %v1600
    %v2503 = vpack.c.b16 %v1603, %v1601
    %v2504 = vpack.c.b16 %v1606, %v1604
    %v2505 = vpack.c.b16 %v1607, %v1605
    %v2506 = vpack.c.b16 %v1610, %v1608
    %v2507 = vpack.c.b16 %v1611, %v1609
    %v2508 = vpack.c.b16 %v1614, %v1612
    %v2509 = vpack.c.b16 %v1615, %v1613
    %v2510 = vpack.c.b16 %v1618, %v1616
    %v2511 = vpack.c.b16 %v1619, %v1617
    %v2512 = vpack.c.b16 %v1622, %v1620
    %v2513 = vpack.c.b16 %v1623, %v1621
    %v2514 = vpack.c.b16 %v1626, %v1624
    %v2515 = vpack.c.b16 %v1627, %v1625
    %v2516 = vpack.c.b16 %v1630, %v1628
    %v2517 = vpack.c.b16 %v1631, %v1629
    %v2518 = vpack.c.b16 %v1634, %v1632
    %v2519 = vpack.c.b16 %v1635, %v1633
    %v2520 = vpack.c.b16 %v1638, %v1636
    %v2521 = vpack.c.b16 %v1639, %v1637
    %v2522 = vpack.c.b16 %v1642, %v1640
    %v2523 = vpack.c.b16 %v1643, %v1641
    %v2524 = vpack.c.b16 %v1646, %v1644
    %v2525 = vpack.c.b16 %v1647, %v1645
    %v2526 = vpack.c.b16 %v1650, %v1648
    %v2527 = vpack.c.b16 %v1651, %v1649
    %v2528 = vpack.c.b16 %v1654, %v1652
    %v2529 = vpack.c.b16 %v1655, %v1653
    %v2530 = vpack.c.b16 %v1658, %v1656
    %v2531 = vpack.c.b16 %v1659, %v1657
    %v2532 = vpack.c.b16 %v1662, %v1660
    %v2533 = vpack.c.b16 %v1663, %v1661
    %v2534 = vpack.c.b16 %v1666, %v1664
    %v2535 = vpack.c.b16 %v1667, %v1665
    %v2536 = vpack.c.b16 %v1670, %v1668
    %v2537 = vpack.c.b16 %v1671, %v1669
    %v2538 = vpack.c.b16 %v1674, %v1672
    %v2539 = vpack.c.b16 %v1675, %v1673
    %v2540 = vpack.c.b16 %v1678, %v1676
    %v2541 = vpack.c.b16 %v1679, %v1677
    %v2542 = vpack.c.b16 %v1682, %v1680
    %v2543 = vpack.c.b16 %v1683, %v1681
    %v2544 = vpack.c.b16 %v1686, %v1684
    %v2545 = vpack.c.b16 %v1687, %v1685
    %v2546 = vpack.c.b16 %v1690, %v1688
    %v2547 = vpack.c.b16 %v1691, %v1689
    %v2548 = vpack.c.b16 %v1694, %v1692
    %v2549 = vpack.c.b16 %v1695, %v1693
    %v2550 = vpack.c.b16 %v1698, %v1696
    %v2551 = vpack.c.b16 %v1699, %v1697
    %v2552 = vpack.c.b16 %v1702, %v1700
    %v2553 = vpack.c.b16 %v1703, %v1701
    %v2554 = vpack.c.b16 %v1706, %v1704
    %v2555 = vpack.c.b16 %v1707, %v1705
    %v2556 = vpack.c.b16 %v1710, %v1708
    %v2557 = vpack.c.b16 %v1711, %v1709
    %v2558 = vpack.c.b16 %v1714, %v1712
    %v2559 = vpack.c.b16 %v1715, %v1713
    %v2560 = vpack.c.b16 %v1718, %v1716
    %v2561 = vpack.c.b16 %v1719, %v1717
    %v2562 = vpack.c.b16 %v1722, %v1720
    %v2563 = vpack.c.b16 %v1723, %v1721
    %v2564 = vpack.c.b16 %v1726, %v1724
    %v2565 = vpack.c.b16 %v1727, %v1725
    %v2566 = vpack.c.b16 %v1730, %v1728
    %v2567 = vpack.c.b16 %v1731, %v1729
    %v2568 = vpack.c.b16 %v1734, %v1732
    %v2569 = vpack.c.b16 %v1735, %v1733
    %v2570 = vpack.c.b16 %v1738, %v1736
    %v2571 = vpack.c.b16 %v1739, %v1737
    %v2572 = vpack.c.b16 %v1742, %v1740
    %v2573 = vpack.c.b16 %v1743, %v1741
    %v2574 = vpack.c.b16 %v1746, %v1744
    %v2575 = vpack.c.b16 %v1747, %v1745
    %v2576 = vpack.c.b16 %v1750, %v1748
    %v2577 = vpack.c.b16 %v1751, %v1749
    %v2578 = vpack.c.b16 %v1754, %v1752
    %v2579 = vpack.c.b16 %v1755, %v1753
    %v2580 = vpack.c.b16 %v1758, %v1756
    %v2581 = vpack.c.b16 %v1759, %v1757
    %v2582 = vpack.c.b16 %v1762, %v1760
    %v2583 = vpack.c.b16 %v1763, %v1761
    %v2584 = vpack.c.b16 %v1766, %v1764
    %v2585 = vpack.c.b16 %v1767, %v1765
    %v2586 = vpack.c.b16 %v1770, %v1768
    %v2587 = vpack.c.b16 %v1771, %v1769
    %v2588 = vpack.c.b16 %v1774, %v1772
    %v2589 = vpack.c.b16 %v1775, %v1773
    %v2590 = vpack.c.b16 %v1778, %v1776
    %v2591 = vpack.c.b16 %v1779, %v1777
    %v2592 = vpack.c.b16 %v1782, %v1780
    %v2593 = vpack.c.b16 %v1783, %v1781
    %v2594 = vpack.c.b16 %v1786, %v1784
    %v2595 = vpack.c.b16 %v1787, %v1785
    %v2596 = vpack.c.b16 %v1790, %v1788
    %v2597 = vpack.c.b16 %v1791, %v1789
    %v2598 = vpack.c.b16 %v1794, %v1792
    %v2599 = vpack.c.b16 %v1795, %v1793
    %v2600 = vpack.c.b16 %v1798, %v1796
    %v2601 = vpack.c.b16 %v1799, %v1797
    %v2602 = vpack.c.b16 %v1802, %v1800
    %v2603 = vpack.c.b16 %v1803, %v1801
    %v2604 = vpack.c.b16 %v1806, %v1804
    %v2605 = vpack.c.b16 %v1807, %v1805
    %v2606 = vpack.c.b16 %v1810, %v1808
    %v2607 = vpack.c.b16 %v1811, %v1809
    %v2608 = vpack.c.b16 %v1814, %v1812
    %v2609 = vpack.c.b16 %v1815, %v1813
    %v2610 = vpack.c.b16 %v1818, %v1816
    %v2611 = vpack.c.b16 %v1819, %v1817
    %v2612 = vpack.c.b16 %v1822, %v1820
    %v2613 = vpack.c.b16 %v1823, %v1821
    %v2614 = vpack.c.b16 %v1826, %v1824
    %v2615 = vpack.c.b16 %v1827, %v1825
    %v2616 = vpack.c.b16 %v1830, %v1828
    %v2617 = vpack.c.b16 %v1831, %v1829
    %v2618 = vpack.c.b16 %v1834, %v1832
    %v2619 = vpack.c.b16 %v1835, %v1833
    %v2620 = vpack.c.b16 %v1838, %v1836
    %v2621 = vpack.c.b16 %v1839, %v1837
    %v2622 = vpack.c.b16 %v1842, %v1840
    %v2623 = vpack.c.b16 %v1843, %v1841
    %v2624 = vpack.c.b16 %v1846, %v1844
    %v2625 = vpack.c.b16 %v1847, %v1845
    %v2626 = vpack.c.b16 %v1850, %v1848
    %v2627 = vpack.c.b16 %v1851, %v1849
    %v2628 = vpack.c.b16 %v1854, %v1852
    %v2629 = vpack.c.b16 %v1855, %v1853
    %v2630 = vpack.c.b16 %v1858, %v1856
    %v2631 = vpack.c.b16 %v1859, %v1857
    %v2632 = vpack.c.b16 %v1862, %v1860
    %v2633 = vpack.c.b16 %v1863, %v1861
    %v2634 = vpack.c.b16 %v1866, %v1864
    %v2635 = vpack.c.b16 %v1867, %v1865
    %v2636 = vpack.c.b16 %v1870, %v1868
    %v2637 = vpack.c.b16 %v1871, %v1869
    %v2638 = vpack.c.b16 %v1874, %v1872
    %v2639 = vpack.c.b16 %v1875, %v1873
    %v2640 = vpack.c.b16 %v1878, %v1876
    %v2641 = vpack.c.b16 %v1879, %v1877
    %v2642 = vpack.c.b16 %v1882, %v1880
    %v2643 = vpack.c.b16 %v1883, %v1881
    %v2644 = vpack.c.b16 %v1886, %v1884
    %v2645 = vpack.c.b16 %v1887, %v1885
    %v2646 = vpack.c.b16 %v1890, %v1888
    %v2647 = vpack.c.b16 %v1891, %v1889
    %v2648 = vpack.c.b16 %v1894, %v1892
    %v2649 = vpack.c.b16 %v1895, %v1893
    %v2650 = vpack.c.b16 %v1898, %v1896
    %v2651 = vpack.c.b16 %v1899, %v1897
    %v2652 = vpack.c.b16 %v1902, %v1900
    %v2653 = vpack.c.b16 %v1903, %v1901
    %v2654 = vpack.c.b16 %v1906, %v1904
    %v2655 = vpack.c.b16 %v1907, %v1905
    %v2656 = vpack.c.b16 %v1910, %v1908
    %v2657 = vpack.c.b16 %v1911, %v1909
    %v2658 = vpack.c.b16 %v1914, %v1912
    %v2659 = vpack.c.b16 %v1915, %v1913
    %v2660 = vpack.c.b16 %v1918, %v1916
    %v2661 = vpack.c.b16 %v1919, %v1917
    %v2662 = vpack.c.b16 %v1922, %v1920
    %v2663 = vpack.c.b16 %v1923, %v1921
    %v2664 = vpack.c.b16 %v1926, %v1924
    %v2665 = vpack.c.b16 %v1927, %v1925
    %v2666 = vpack.c.b16 %v1930, %v1928
    %v2667 = vpack.c.b16 %v1931, %v1929
    %v2668 = vpack.c.b16 %v1934, %v1932
    %v2669 = vpack.c.b16 %v1935, %v1933
    %v2670 = vpack.c.b16 %v1938, %v1936
    %v2671 = vpack.c.b16 %v1939, %v1937
    %v2672 = vpack.c.b16 %v1942, %v1940
    %v2673 = vpack.c.b16 %v1943, %v1941
    %v2674 = vpack.c.b16 %v1946, %v1944
    %v2675 = vpack.c.b16 %v1947, %v1945
    %v2676 = vpack.c.b16 %v1950, %v1948
    %v2677 = vpack.c.b16 %v1951, %v1949
    %v2678 = vpack.c.b16 %v1954, %v1952
    %v2679 = vpack.c.b16 %v1955, %v1953
    %v2680 = vpack.c.b16 %v1958, %v1956
    %v2681 = vpack.c.b16 %v1959, %v1957
    %v2682 = vpack.c.b16 %v1962, %v1960
    %v2683 = vpack.c.b16 %v1963, %v1961
    %v2684 = vpack.c.b16 %v1966, %v1964
    %v2685 = vpack.c.b16 %v1967, %v1965
    %v2686 = vpack.c.b16 %v1970, %v1968
    %v2687 = vpack.c.b16 %v1971, %v1969
    %v2688 = vpack.c.b16 %v1974, %v1972
    %v2689 = vpack.c.b16 %v1975, %v1973
    %v2690 = vpack.c.b16 %v1978, %v1976
    %v2691 = vpack.c.b16 %v1979, %v1977
    %v2692 = vpack.c.b16 %v1982, %v1980
    %v2693 = vpack.c.b16 %v1983, %v1981
    %v2694 = vpack.c.b16 %v1986, %v1984
    %v2695 = vpack.c.b16 %v1987, %v1985
    %v2696 = vpack.c.b16 %v1990, %v1988
    %v2697 = vpack.c.b16 %v1991, %v1989
    %v2698 = vpack.c.b16 %v1994, %v1992
    %v2699 = vpack.c.b16 %v1995, %v1993
    %v2700 = vpack.c.b16 %v1998, %v1996
    %v2701 = vpack.c.b16 %v1999, %v1997
    %v2702 = vpack.c.b16 %v2002, %v2000
    %v2703 = vpack.c.b16 %v2003, %v2001
    %v2704 = vpack.c.b16 %v2006, %v2004
    %v2705 = vpack.c.b16 %v2007, %v2005
    %v2706 = vpack.c.b16 %v2010, %v2008
    %v2707 = vpack.c.b16 %v2011, %v2009
    %v2708 = vpack.c.b16 %v2014, %v2012
    %v2709 = vpack.c.b16 %v2015, %v2013
    %v2710 = vpack.c.b16 %v2018, %v2016
    %v2711 = vpack.c.b16 %v2019, %v2017
    %v2712 = vpack.c.b16 %v2022, %v2020
    %v2713 = vpack.c.b16 %v2023, %v2021
    %v2714 = vpack.c.b16 %v2026, %v2024
    %v2715 = vpack.c.b16 %v2027, %v2025
    %v2716 = vpack.c.b16 %v2030, %v2028
    %v2717 = vpack.c.b16 %v2031, %v2029
    %v2718 = vpack.c.b16 %v2034, %v2032
    %v2719 = vpack.c.b16 %v2035, %v2033
    %v2720 = vpack.c.b16 %v2038, %v2036
    %v2721 = vpack.c.b16 %v2039, %v2037
    %v2722 = vpack.c.b16 %v2042, %v2040
    %v2723 = vpack.c.b16 %v2043, %v2041
    %v2724 = vpack.c.b16 %v2046, %v2044
    %v2725 = vpack.c.b16 %v2047, %v2045
    %v2726 = vpack.c.b16 %v2050, %v2048
    %v2727 = vpack.c.b16 %v2051, %v2049
    %v2728 = vpack.c.b16 %v2054, %v2052
    %v2729 = vpack.c.b16 %v2055, %v2053
    %v2730 = vpack.c.b16 %v2058, %v2056
    %v2731 = vpack.c.b16 %v2059, %v2057
    %v2732 = vpack.c.b16 %v2062, %v2060
    %v2733 = vpack.c.b16 %v2063, %v2061
    %v2734 = vpack.c.b16 %v2066, %v2064
    %v2735 = vpack.c.b16 %v2067, %v2065
    %v2736 = vpack.c.b16 %v2070, %v2068
    %v2737 = vpack.c.b16 %v2071, %v2069
    %v2738 = vpack.c.b16 %v2074, %v2072
    %v2739 = vpack.c.b16 %v2075, %v2073
    %v2740 = vpack.c.b16 %v2078, %v2076
    %v2741 = vpack.c.b16 %v2079, %v2077
    %v2742 = vpack.c.b16 %v2082, %v2080
    %v2743 = vpack.c.b16 %v2083, %v2081
    %v2744 = vpack.c.b16 %v2086, %v2084
    %v2745 = vpack.c.b16 %v2087, %v2085
    %v2746 = vpack.c.b16 %v2090, %v2088
    %v2747 = vpack.c.b16 %v2091, %v2089
    %v2748 = vpack.c.b16 %v2094, %v2092
    %v2749 = vpack.c.b16 %v2095, %v2093
    %v2750 = vpack.c.b16 %v2098, %v2096
    %v2751 = vpack.c.b16 %v2099, %v2097
    %v2752 = vpack.c.b16 %v2102, %v2100
    %v2753 = vpack.c.b16 %v2103, %v2101
    %v2754 = vpack.c.b16 %v2106, %v2104
    %v2755 = vpack.c.b16 %v2107, %v2105
    %v2756 = vpack.c.b16 %v2110, %v2108
    %v2757 = vpack.c.b16 %v2111, %v2109
    %v2758 = vpack.c.b16 %v2114, %v2112
    %v2759 = vpack.c.b16 %v2115, %v2113
    %v2760 = vpack.c.b16 %v2118, %v2116
    %v2761 = vpack.c.b16 %v2119, %v2117
    %v2762 = vpack.c.b16 %v2122, %v2120
    %v2763 = vpack.c.b16 %v2123, %v2121
    %v2764 = vpack.c.b16 %v2126, %v2124
    %v2765 = vpack.c.b16 %v2127, %v2125
    %v2766 = vpack.c.b16 %v2130, %v2128
    %v2767 = vpack.c.b16 %v2131, %v2129
    %v2768 = vpack.c.b16 %v2134, %v2132
    %v2769 = vpack.c.b16 %v2135, %v2133
    %v2770 = vpack.c.b16 %v2138, %v2136
    %v2771 = vpack.c.b16 %v2139, %v2137
    %v2772 = vpack.c.b16 %v2142, %v2140
    %v2773 = vpack.c.b16 %v2143, %v2141
    %v2774 = vpack.c.b16 %v2146, %v2144
    %v2775 = vpack.c.b16 %v2147, %v2145
    %v2776 = vpack.c.b16 %v2150, %v2148
    %v2777 = vpack.c.b16 %v2151, %v2149
    %v2778 = vpack.c.b16 %v2154, %v2152
    %v2779 = vpack.c.b16 %v2155, %v2153
    %v2780 = vpack.c.b16 %v2158, %v2156
    %v2781 = vpack.c.b16 %v2159, %v2157
    %v2782 = vpack.c.b16 %v2162, %v2160
    %v2783 = vpack.c.b16 %v2163, %v2161
    %v2784 = vpack.c.b16 %v2166, %v2164
    %v2785 = vpack.c.b16 %v2167, %v2165
    %v2786 = vpack.c.b16 %v2170, %v2168
    %v2787 = vpack.c.b16 %v2171, %v2169
    %v2788 = vpack.c.b16 %v2174, %v2172
    %v2789 = vpack.c.b16 %v2175, %v2173
    %v2790 = vpack.c.b16 %v2178, %v2176
    %v2791 = vpack.c.b16 %v2179, %v2177
    %v2792 = vpack.c.b16 %v2182, %v2180
    %v2793 = vpack.c.b16 %v2183, %v2181
    %v2794 = vpack.c.b16 %v2186, %v2184
    %v2795 = vpack.c.b16 %v2187, %v2185
    %v2796 = vpack.c.b16 %v2190, %v2188
    %v2797 = vpack.c.b16 %v2191, %v2189
    %v2798 = vpack.c.b16 %v2194, %v2192
    %v2799 = vpack.c.b16 %v2195, %v2193
    %v2800 = vpack.c.b16 %v2198, %v2196
    %v2801 = vpack.c.b16 %v2199, %v2197
    %v2802 = vpack.c.b16 %v2202, %v2200
    %v2803 = vpack.c.b16 %v2203, %v2201
    %v2804 = vpack.c.b16 %v2206, %v2204
    %v2805 = vpack.c.b16 %v2207, %v2205
    %v2806 = vpack.c.b16 %v2210, %v2208
    %v2807 = vpack.c.b16 %v2211, %v2209
    %v2808 = vpack.c.b16 %v2214, %v2212
    %v2809 = vpack.c.b16 %v2215, %v2213
    %v2810 = vpack.c.b16 %v2218, %v2216
    %v2811 = vpack.c.b16 %v2219, %v2217
    %v2812 = vpack.c.b16 %v2222, %v2220
    %v2813 = vpack.c.b16 %v2223, %v2221
    %v2814 = vpack.c.b16 %v2226, %v2224
    %v2815 = vpack.c.b16 %v2227, %v2225
    %v2816 = vpack.c.b16 %v2230, %v2228
    %v2817 = vpack.c.b16 %v2231, %v2229
    %v2818 = vpack.c.b16 %v2234, %v2232
    %v2819 = vpack.c.b16 %v2235, %v2233
    %v2820 = vpack.c.b16 %v2238, %v2236
    %v2821 = vpack.c.b16 %v2239, %v2237
    %v2822 = vpack.c.b16 %v2242, %v2240
    %v2823 = vpack.c.b16 %v2243, %v2241
    %v2824 = vpack.c.b16 %v2246, %v2244
    %v2825 = vpack.c.b16 %v2247, %v2245
    %v2826 = vpack.c.b16 %v2250, %v2248
    %v2827 = vpack.c.b16 %v2251, %v2249
    %v2828 = vpack.c.b16 %v2254, %v2252
    %v2829 = vpack.c.b16 %v2255, %v2253
    %v2830 = vpack.c.b16 %v2258, %v2256
    %v2831 = vpack.c.b16 %v2259, %v2257
    %v2832 = vpack.c.b16 %v2262, %v2260
    %v2833 = vpack.c.b16 %v2263, %v2261
    %v2834 = vpack.c.b16 %v2266, %v2264
    %v2835 = vpack.c.b16 %v2267, %v2265
    %v2836 = vpack.c.b16 %v2270, %v2268
    %v2837 = vpack.c.b16 %v2271, %v2269
    %v2838 = vpack.c.b16 %v2274, %v2272
    %v2839 = vpack.c.b16 %v2275, %v2273
    %v2840 = vpack.c.b16 %v2278, %v2276
    %v2841 = vpack.c.b16 %v2279, %v2277
    %v2842 = vpack.c.b16 %v2282, %v2280
    %v2843 = vpack.c.b16 %v2283, %v2281
    %v2844 = vpack.c.b16 %v2286, %v2284
    %v2845 = vpack.c.b16 %v2287, %v2285
    %v2846 = vpack.c.b16 %v2290, %v2288
    %v2847 = vpack.c.b16 %v2291, %v2289
    %v2848 = vpack.c.b16 %v2294, %v2292
    %v2849 = vpack.c.b16 %v2295, %v2293
    %v2850 = vpack.c.b16 %v2298, %v2296
    %v2851 = vpack.c.b16 %v2299, %v2297
    %v2852 = vpack.c.b16 %v2302, %v2300
    %v2853 = vpack.c.b16 %v2303, %v2301
    %v2854 = vpack.c.b16 %v2306, %v2304
    %v2855 = vpack.c.b16 %v2307, %v2305
    %v2856 = vpack.c.b16 %v2310, %v2308
    %v2857 = vpack.c.b16 %v2311, %v2309
    %v2858 = vpack.c.b16 %v2314, %v2312
    %v2859 = vpack.c.b16 %v2315, %v2313
    %v2860 = vpack.c.b16 %v2318, %v2316
    %v2861 = vpack.c.b16 %v2319, %v2317
    %v2862 = vpack.c.b16 %v2322, %v2320
    %v2863 = vpack.c.b16 %v2323, %v2321
    %v2864 = vpack.c.b16 %v2326, %v2324
    %v2865 = vpack.c.b16 %v2327, %v2325
    %v2866 = vpack.c.b16 %v2330, %v2328
    %v2867 = vpack.c.b16 %v2331, %v2329
    %v2868 = vpack.c.b16 %v2334, %v2332
    %v2869 = vpack.c.b16 %v2335, %v2333
    %v2870 = vpack.c.b16 %v2338, %v2336
    %v2871 = vpack.c.b16 %v2339, %v2337
    %v2872 = vpack.c.b16 %v2342, %v2340
    %v2873 = vpack.c.b16 %v2343, %v2341
    %v2874 = vpack.c.b16 %v2346, %v2344
    %v2875 = vpack.c.b16 %v2347, %v2345
    %v2876 = vpack.c.b16 %v2350, %v2348
    %v2877 = vpack.c.b16 %v2351, %v2349
    %v2878 = vpack.c.b16 %v2354, %v2352
    %v2879 = vpack.c.b16 %v2355, %v2353
    %v2880 = vpack.c.b16 %v2358, %v2356
    %v2881 = vpack.c.b16 %v2359, %v2357
    %v2882 = vpack.c.b16 %v2362, %v2360
    %v2883 = vpack.c.b16 %v2363, %v2361
    %v2884 = vpack.c.b16 %v2366, %v2364
    %v2885 = vpack.c.b16 %v2367, %v2365
    %v2886 = vpack.c.b16 %v2370, %v2368
    %v2887 = vpack.c.b16 %v2371, %v2369
    %v2888 = vpack.c.b16 %v2374, %v2372
    %v2889 = vpack.c.b16 %v2375, %v2373
    %v2890 = vpack.c.b16 %v2378, %v2376
    %v2891 = vpack.c.b16 %v2379, %v2377
    %3404 = vmatprep.subr.bf16.mxu0 %v2381
    %3405 = vmatpush1.bf16.msra.mxu0 %v2380
    %3406 = vmatprep.subr.bf16.mxu0 %v2383
    %3407 = vmatpush1.bf16.msra.mxu0 %v2382
    %3408 = vmatprep.subr.bf16.mxu0 %v2385
    %3409 = vmatpush1.bf16.msra.mxu0 %v2384
    %3410 = vmatprep.subr.bf16.mxu0 %v2387
    %3411 = vmatpush1.bf16.msra.mxu0 %v2386
    %3412 = vmatprep.subr.bf16.mxu0 %v2389
    %3413 = vmatpush1.bf16.msra.mxu0 %v2388
    %3414 = vmatprep.subr.bf16.mxu0 %v2391
    %3415 = vmatpush1.bf16.msra.mxu0 %v2390
    %3416 = vmatprep.subr.bf16.mxu0 %v2393
    %3417 = vmatpush1.bf16.msra.mxu0 %v2392
    %3418 = vmatprep.subr.bf16.mxu0 %v2395
    %3419 = vmatpush1.bf16.msra.mxu0 %v2394
    %3420 = vmatprep.subr.bf16.mxu0 %v2397
    %3421 = vmatpush1.bf16.msra.mxu0 %v2396
    %3422 = vmatprep.subr.bf16.mxu0 %v2399
    %3423 = vmatpush1.bf16.msra.mxu0 %v2398
    %3424 = vmatprep.subr.bf16.mxu0 %v2401
    %3425 = vmatpush1.bf16.msra.mxu0 %v2400
    %3426 = vmatprep.subr.bf16.mxu0 %v2403
    %3427 = vmatpush1.bf16.msra.mxu0 %v2402
    %3428 = vmatprep.subr.bf16.mxu0 %v2405
    %3429 = vmatpush1.bf16.msra.mxu0 %v2404
    %3430 = vmatprep.subr.bf16.mxu0 %v2407
    %3431 = vmatpush1.bf16.msra.mxu0 %v2406
    %3432 = vmatprep.subr.bf16.mxu0 %v2409
    %3433 = vmatpush1.bf16.msra.mxu0 %v2408
    %3434 = vmatprep.subr.bf16.mxu0 %v2411
    %3435 = vmatpush1.bf16.msra.mxu0 %v2410
    %3436 = vmatprep.mubr.bf16.mxu0 %v653
    %3437 = vmatmul.mubr.bf16.gmra.mrb[0].mxu0 %v639
    %v3438 = vpop.f32.mrb[0].mxu0
    %v3439 = vadd.f32 %v605, %v3438
    %v3440 = vpop.f32.mrb[0].mxu0
    %v3441 = vadd.f32 %v609, %v3440
    %v3442 = vpop.f32.mrb[0].mxu0
    %v3443 = vpop.f32.mrb[0].mxu0
    %3444 = vdwg.mxu0
    %3445 = vmatprep.subr.bf16.mxu0 %v2413
    %3446 = vmatpush1.bf16.msra.mxu0 %v2412
    %3447 = vmatprep.subr.bf16.mxu0 %v2415
    %3448 = vmatpush1.bf16.msra.mxu0 %v2414
    %3449 = vmatprep.subr.bf16.mxu0 %v2417
    %3450 = vmatpush1.bf16.msra.mxu0 %v2416
    %3451 = vmatprep.subr.bf16.mxu0 %v2419
    %3452 = vmatpush1.bf16.msra.mxu0 %v2418
    %3453 = vmatprep.subr.bf16.mxu0 %v2421
    %3454 = vmatpush1.bf16.msra.mxu0 %v2420
    %3455 = vmatprep.subr.bf16.mxu0 %v2423
    %3456 = vmatpush1.bf16.msra.mxu0 %v2422
    %3457 = vmatprep.subr.bf16.mxu0 %v2425
    %3458 = vmatpush1.bf16.msra.mxu0 %v2424
    %3459 = vmatprep.subr.bf16.mxu0 %v2427
    %3460 = vmatpush1.bf16.msra.mxu0 %v2426
    %3461 = vmatprep.subr.bf16.mxu0 %v2429
    %3462 = vmatpush1.bf16.msra.mxu0 %v2428
    %3463 = vmatprep.subr.bf16.mxu0 %v2431
    %3464 = vmatpush1.bf16.msra.mxu0 %v2430
    %3465 = vmatprep.subr.bf16.mxu0 %v2433
    %3466 = vmatpush1.bf16.msra.mxu0 %v2432
    %3467 = vmatprep.subr.bf16.mxu0 %v2435
    %3468 = vmatpush1.bf16.msra.mxu0 %v2434
    %3469 = vmatprep.subr.bf16.mxu0 %v2437
    %3470 = vmatpush1.bf16.msra.mxu0 %v2436
    %3471 = vmatprep.subr.bf16.mxu0 %v2439
    %3472 = vmatpush1.bf16.msra.mxu0 %v2438
    %3473 = vmatprep.subr.bf16.mxu0 %v2441
    %3474 = vmatpush1.bf16.msra.mxu0 %v2440
    %3475 = vmatprep.subr.bf16.mxu0 %v2443
    %3476 = vmatpush1.bf16.msra.mxu0 %v2442
    %3477 = vmatprep.mubr.bf16.mxu0 %v663
    %3478 = vmatmul.mubr.bf16.gmra.mrb[0].mxu0 %v661
    %v3479 = vpop.f32.mrb[0].mxu0
    %v3480 = vadd.f32 %v3439, %v3479
    %v3481 = vpop.f32.mrb[0].mxu0
    %v3482 = vadd.f32 %v3441, %v3481
    %v3483 = vpop.f32.mrb[0].mxu0
    %v3484 = vpop.f32.mrb[0].mxu0
    %3485 = vdwg.mxu0
    %3486 = vmatprep.subr.bf16.mxu0 %v2445
    %3487 = vmatpush1.bf16.msra.mxu0 %v2444
    %3488 = vmatprep.subr.bf16.mxu0 %v2447
    %3489 = vmatpush1.bf16.msra.mxu0 %v2446
    %3490 = vmatprep.subr.bf16.mxu0 %v2449
    %3491 = vmatpush1.bf16.msra.mxu0 %v2448
    %3492 = vmatprep.subr.bf16.mxu0 %v2451
    %3493 = vmatpush1.bf16.msra.mxu0 %v2450
    %3494 = vmatprep.subr.bf16.mxu0 %v2453
    %3495 = vmatpush1.bf16.msra.mxu0 %v2452
    %3496 = vmatprep.subr.bf16.mxu0 %v2455
    %3497 = vmatpush1.bf16.msra.mxu0 %v2454
    %3498 = vmatprep.subr.bf16.mxu0 %v2457
    %3499 = vmatpush1.bf16.msra.mxu0 %v2456
    %3500 = vmatprep.subr.bf16.mxu0 %v2459
    %3501 = vmatpush1.bf16.msra.mxu0 %v2458
    %3502 = vmatprep.subr.bf16.mxu0 %v2461
    %3503 = vmatpush1.bf16.msra.mxu0 %v2460
    %3504 = vmatprep.subr.bf16.mxu0 %v2463
    %3505 = vmatpush1.bf16.msra.mxu0 %v2462
    %3506 = vmatprep.subr.bf16.mxu0 %v2465
    %3507 = vmatpush1.bf16.msra.mxu0 %v2464
    %3508 = vmatprep.subr.bf16.mxu0 %v2467
    %3509 = vmatpush1.bf16.msra.mxu0 %v2466
    %3510 = vmatprep.subr.bf16.mxu0 %v2469
    %3511 = vmatpush1.bf16.msra.mxu0 %v2468
    %3512 = vmatprep.subr.bf16.mxu0 %v2471
    %3513 = vmatpush1.bf16.msra.mxu0 %v2470
    %3514 = vmatprep.subr.bf16.mxu0 %v2473
    %3515 = vmatpush1.bf16.msra.mxu0 %v2472
    %3516 = vmatprep.subr.bf16.mxu0 %v2475
    %3517 = vmatpush1.bf16.msra.mxu0 %v2474
    %3518 = vmatprep.mubr.bf16.mxu0 %v660
    %3519 = vmatmul.mubr.bf16.gmra.mrb[0].mxu0 %v646
    %v3520 = vpop.f32.mrb[0].mxu0
    %v3521 = vadd.f32 %v3480, %v3520
    %v3522 = vpop.f32.mrb[0].mxu0
    %v3523 = vadd.f32 %v3482, %v3522
    %v3524 = vpop.f32.mrb[0].mxu0
    %v3525 = vpop.f32.mrb[0].mxu0
    %3526 = vdwg.mxu0
    %3527 = vmatprep.subr.bf16.mxu0 %v2477
    %3528 = vmatpush1.bf16.msra.mxu0 %v2476
    %3529 = vmatprep.subr.bf16.mxu0 %v2479
    %3530 = vmatpush1.bf16.msra.mxu0 %v2478
    %3531 = vmatprep.subr.bf16.mxu0 %v2481
    %3532 = vmatpush1.bf16.msra.mxu0 %v2480
    %3533 = vmatprep.subr.bf16.mxu0 %v2483
    %3534 = vmatpush1.bf16.msra.mxu0 %v2482
    %3535 = vmatprep.subr.bf16.mxu0 %v2485
    %3536 = vmatpush1.bf16.msra.mxu0 %v2484
    %3537 = vmatprep.subr.bf16.mxu0 %v2487
    %3538 = vmatpush1.bf16.msra.mxu0 %v2486
    %3539 = vmatprep.subr.bf16.mxu0 %v2489
    %3540 = vmatpush1.bf16.msra.mxu0 %v2488
    %3541 = vmatprep.subr.bf16.mxu0 %v2491
    %3542 = vmatpush1.bf16.msra.mxu0 %v2490
    %3543 = vmatprep.subr.bf16.mxu0 %v2493
    %3544 = vmatpush1.bf16.msra.mxu0 %v2492
    %3545 = vmatprep.subr.bf16.mxu0 %v2495
    %3546 = vmatpush1.bf16.msra.mxu0 %v2494
    %3547 = vmatprep.subr.bf16.mxu0 %v2497
    %3548 = vmatpush1.bf16.msra.mxu0 %v2496
    %3549 = vmatprep.subr.bf16.mxu0 %v2499
    %3550 = vmatpush1.bf16.msra.mxu0 %v2498
    %3551 = vmatprep.subr.bf16.mxu0 %v2501
    %3552 = vmatpush1.bf16.msra.mxu0 %v2500
    %3553 = vmatprep.subr.bf16.mxu0 %v2503
    %3554 = vmatpush1.bf16.msra.mxu0 %v2502
    %3555 = vmatprep.subr.bf16.mxu0 %v2505
    %3556 = vmatpush1.bf16.msra.mxu0 %v2504
    %3557 = vmatprep.subr.bf16.mxu0 %v2507
    %3558 = vmatpush1.bf16.msra.mxu0 %v2506
    %3559 = vmatprep.mubr.bf16.mxu0 %v664
    %3560 = vmatmul.mubr.bf16.gmra.mrb[0].mxu0 %v662
    %v3561 = vpop.f32.mrb[0].mxu0
    %v3562 = vadd.f32 %v3521, %v3561
    %v3563 = vpop.f32.mrb[0].mxu0
    %v3564 = vadd.f32 %v3523, %v3563
    %v3565 = vpop.f32.mrb[0].mxu0
    %v3566 = vpop.f32.mrb[0].mxu0
    %3567 = vdwg.mxu0
    %3568 = vmatprep.subr.bf16.mxu0 %v2509
    %3569 = vmatpush1.bf16.msra.mxu0 %v2508
    %3570 = vmatprep.subr.bf16.mxu0 %v2511
    %3571 = vmatpush1.bf16.msra.mxu0 %v2510
    %3572 = vmatprep.subr.bf16.mxu0 %v2513
    %3573 = vmatpush1.bf16.msra.mxu0 %v2512
    %3574 = vmatprep.subr.bf16.mxu0 %v2515
    %3575 = vmatpush1.bf16.msra.mxu0 %v2514
    %3576 = vmatprep.subr.bf16.mxu0 %v2517
    %3577 = vmatpush1.bf16.msra.mxu0 %v2516
    %3578 = vmatprep.subr.bf16.mxu0 %v2519
    %3579 = vmatpush1.bf16.msra.mxu0 %v2518
    %3580 = vmatprep.subr.bf16.mxu0 %v2521
    %3581 = vmatpush1.bf16.msra.mxu0 %v2520
    %3582 = vmatprep.subr.bf16.mxu0 %v2523
    %3583 = vmatpush1.bf16.msra.mxu0 %v2522
    %3584 = vmatprep.subr.bf16.mxu0 %v2525
    %3585 = vmatpush1.bf16.msra.mxu0 %v2524
    %3586 = vmatprep.subr.bf16.mxu0 %v2527
    %3587 = vmatpush1.bf16.msra.mxu0 %v2526
    %3588 = vmatprep.subr.bf16.mxu0 %v2529
    %3589 = vmatpush1.bf16.msra.mxu0 %v2528
    %3590 = vmatprep.subr.bf16.mxu0 %v2531
    %3591 = vmatpush1.bf16.msra.mxu0 %v2530
    %3592 = vmatprep.subr.bf16.mxu0 %v2533
    %3593 = vmatpush1.bf16.msra.mxu0 %v2532
    %3594 = vmatprep.subr.bf16.mxu0 %v2535
    %3595 = vmatpush1.bf16.msra.mxu0 %v2534
    %3596 = vmatprep.subr.bf16.mxu0 %v2537
    %3597 = vmatpush1.bf16.msra.mxu0 %v2536
    %3598 = vmatprep.subr.bf16.mxu0 %v2539
    %3599 = vmatpush1.bf16.msra.mxu0 %v2538
    %3600 = vmatprep.mubr.bf16.mxu0 %v702
    %3601 = vmatmul.mubr.bf16.gmra.mrb[0].mxu0 %v688
    %v3602 = vpop.f32.mrb[0].mxu0
    %v3603 = vadd.f32 %v3562, %v3602
    %v3604 = vpop.f32.mrb[0].mxu0
    %v3605 = vadd.f32 %v3564, %v3604
    %v3606 = vpop.f32.mrb[0].mxu0
    %v3607 = vpop.f32.mrb[0].mxu0
    %3608 = vdwg.mxu0
    %3609 = vmatprep.subr.bf16.mxu0 %v2541
    %3610 = vmatpush1.bf16.msra.mxu0 %v2540
    %3611 = vmatprep.subr.bf16.mxu0 %v2543
    %3612 = vmatpush1.bf16.msra.mxu0 %v2542
    %3613 = vmatprep.subr.bf16.mxu0 %v2545
    %3614 = vmatpush1.bf16.msra.mxu0 %v2544
    %3615 = vmatprep.subr.bf16.mxu0 %v2547
    %3616 = vmatpush1.bf16.msra.mxu0 %v2546
    %3617 = vmatprep.subr.bf16.mxu0 %v2549
    %3618 = vmatpush1.bf16.msra.mxu0 %v2548
    %3619 = vmatprep.subr.bf16.mxu0 %v2551
    %3620 = vmatpush1.bf16.msra.mxu0 %v2550
    %3621 = vmatprep.subr.bf16.mxu0 %v2553
    %3622 = vmatpush1.bf16.msra.mxu0 %v2552
    %3623 = vmatprep.subr.bf16.mxu0 %v2555
    %3624 = vmatpush1.bf16.msra.mxu0 %v2554
    %3625 = vmatprep.subr.bf16.mxu0 %v2557
    %3626 = vmatpush1.bf16.msra.mxu0 %v2556
    %3627 = vmatprep.subr.bf16.mxu0 %v2559
    %3628 = vmatpush1.bf16.msra.mxu0 %v2558
    %3629 = vmatprep.subr.bf16.mxu0 %v2561
    %3630 = vmatpush1.bf16.msra.mxu0 %v2560
    %3631 = vmatprep.subr.bf16.mxu0 %v2563
    %3632 = vmatpush1.bf16.msra.mxu0 %v2562
    %3633 = vmatprep.subr.bf16.mxu0 %v2565
    %3634 = vmatpush1.bf16.msra.mxu0 %v2564
    %3635 = vmatprep.subr.bf16.mxu0 %v2567
    %3636 = vmatpush1.bf16.msra.mxu0 %v2566
    %3637 = vmatprep.subr.bf16.mxu0 %v2569
    %3638 = vmatpush1.bf16.msra.mxu0 %v2568
    %3639 = vmatprep.subr.bf16.mxu0 %v2571
    %3640 = vmatpush1.bf16.msra.mxu0 %v2570
    %3641 = vmatprep.mubr.bf16.mxu0 %v712
    %3642 = vmatmul.mubr.bf16.gmra.mrb[0].mxu0 %v710
    %v3643 = vpop.f32.mrb[0].mxu0
    %v3644 = vadd.f32 %v3603, %v3643
    %v3645 = vpop.f32.mrb[0].mxu0
    %v3646 = vadd.f32 %v3605, %v3645
    %v3647 = vpop.f32.mrb[0].mxu0
    %v3648 = vpop.f32.mrb[0].mxu0
    %3649 = vdwg.mxu0
    %3650 = vmatprep.subr.bf16.mxu0 %v2573
    %3651 = vmatpush1.bf16.msra.mxu0 %v2572
    %3652 = vmatprep.subr.bf16.mxu0 %v2575
    %3653 = vmatpush1.bf16.msra.mxu0 %v2574
    %3654 = vmatprep.subr.bf16.mxu0 %v2577
    %3655 = vmatpush1.bf16.msra.mxu0 %v2576
    %3656 = vmatprep.subr.bf16.mxu0 %v2579
    %3657 = vmatpush1.bf16.msra.mxu0 %v2578
    %3658 = vmatprep.subr.bf16.mxu0 %v2581
    %3659 = vmatpush1.bf16.msra.mxu0 %v2580
    %3660 = vmatprep.subr.bf16.mxu0 %v2583
    %3661 = vmatpush1.bf16.msra.mxu0 %v2582
    %3662 = vmatprep.subr.bf16.mxu0 %v2585
    %3663 = vmatpush1.bf16.msra.mxu0 %v2584
    %3664 = vmatprep.subr.bf16.mxu0 %v2587
    %3665 = vmatpush1.bf16.msra.mxu0 %v2586
    %3666 = vmatprep.subr.bf16.mxu0 %v2589
    %3667 = vmatpush1.bf16.msra.mxu0 %v2588
    %3668 = vmatprep.subr.bf16.mxu0 %v2591
    %3669 = vmatpush1.bf16.msra.mxu0 %v2590
    %3670 = vmatprep.subr.bf16.mxu0 %v2593
    %3671 = vmatpush1.bf16.msra.mxu0 %v2592
    %3672 = vmatprep.subr.bf16.mxu0 %v2595
    %3673 = vmatpush1.bf16.msra.mxu0 %v2594
    %3674 = vmatprep.subr.bf16.mxu0 %v2597
    %3675 = vmatpush1.bf16.msra.mxu0 %v2596
    %3676 = vmatprep.subr.bf16.mxu0 %v2599
    %3677 = vmatpush1.bf16.msra.mxu0 %v2598
    %3678 = vmatprep.subr.bf16.mxu0 %v2601
    %3679 = vmatpush1.bf16.msra.mxu0 %v2600
    %3680 = vmatprep.subr.bf16.mxu0 %v2603
    %3681 = vmatpush1.bf16.msra.mxu0 %v2602
    %3682 = vmatprep.mubr.bf16.mxu0 %v709
    %3683 = vmatmul.mubr.bf16.gmra.mrb[0].mxu0 %v695
    %v3684 = vpop.f32.mrb[0].mxu0
    %v3685 = vadd.f32 %v3644, %v3684
    %v3686 = vpop.f32.mrb[0].mxu0
    %v3687 = vadd.f32 %v3646, %v3686
    %v3688 = vpop.f32.mrb[0].mxu0
    %v3689 = vpop.f32.mrb[0].mxu0
    %3690 = vdwg.mxu0
    %3691 = vmatprep.subr.bf16.mxu0 %v2605
    %3692 = vmatpush1.bf16.msra.mxu0 %v2604
    %3693 = vmatprep.subr.bf16.mxu0 %v2607
    %3694 = vmatpush1.bf16.msra.mxu0 %v2606
    %3695 = vmatprep.subr.bf16.mxu0 %v2609
    %3696 = vmatpush1.bf16.msra.mxu0 %v2608
    %3697 = vmatprep.subr.bf16.mxu0 %v2611
    %3698 = vmatpush1.bf16.msra.mxu0 %v2610
    %3699 = vmatprep.subr.bf16.mxu0 %v2613
    %3700 = vmatpush1.bf16.msra.mxu0 %v2612
    %3701 = vmatprep.subr.bf16.mxu0 %v2615
    %3702 = vmatpush1.bf16.msra.mxu0 %v2614
    %3703 = vmatprep.subr.bf16.mxu0 %v2617
    %3704 = vmatpush1.bf16.msra.mxu0 %v2616
    %3705 = vmatprep.subr.bf16.mxu0 %v2619
    %3706 = vmatpush1.bf16.msra.mxu0 %v2618
    %3707 = vmatprep.subr.bf16.mxu0 %v2621
    %3708 = vmatpush1.bf16.msra.mxu0 %v2620
    %3709 = vmatprep.subr.bf16.mxu0 %v2623
    %3710 = vmatpush1.bf16.msra.mxu0 %v2622
    %3711 = vmatprep.subr.bf16.mxu0 %v2625
    %3712 = vmatpush1.bf16.msra.mxu0 %v2624
    %3713 = vmatprep.subr.bf16.mxu0 %v2627
    %3714 = vmatpush1.bf16.msra.mxu0 %v2626
    %3715 = vmatprep.subr.bf16.mxu0 %v2629
    %3716 = vmatpush1.bf16.msra.mxu0 %v2628
    %3717 = vmatprep.subr.bf16.mxu0 %v2631
    %3718 = vmatpush1.bf16.msra.mxu0 %v2630
    %3719 = vmatprep.subr.bf16.mxu0 %v2633
    %3720 = vmatpush1.bf16.msra.mxu0 %v2632
    %3721 = vmatprep.subr.bf16.mxu0 %v2635
    %3722 = vmatpush1.bf16.msra.mxu0 %v2634
    %3723 = vmatprep.mubr.bf16.mxu0 %v713
    %3724 = vmatmul.mubr.bf16.gmra.mrb[0].mxu0 %v711
    %v3725 = vpop.f32.mrb[0].mxu0
    %v3726 = vadd.f32 %v3685, %v3725
    %v3727 = vpop.f32.mrb[0].mxu0
    %v3728 = vadd.f32 %v3687, %v3727
    %v3729 = vpop.f32.mrb[0].mxu0
    %v3730 = vpop.f32.mrb[0].mxu0
    %3731 = vdwg.mxu0
    %3732 = vmatprep.subr.bf16.mxu0 %v2637
    %3733 = vmatpush1.bf16.msra.mxu0 %v2636
    %3734 = vmatprep.subr.bf16.mxu0 %v2639
    %3735 = vmatpush1.bf16.msra.mxu0 %v2638
    %3736 = vmatprep.subr.bf16.mxu0 %v2641
    %3737 = vmatpush1.bf16.msra.mxu0 %v2640
    %3738 = vmatprep.subr.bf16.mxu0 %v2643
    %3739 = vmatpush1.bf16.msra.mxu0 %v2642
    %3740 = vmatprep.subr.bf16.mxu0 %v2645
    %3741 = vmatpush1.bf16.msra.mxu0 %v2644
    %3742 = vmatprep.subr.bf16.mxu0 %v2647
    %3743 = vmatpush1.bf16.msra.mxu0 %v2646
    %3744 = vmatprep.subr.bf16.mxu0 %v2649
    %3745 = vmatpush1.bf16.msra.mxu0 %v2648
    %3746 = vmatprep.subr.bf16.mxu0 %v2651
    %3747 = vmatpush1.bf16.msra.mxu0 %v2650
    %3748 = vmatprep.subr.bf16.mxu0 %v2653
    %3749 = vmatpush1.bf16.msra.mxu0 %v2652
    %3750 = vmatprep.subr.bf16.mxu0 %v2655
    %3751 = vmatpush1.bf16.msra.mxu0 %v2654
    %3752 = vmatprep.subr.bf16.mxu0 %v2657
    %3753 = vmatpush1.bf16.msra.mxu0 %v2656
    %3754 = vmatprep.subr.bf16.mxu0 %v2659
    %3755 = vmatpush1.bf16.msra.mxu0 %v2658
    %3756 = vmatprep.subr.bf16.mxu0 %v2661
    %3757 = vmatpush1.bf16.msra.mxu0 %v2660
    %3758 = vmatprep.subr.bf16.mxu0 %v2663
    %3759 = vmatpush1.bf16.msra.mxu0 %v2662
    %3760 = vmatprep.subr.bf16.mxu0 %v2665
    %3761 = vmatpush1.bf16.msra.mxu0 %v2664
    %3762 = vmatprep.subr.bf16.mxu0 %v2667
    %3763 = vmatpush1.bf16.msra.mxu0 %v2666
    %3764 = vmatprep.mubr.bf16.mxu0 %v751
    %3765 = vmatmul.mubr.bf16.gmra.mrb[0].mxu0 %v737
    %v3766 = vpop.f32.mrb[0].mxu0
    %v3767 = vadd.f32 %v3726, %v3766
    %v3768 = vpop.f32.mrb[0].mxu0
    %v3769 = vadd.f32 %v3728, %v3768
    %v3770 = vpop.f32.mrb[0].mxu0
    %v3771 = vpop.f32.mrb[0].mxu0
    %3772 = vdwg.mxu0
    %3773 = vmatprep.subr.bf16.mxu0 %v2669
    %3774 = vmatpush1.bf16.msra.mxu0 %v2668
    %3775 = vmatprep.subr.bf16.mxu0 %v2671
    %3776 = vmatpush1.bf16.msra.mxu0 %v2670
    %3777 = vmatprep.subr.bf16.mxu0 %v2673
    %3778 = vmatpush1.bf16.msra.mxu0 %v2672
    %3779 = vmatprep.subr.bf16.mxu0 %v2675
    %3780 = vmatpush1.bf16.msra.mxu0 %v2674
    %3781 = vmatprep.subr.bf16.mxu0 %v2677
    %3782 = vmatpush1.bf16.msra.mxu0 %v2676
    %3783 = vmatprep.subr.bf16.mxu0 %v2679
    %3784 = vmatpush1.bf16.msra.mxu0 %v2678
    %3785 = vmatprep.subr.bf16.mxu0 %v2681
    %3786 = vmatpush1.bf16.msra.mxu0 %v2680
    %3787 = vmatprep.subr.bf16.mxu0 %v2683
    %3788 = vmatpush1.bf16.msra.mxu0 %v2682
    %3789 = vmatprep.subr.bf16.mxu0 %v2685
    %3790 = vmatpush1.bf16.msra.mxu0 %v2684
    %3791 = vmatprep.subr.bf16.mxu0 %v2687
    %3792 = vmatpush1.bf16.msra.mxu0 %v2686
    %3793 = vmatprep.subr.bf16.mxu0 %v2689
    %3794 = vmatpush1.bf16.msra.mxu0 %v2688
    %3795 = vmatprep.subr.bf16.mxu0 %v2691
    %3796 = vmatpush1.bf16.msra.mxu0 %v2690
    %3797 = vmatprep.subr.bf16.mxu0 %v2693
    %3798 = vmatpush1.bf16.msra.mxu0 %v2692
    %3799 = vmatprep.subr.bf16.mxu0 %v2695
    %3800 = vmatpush1.bf16.msra.mxu0 %v2694
    %3801 = vmatprep.subr.bf16.mxu0 %v2697
    %3802 = vmatpush1.bf16.msra.mxu0 %v2696
    %3803 = vmatprep.subr.bf16.mxu0 %v2699
    %3804 = vmatpush1.bf16.msra.mxu0 %v2698
    %3805 = vmatprep.mubr.bf16.mxu0 %v761
    %3806 = vmatmul.mubr.bf16.gmra.mrb[0].mxu0 %v759
    %v3807 = vpop.f32.mrb[0].mxu0
    %v3808 = vadd.f32 %v3767, %v3807
    %v3809 = vpop.f32.mrb[0].mxu0
    %v3810 = vadd.f32 %v3769, %v3809
    %v3811 = vpop.f32.mrb[0].mxu0
    %v3812 = vpop.f32.mrb[0].mxu0
    %3813 = vdwg.mxu0
    %3814 = vmatprep.subr.bf16.mxu0 %v2701
    %3815 = vmatpush1.bf16.msra.mxu0 %v2700
    %3816 = vmatprep.subr.bf16.mxu0 %v2703
    %3817 = vmatpush1.bf16.msra.mxu0 %v2702
    %3818 = vmatprep.subr.bf16.mxu0 %v2705
    %3819 = vmatpush1.bf16.msra.mxu0 %v2704
    %3820 = vmatprep.subr.bf16.mxu0 %v2707
    %3821 = vmatpush1.bf16.msra.mxu0 %v2706
    %3822 = vmatprep.subr.bf16.mxu0 %v2709
    %3823 = vmatpush1.bf16.msra.mxu0 %v2708
    %3824 = vmatprep.subr.bf16.mxu0 %v2711
    %3825 = vmatpush1.bf16.msra.mxu0 %v2710
    %3826 = vmatprep.subr.bf16.mxu0 %v2713
    %3827 = vmatpush1.bf16.msra.mxu0 %v2712
    %3828 = vmatprep.subr.bf16.mxu0 %v2715
    %3829 = vmatpush1.bf16.msra.mxu0 %v2714
    %3830 = vmatprep.subr.bf16.mxu0 %v2717
    %3831 = vmatpush1.bf16.msra.mxu0 %v2716
    %3832 = vmatprep.subr.bf16.mxu0 %v2719
    %3833 = vmatpush1.bf16.msra.mxu0 %v2718
    %3834 = vmatprep.subr.bf16.mxu0 %v2721
    %3835 = vmatpush1.bf16.msra.mxu0 %v2720
    %3836 = vmatprep.subr.bf16.mxu0 %v2723
    %3837 = vmatpush1.bf16.msra.mxu0 %v2722
    %3838 = vmatprep.subr.bf16.mxu0 %v2725
    %3839 = vmatpush1.bf16.msra.mxu0 %v2724
    %3840 = vmatprep.subr.bf16.mxu0 %v2727
    %3841 = vmatpush1.bf16.msra.mxu0 %v2726
    %3842 = vmatprep.subr.bf16.mxu0 %v2729
    %3843 = vmatpush1.bf16.msra.mxu0 %v2728
    %3844 = vmatprep.subr.bf16.mxu0 %v2731
    %3845 = vmatpush1.bf16.msra.mxu0 %v2730
    %3846 = vmatprep.mubr.bf16.mxu0 %v758
    %3847 = vmatmul.mubr.bf16.gmra.mrb[0].mxu0 %v744
    %v3848 = vpop.f32.mrb[0].mxu0
    %v3849 = vadd.f32 %v3808, %v3848
    %v3850 = vpop.f32.mrb[0].mxu0
    %v3851 = vadd.f32 %v3810, %v3850
    %v3852 = vpop.f32.mrb[0].mxu0
    %v3853 = vpop.f32.mrb[0].mxu0
    %3854 = vdwg.mxu0
    %3855 = vmatprep.subr.bf16.mxu0 %v2733
    %3856 = vmatpush1.bf16.msra.mxu0 %v2732
    %3857 = vmatprep.subr.bf16.mxu0 %v2735
    %3858 = vmatpush1.bf16.msra.mxu0 %v2734
    %3859 = vmatprep.subr.bf16.mxu0 %v2737
    %3860 = vmatpush1.bf16.msra.mxu0 %v2736
    %3861 = vmatprep.subr.bf16.mxu0 %v2739
    %3862 = vmatpush1.bf16.msra.mxu0 %v2738
    %3863 = vmatprep.subr.bf16.mxu0 %v2741
    %3864 = vmatpush1.bf16.msra.mxu0 %v2740
    %3865 = vmatprep.subr.bf16.mxu0 %v2743
    %3866 = vmatpush1.bf16.msra.mxu0 %v2742
    %3867 = vmatprep.subr.bf16.mxu0 %v2745
    %3868 = vmatpush1.bf16.msra.mxu0 %v2744
    %3869 = vmatprep.subr.bf16.mxu0 %v2747
    %3870 = vmatpush1.bf16.msra.mxu0 %v2746
    %3871 = vmatprep.subr.bf16.mxu0 %v2749
    %3872 = vmatpush1.bf16.msra.mxu0 %v2748
    %3873 = vmatprep.subr.bf16.mxu0 %v2751
    %3874 = vmatpush1.bf16.msra.mxu0 %v2750
    %3875 = vmatprep.subr.bf16.mxu0 %v2753
    %3876 = vmatpush1.bf16.msra.mxu0 %v2752
    %3877 = vmatprep.subr.bf16.mxu0 %v2755
    %3878 = vmatpush1.bf16.msra.mxu0 %v2754
    %3879 = vmatprep.subr.bf16.mxu0 %v2757
    %3880 = vmatpush1.bf16.msra.mxu0 %v2756
    %3881 = vmatprep.subr.bf16.mxu0 %v2759
    %3882 = vmatpush1.bf16.msra.mxu0 %v2758
    %3883 = vmatprep.subr.bf16.mxu0 %v2761
    %3884 = vmatpush1.bf16.msra.mxu0 %v2760
    %3885 = vmatprep.subr.bf16.mxu0 %v2763
    %3886 = vmatpush1.bf16.msra.mxu0 %v2762
    %3887 = vmatprep.mubr.bf16.mxu0 %v762
    %3888 = vmatmul.mubr.bf16.gmra.mrb[0].mxu0 %v760
    %v3889 = vpop.f32.mrb[0].mxu0
    %v3890 = vadd.f32 %v3849, %v3889
    %v3891 = vpop.f32.mrb[0].mxu0
    %v3892 = vadd.f32 %v3851, %v3891
    %v3893 = vpop.f32.mrb[0].mxu0
    %v3894 = vpop.f32.mrb[0].mxu0
    %3895 = vdwg.mxu0
    %3896 = vmatprep.subr.bf16.mxu0 %v2765
    %3897 = vmatpush1.bf16.msra.mxu0 %v2764
    %3898 = vmatprep.subr.bf16.mxu0 %v2767
    %3899 = vmatpush1.bf16.msra.mxu0 %v2766
    %3900 = vmatprep.subr.bf16.mxu0 %v2769
    %3901 = vmatpush1.bf16.msra.mxu0 %v2768
    %3902 = vmatprep.subr.bf16.mxu0 %v2771
    %3903 = vmatpush1.bf16.msra.mxu0 %v2770
    %3904 = vmatprep.subr.bf16.mxu0 %v2773
    %3905 = vmatpush1.bf16.msra.mxu0 %v2772
    %3906 = vmatprep.subr.bf16.mxu0 %v2775
    %3907 = vmatpush1.bf16.msra.mxu0 %v2774
    %3908 = vmatprep.subr.bf16.mxu0 %v2777
    %3909 = vmatpush1.bf16.msra.mxu0 %v2776
    %3910 = vmatprep.subr.bf16.mxu0 %v2779
    %3911 = vmatpush1.bf16.msra.mxu0 %v2778
    %3912 = vmatprep.subr.bf16.mxu0 %v2781
    %3913 = vmatpush1.bf16.msra.mxu0 %v2780
    %3914 = vmatprep.subr.bf16.mxu0 %v2783
    %3915 = vmatpush1.bf16.msra.mxu0 %v2782
    %3916 = vmatprep.subr.bf16.mxu0 %v2785
    %3917 = vmatpush1.bf16.msra.mxu0 %v2784
    %3918 = vmatprep.subr.bf16.mxu0 %v2787
    %3919 = vmatpush1.bf16.msra.mxu0 %v2786
    %3920 = vmatprep.subr.bf16.mxu0 %v2789
    %3921 = vmatpush1.bf16.msra.mxu0 %v2788
    %3922 = vmatprep.subr.bf16.mxu0 %v2791
    %3923 = vmatpush1.bf16.msra.mxu0 %v2790
    %3924 = vmatprep.subr.bf16.mxu0 %v2793
    %3925 = vmatpush1.bf16.msra.mxu0 %v2792
    %3926 = vmatprep.subr.bf16.mxu0 %v2795
    %3927 = vmatpush1.bf16.msra.mxu0 %v2794
    %3928 = vmatprep.mubr.bf16.mxu0 %v800
    %3929 = vmatmul.mubr.bf16.gmra.mrb[0].mxu0 %v786
    %v3930 = vpop.f32.mrb[0].mxu0
    %v3931 = vadd.f32 %v3890, %v3930
    %v3932 = vpop.f32.mrb[0].mxu0
    %v3933 = vadd.f32 %v3892, %v3932
    %v3934 = vpop.f32.mrb[0].mxu0
    %v3935 = vpop.f32.mrb[0].mxu0
    %3936 = vdwg.mxu0
    %3937 = vmatprep.subr.bf16.mxu0 %v2797
    %3938 = vmatpush1.bf16.msra.mxu0 %v2796
    %3939 = vmatprep.subr.bf16.mxu0 %v2799
    %3940 = vmatpush1.bf16.msra.mxu0 %v2798
    %3941 = vmatprep.subr.bf16.mxu0 %v2801
    %3942 = vmatpush1.bf16.msra.mxu0 %v2800
    %3943 = vmatprep.subr.bf16.mxu0 %v2803
    %3944 = vmatpush1.bf16.msra.mxu0 %v2802
    %3945 = vmatprep.subr.bf16.mxu0 %v2805
    %3946 = vmatpush1.bf16.msra.mxu0 %v2804
    %3947 = vmatprep.subr.bf16.mxu0 %v2807
    %3948 = vmatpush1.bf16.msra.mxu0 %v2806
    %3949 = vmatprep.subr.bf16.mxu0 %v2809
    %3950 = vmatpush1.bf16.msra.mxu0 %v2808
    %3951 = vmatprep.subr.bf16.mxu0 %v2811
    %3952 = vmatpush1.bf16.msra.mxu0 %v2810
    %3953 = vmatprep.subr.bf16.mxu0 %v2813
    %3954 = vmatpush1.bf16.msra.mxu0 %v2812
    %3955 = vmatprep.subr.bf16.mxu0 %v2815
    %3956 = vmatpush1.bf16.msra.mxu0 %v2814
    %3957 = vmatprep.subr.bf16.mxu0 %v2817
    %3958 = vmatpush1.bf16.msra.mxu0 %v2816
    %3959 = vmatprep.subr.bf16.mxu0 %v2819
    %3960 = vmatpush1.bf16.msra.mxu0 %v2818
    %3961 = vmatprep.subr.bf16.mxu0 %v2821
    %3962 = vmatpush1.bf16.msra.mxu0 %v2820
    %3963 = vmatprep.subr.bf16.mxu0 %v2823
    %3964 = vmatpush1.bf16.msra.mxu0 %v2822
    %3965 = vmatprep.subr.bf16.mxu0 %v2825
    %3966 = vmatpush1.bf16.msra.mxu0 %v2824
    %3967 = vmatprep.subr.bf16.mxu0 %v2827
    %3968 = vmatpush1.bf16.msra.mxu0 %v2826
    %3969 = vmatprep.mubr.bf16.mxu0 %v810
    %3970 = vmatmul.mubr.bf16.gmra.mrb[0].mxu0 %v808
    %v3971 = vpop.f32.mrb[0].mxu0
    %v3972 = vadd.f32 %v3931, %v3971
    %v3973 = vpop.f32.mrb[0].mxu0
    %v3974 = vadd.f32 %v3933, %v3973
    %v3975 = vpop.f32.mrb[0].mxu0
    %v3976 = vpop.f32.mrb[0].mxu0
    %3977 = vdwg.mxu0
    %3978 = vmatprep.subr.bf16.mxu0 %v2829
    %3979 = vmatpush1.bf16.msra.mxu0 %v2828
    %3980 = vmatprep.subr.bf16.mxu0 %v2831
    %3981 = vmatpush1.bf16.msra.mxu0 %v2830
    %3982 = vmatprep.subr.bf16.mxu0 %v2833
    %3983 = vmatpush1.bf16.msra.mxu0 %v2832
    %3984 = vmatprep.subr.bf16.mxu0 %v2835
    %3985 = vmatpush1.bf16.msra.mxu0 %v2834
    %3986 = vmatprep.subr.bf16.mxu0 %v2837
    %3987 = vmatpush1.bf16.msra.mxu0 %v2836
    %3988 = vmatprep.subr.bf16.mxu0 %v2839
    %3989 = vmatpush1.bf16.msra.mxu0 %v2838
    %3990 = vmatprep.subr.bf16.mxu0 %v2841
    %3991 = vmatpush1.bf16.msra.mxu0 %v2840
    %3992 = vmatprep.subr.bf16.mxu0 %v2843
    %3993 = vmatpush1.bf16.msra.mxu0 %v2842
    %3994 = vmatprep.subr.bf16.mxu0 %v2845
    %3995 = vmatpush1.bf16.msra.mxu0 %v2844
    %3996 = vmatprep.subr.bf16.mxu0 %v2847
    %3997 = vmatpush1.bf16.msra.mxu0 %v2846
    %3998 = vmatprep.subr.bf16.mxu0 %v2849
    %3999 = vmatpush1.bf16.msra.mxu0 %v2848
    %4000 = vmatprep.subr.bf16.mxu0 %v2851
    %4001 = vmatpush1.bf16.msra.mxu0 %v2850
    %4002 = vmatprep.subr.bf16.mxu0 %v2853
    %4003 = vmatpush1.bf16.msra.mxu0 %v2852
    %4004 = vmatprep.subr.bf16.mxu0 %v2855
    %4005 = vmatpush1.bf16.msra.mxu0 %v2854
    %4006 = vmatprep.subr.bf16.mxu0 %v2857
    %4007 = vmatpush1.bf16.msra.mxu0 %v2856
    %4008 = vmatprep.subr.bf16.mxu0 %v2859
    %4009 = vmatpush1.bf16.msra.mxu0 %v2858
    %4010 = vmatprep.mubr.bf16.mxu0 %v807
    %4011 = vmatmul.mubr.bf16.gmra.mrb[0].mxu0 %v793
    %v4012 = vpop.f32.mrb[0].mxu0
    %v4013 = vadd.f32 %v3972, %v4012
    %v4014 = vpop.f32.mrb[0].mxu0
    %v4015 = vadd.f32 %v3974, %v4014
    %v4016 = vpop.f32.mrb[0].mxu0
    %v4017 = vpop.f32.mrb[0].mxu0
    %4018 = vdwg.mxu0
    %4019 = vmatprep.subr.bf16.mxu0 %v2861
    %4020 = vmatpush1.bf16.msra.mxu0 %v2860
    %4021 = vmatprep.subr.bf16.mxu0 %v2863
    %4022 = vmatpush1.bf16.msra.mxu0 %v2862
    %4023 = vmatprep.subr.bf16.mxu0 %v2865
    %4024 = vmatpush1.bf16.msra.mxu0 %v2864
    %4025 = vmatprep.subr.bf16.mxu0 %v2867
    %4026 = vmatpush1.bf16.msra.mxu0 %v2866
    %4027 = vmatprep.subr.bf16.mxu0 %v2869
    %4028 = vmatpush1.bf16.msra.mxu0 %v2868
    %4029 = vmatprep.subr.bf16.mxu0 %v2871
    %4030 = vmatpush1.bf16.msra.mxu0 %v2870
    %4031 = vmatprep.subr.bf16.mxu0 %v2873
    %4032 = vmatpush1.bf16.msra.mxu0 %v2872
    %4033 = vmatprep.subr.bf16.mxu0 %v2875
    %4034 = vmatpush1.bf16.msra.mxu0 %v2874
    %4035 = vmatprep.subr.bf16.mxu0 %v2877
    %4036 = vmatpush1.bf16.msra.mxu0 %v2876
    %4037 = vmatprep.subr.bf16.mxu0 %v2879
    %4038 = vmatpush1.bf16.msra.mxu0 %v2878
    %4039 = vmatprep.subr.bf16.mxu0 %v2881
    %4040 = vmatpush1.bf16.msra.mxu0 %v2880
    %4041 = vmatprep.subr.bf16.mxu0 %v2883
    %4042 = vmatpush1.bf16.msra.mxu0 %v2882
    %4043 = vmatprep.subr.bf16.mxu0 %v2885
    %4044 = vmatpush1.bf16.msra.mxu0 %v2884
    %4045 = vmatprep.subr.bf16.mxu0 %v2887
    %4046 = vmatpush1.bf16.msra.mxu0 %v2886
    %4047 = vmatprep.subr.bf16.mxu0 %v2889
    %4048 = vmatpush1.bf16.msra.mxu0 %v2888
    %4049 = vmatprep.subr.bf16.mxu0 %v2891
    %4050 = vmatpush1.bf16.msra.mxu0 %v2890
    %4051 = vmatprep.mubr.bf16.mxu0 %v811
    %4052 = vmatmul.mubr.bf16.gmra.mrb[0].mxu0 %v809
    %v4053 = vpop.f32.mrb[0].mxu0
    %v4054 = vadd.f32 %v4013, %v4053
    %v4055 = vpop.f32.mrb[0].mxu0
    %v4056 = vadd.f32 %v4015, %v4055
    %v4057 = vpop.f32.mrb[0].mxu0
    %v4058 = vpop.f32.mrb[0].mxu0
    %4059 = vdwg.mxu0
    %vm4060 = vcmp.gt.f32.partialorder %v4054, 0.0
    %vm4061 = vcmp.gt.f32.partialorder %v4056, 0.0
    %v4062 = vmul.f32 %v4054, 0.1
    %v4063 = vmul.f32 %v4056, 0.1
    %v4064 = vsel %vm4060, %v4054, %v4062
    %v4065 = vsel %vm4061, %v4056, %v4063
    %v4066 = vpack.c.bf16 %v4064, %v4064
    %v4067 = vpack.c.bf16 %v4065, %v4065
    %v4068 = vld [vmem:[#allocation8] sm:$0xf]
    %v4069 = vld [vmem:[#allocation8 + $0x4] sm:$0xf]
    %v4070 = vld [vmem:[#allocation8 + $0x8] sm:$0xf]
    %v4071 = vld [vmem:[#allocation8 + $0xc] sm:$0xf]
    %v4072 = vld [vmem:[#allocation8 + $0x10] sm:$0xf]
    %v4073 = vld [vmem:[#allocation8 + $0x14] sm:$0xf]
    %v4074 = vld [vmem:[#allocation8 + $0x18] sm:$0xf]
    %v4075 = vld [vmem:[#allocation8 + $0x1c] sm:$0xf]
    %v4076 = vld [vmem:[#allocation8 + $0x20] sm:$0xf]
    %v4077 = vld [vmem:[#allocation8 + $0x24] sm:$0xf]
    %v4078 = vld [vmem:[#allocation8 + $0x28] sm:$0xf]
    %v4079 = vld [vmem:[#allocation8 + $0x2c] sm:$0xf]
    %v4080 = vld [vmem:[#allocation8 + $0x30] sm:$0xf]
    %v4081 = vld [vmem:[#allocation8 + $0x34] sm:$0xf]
    %v4082 = vld [vmem:[#allocation8 + $0x38] sm:$0xf]
    %v4083 = vld [vmem:[#allocation8 + $0x3c] sm:$0xf]
    %v4084 = vld [vmem:[#allocation8 + $0x40] sm:$0xf]
    %v4085 = vld [vmem:[#allocation8 + $0x44] sm:$0xf]
    %v4086 = vld [vmem:[#allocation8 + $0x48] sm:$0xf]
    %v4087 = vld [vmem:[#allocation8 + $0x4c] sm:$0xf]
    %v4088 = vld [vmem:[#allocation8 + $0x50] sm:$0xf]
    %v4089 = vld [vmem:[#allocation8 + $0x54] sm:$0xf]
    %v4090 = vld [vmem:[#allocation8 + $0x58] sm:$0xf]
    %v4091 = vld [vmem:[#allocation8 + $0x5c] sm:$0xf]
    %v4092 = vld [vmem:[#allocation8 + $0x60] sm:$0xf]
    %v4093 = vld [vmem:[#allocation8 + $0x64] sm:$0xf]
    %v4094 = vld [vmem:[#allocation8 + $0x68] sm:$0xf]
    %v4095 = vld [vmem:[#allocation8 + $0x6c] sm:$0xf]
    %v4096 = vld [vmem:[#allocation8 + $0x70] sm:$0xf]
    %v4097 = vld [vmem:[#allocation8 + $0x74] sm:$0xf]
    %v4098 = vld [vmem:[#allocation8 + $0x78] sm:$0xf]
    %v4099 = vld [vmem:[#allocation8 + $0x7c] sm:$0xf]
    %v4100 = vld [vmem:[#allocation10] sm:$0x1]
    %v4102 = vlaneseq
    %v4103 = vshrl.u32 %v4102, 7
    %v4104 = vsub.s32 0, %v4103
    %v4105 = vrot.slane %v4100, %v4104
    %v4139 = vunpack.c.l.b16 %v4068
    %v4140 = vunpack.c.l.b16 %v4069
    %v4141 = vunpack.c.l.b16 %v4070
    %v4142 = vunpack.c.l.b16 %v4071
    %v4143 = vunpack.c.l.b16 %v4072
    %v4144 = vunpack.c.l.b16 %v4073
    %v4145 = vunpack.c.l.b16 %v4074
    %v4146 = vunpack.c.l.b16 %v4075
    %v4147 = vunpack.c.l.b16 %v4076
    %v4148 = vunpack.c.l.b16 %v4077
    %v4149 = vunpack.c.l.b16 %v4078
    %v4150 = vunpack.c.l.b16 %v4079
    %v4151 = vunpack.c.l.b16 %v4080
    %v4152 = vunpack.c.l.b16 %v4081
    %v4153 = vunpack.c.l.b16 %v4082
    %v4154 = vunpack.c.l.b16 %v4083
    %v4155 = vunpack.c.l.b16 %v4084
    %v4156 = vunpack.c.l.b16 %v4085
    %v4157 = vunpack.c.l.b16 %v4086
    %v4158 = vunpack.c.l.b16 %v4087
    %v4159 = vunpack.c.l.b16 %v4088
    %v4160 = vunpack.c.l.b16 %v4089
    %v4161 = vunpack.c.l.b16 %v4090
    %v4162 = vunpack.c.l.b16 %v4091
    %v4163 = vunpack.c.l.b16 %v4092
    %v4164 = vunpack.c.l.b16 %v4093
    %v4165 = vunpack.c.l.b16 %v4094
    %v4166 = vunpack.c.l.b16 %v4095
    %v4167 = vunpack.c.l.b16 %v4096
    %v4168 = vunpack.c.l.b16 %v4097
    %v4169 = vunpack.c.l.b16 %v4098
    %v4170 = vunpack.c.l.b16 %v4099
    %v4171 = vpack.c.b16 %v4140, %v4139
    %v4172 = vpack.c.b16 %v4142, %v4141
    %v4173 = vpack.c.b16 %v4144, %v4143
    %v4174 = vpack.c.b16 %v4146, %v4145
    %v4175 = vpack.c.b16 %v4148, %v4147
    %v4176 = vpack.c.b16 %v4150, %v4149
    %v4177 = vpack.c.b16 %v4152, %v4151
    %v4178 = vpack.c.b16 %v4154, %v4153
    %v4179 = vpack.c.b16 %v4156, %v4155
    %v4180 = vpack.c.b16 %v4158, %v4157
    %v4181 = vpack.c.b16 %v4160, %v4159
    %v4182 = vpack.c.b16 %v4162, %v4161
    %v4183 = vpack.c.b16 %v4164, %v4163
    %v4184 = vpack.c.b16 %v4166, %v4165
    %v4185 = vpack.c.b16 %v4168, %v4167
    %v4186 = vpack.c.b16 %v4170, %v4169
    %4203 = vmatprep.subr.bf16.mxu0 0
    %4204 = vmatpush1.bf16.msra.mxu0 %v4171
    %4205 = vmatprep.subr.bf16.mxu0 0
    %4206 = vmatpush1.bf16.msra.mxu0 %v4172
    %4207 = vmatprep.subr.bf16.mxu0 0
    %4208 = vmatpush1.bf16.msra.mxu0 %v4173
    %4209 = vmatprep.subr.bf16.mxu0 0
    %4210 = vmatpush1.bf16.msra.mxu0 %v4174
    %4211 = vmatprep.subr.bf16.mxu0 0
    %4212 = vmatpush1.bf16.msra.mxu0 %v4175
    %4213 = vmatprep.subr.bf16.mxu0 0
    %4214 = vmatpush1.bf16.msra.mxu0 %v4176
    %4215 = vmatprep.subr.bf16.mxu0 0
    %4216 = vmatpush1.bf16.msra.mxu0 %v4177
    %4217 = vmatprep.subr.bf16.mxu0 0
    %4218 = vmatpush1.bf16.msra.mxu0 %v4178
    %4219 = vmatprep.subr.bf16.mxu0 0
    %4220 = vmatpush1.bf16.msra.mxu0 %v4179
    %4221 = vmatprep.subr.bf16.mxu0 0
    %4222 = vmatpush1.bf16.msra.mxu0 %v4180
    %4223 = vmatprep.subr.bf16.mxu0 0
    %4224 = vmatpush1.bf16.msra.mxu0 %v4181
    %4225 = vmatprep.subr.bf16.mxu0 0
    %4226 = vmatpush1.bf16.msra.mxu0 %v4182
    %4227 = vmatprep.subr.bf16.mxu0 0
    %4228 = vmatpush1.bf16.msra.mxu0 %v4183
    %4229 = vmatprep.subr.bf16.mxu0 0
    %4230 = vmatpush1.bf16.msra.mxu0 %v4184
    %4231 = vmatprep.subr.bf16.mxu0 0
    %4232 = vmatpush1.bf16.msra.mxu0 %v4185
    %4233 = vmatprep.subr.bf16.mxu0 0
    %4234 = vmatpush1.bf16.msra.mxu0 %v4186
    %4235 = vmatprep.mubr.bf16.mxu0 %v4067
    %4236 = vmatmul.mubr.bf16.gmra.mrb[0].mxu0 %v4066
    %v4237 = vpop.f32.mrb[0].mxu0
    %v4238 = vadd.f32 %v4105, %v4237
    %v4239 = vpop.f32.mrb[0].mxu0
    %v4240 = vpop.f32.mrb[0].mxu0
    %v4241 = vpop.f32.mrb[0].mxu0
    %4242 = vdwg.mxu0
    %4243 = vst [vmem:[#allocation11] sm:$0x3] %v4238
    // Predicated region
    $region42: #{tpu_custom_call.1} parent=1 // pred_check
      _
    $region43: #{tpu_custom_call.1} parent=1 // pred_check_branch
      %4245 = sbr.rel (0) target = $region45
    $region44: #{tpu_custom_call.1} parent=1 // pred_region
      %s4247 = ssub.s32 32, 32
      %4248 = vsyncadd [#allocation4], %s4247
      %s4250 = sshll.u32 [#allocation11], 4
      %s4251 = int_to_ptr.vmem [resolvable:$true] %s4250
      %4253 = dma.vmem_to_hbm [thread:$0]  %s4251, 32, %s5, [#allocation4]
    $region45: #{tpu_custom_call.1} parent=1 // pred_fallthru
      _
    // Predicated region
    $region46: #{tpu_custom_call.1} parent=1 // pred_check
      _
    $region47: #{tpu_custom_call.1} parent=1 // pred_check_branch
      %4255 = sbr.rel (0) target = $region49
    $region48: #{tpu_custom_call.1} parent=1 // pred_region
      %4256 = dma.done [#allocation4], 32
    $region49: #{tpu_custom_call.1} parent=1 // pred_fallthru
      _
    %4257 = vsyncpa [#allocation3], 1
    %4258 = vsyncpa [#allocation6], 1
    %4259 = vsyncpa [#allocation9], 1
    %4260 = vsyncpa [#allocation4], 1

</llo_original>
